<compile_context>
chip_gen: v7x
topology: tpu7x:2x2x1
jax: 0.10.0
libtpu: 0.0.40
codegen_flags: <defaults>
</compile_context>

<pallas_src>
import functools

import jax
import jax.numpy as jnp
import numpy as np
from jax.experimental import pallas as pl
from jax.experimental.pallas import tpu as pltpu

_BN_EPS = 1e-5


# ------------------------------- Pallas kernel ------------------------------ #

def _bottleneck_kernel(*refs, H, W, has_proj):
    """Fully-fused bottleneck block for one image (grid axis = batch).

    refs (has_proj=True):
        x, w1, b1, w2, b2, w3, b3, w_sc, b_sc, out
    refs (has_proj=False):
        x, w1, b1, w2, b2, w3, b3, out
    All weights are BN-scale-folded bf16; b* are f32 per-channel shifts.
    """
    if has_proj:
        (x_ref, w1_ref, b1_ref, w2_ref, b2_ref, w3_ref, b3_ref,
         wsc_ref, bsc_ref, o_ref) = refs
    else:
        (x_ref, w1_ref, b1_ref, w2_ref, b2_ref, w3_ref, b3_ref, o_ref) = refs

    HW = H * W
    x = x_ref[0]                                                # (HW, Cin) bf16

    # ---- conv1 (1x1) + bn1 + relu ------------------------------------------
    a1 = jnp.dot(x, w1_ref[...], preferred_element_type=jnp.float32)
    h1 = jnp.maximum(a1 + b1_ref[...], 0.0)                     # (HW, planes) f32
    planes = h1.shape[1]

    # ---- conv2 (3x3, pad=1, evaluated at stride 1) + bn2 + relu -------------
    # Row-pad the flat (h-major) activation so every tap window is an
    # in-bounds static slice; column wrap-around is removed with masks.
    pad_rows = ((W + 1 + 15) // 16) * 16            # >= W+1, sublane-friendly
    zpad = jnp.zeros((pad_rows, planes), jnp.float32)
    buf = jnp.concatenate([zpad, h1, zpad], axis=0)             # (HW+2P, planes)

    col = jax.lax.broadcasted_iota(jnp.int32, (HW, planes), 0) % W
    not_left = col != 0
    not_right = col != (W - 1)

    acc2 = jnp.zeros((HW, planes), jnp.float32)
    for t in range(9):                       # taps in (ky, kx) row-major order
        ky, kx = t // 3, t % 3
        start = pad_rows + (ky - 1) * W + (kx - 1)
        win = buf[start:start + HW, :]
        if kx == 0:
            win = jnp.where(not_left, win, jnp.zeros_like(win))
        elif kx == 2:
            win = jnp.where(not_right, win, jnp.zeros_like(win))
        acc2 = acc2 + jnp.dot(win.astype(jnp.bfloat16), w2_ref[t],
                              preferred_element_type=jnp.float32)
    h2 = jnp.maximum(acc2 + b2_ref[...], 0.0).astype(jnp.bfloat16)   # (HW, planes)

    # ---- conv3 (1x1) + bn3 + shortcut + add + relu --------------------------
    acc3 = jnp.dot(h2, w3_ref[...], preferred_element_type=jnp.float32)
    acc3 = acc3 + b3_ref[...]
    if has_proj:
        acc3 = (acc3
                + jnp.dot(x, wsc_ref[...], preferred_element_type=jnp.float32)
                + bsc_ref[...])
    else:
        acc3 = acc3 + x.astype(jnp.float32)
    o_ref[0] = jnp.maximum(acc3, 0.0).astype(o_ref.dtype)


# ------------------------------ plain-JAX glue ------------------------------ #

def _bn_fold(bn):
    gamma, beta, mean, var = bn
    scale = gamma / jnp.sqrt(var + _BN_EPS)
    shift = beta - mean * scale
    return scale, shift


def _w1x1(w):  # (Cout, Cin, 1, 1) -> (Cin, Cout)
    return jnp.transpose(w[:, :, 0, 0], (1, 0))


def bottleneck_forward(x_nchw, raw, stride, out_dtype=jnp.bfloat16):
    """Pallas implementation of Bottleneck.forward (inference-mode BN)."""
    x = jnp.transpose(x_nchw, (0, 2, 3, 1))            # NCHW -> NHWC
    N, H, W, Cin = x.shape
    planes = raw['w1'].shape[0]
    Cout = 4 * planes
    HW = H * W

    # Fold BN scale into the weights in f32, then cast operands to bf16.
    s1, b1 = _bn_fold(raw['bn1'])
    s2, b2 = _bn_fold(raw['bn2'])
    s3, b3 = _bn_fold(raw['bn3'])

    w1 = (_w1x1(raw['w1']) * s1[None, :]).astype(jnp.bfloat16)        # (Cin, planes)
    w2 = jnp.transpose(raw['w2'], (2, 3, 1, 0)).reshape(9, planes, planes)
    w2 = (w2 * s2[None, None, :]).astype(jnp.bfloat16)                # (9, in, out)
    w3 = (_w1x1(raw['w3']) * s3[None, :]).astype(jnp.bfloat16)        # (planes, Cout)

    b1 = b1.reshape(1, planes).astype(jnp.float32)
    b2 = b2.reshape(1, planes).astype(jnp.float32)
    b3 = b3.reshape(1, Cout).astype(jnp.float32)

    has_proj = 'w_sc' in raw
    x2d = x.reshape(N, HW, Cin).astype(jnp.bfloat16)

    args = [x2d, w1, b1, w2, b2, w3, b3]
    in_specs = [
        pl.BlockSpec((1, HW, Cin), lambda i: (i, 0, 0)),      # per-image activations
        pl.BlockSpec((Cin, planes), lambda i: (0, 0)),        # w1 (resident)
        pl.BlockSpec((1, planes), lambda i: (0, 0)),          # b1
        pl.BlockSpec((9, planes, planes), lambda i: (0, 0, 0)),  # w2 taps (resident)
        pl.BlockSpec((1, planes), lambda i: (0, 0)),          # b2
        pl.BlockSpec((planes, Cout), lambda i: (0, 0)),       # w3 (resident)
        pl.BlockSpec((1, Cout), lambda i: (0, 0)),            # b3
    ]
    if has_proj:
        ssc, bsc = _bn_fold(raw['bn_sc'])
        wsc = (_w1x1(raw['w_sc']) * ssc[None, :]).astype(jnp.bfloat16)
        bsc = bsc.reshape(1, Cout).astype(jnp.float32)
        args += [wsc, bsc]
        in_specs += [pl.BlockSpec((Cin, Cout), lambda i: (0, 0)),
                     pl.BlockSpec((1, Cout), lambda i: (0, 0))]
    else:
        assert stride == 1 and Cin == Cout, \
            "identity shortcut requires stride==1 and Cin == expansion*planes"

    out_isz = jnp.dtype(out_dtype).itemsize
    proj_k = Cin if has_proj else 0

    # Rough per-step VMEM footprint (double-buffered x/out blocks, resident
    # weights, in-kernel temporaries) -- compile budget hint only.
    wt_bytes = (Cin * planes + 9 * planes * planes + planes * Cout
                + proj_k * Cout) * 2
    act_bytes = HW * (2 * Cin * 2 + 2 * Cout * out_isz
                      + 8 * planes * 4 + Cout * 4)
    vmem_limit = int(min(max(2 * (wt_bytes + act_bytes) + (8 << 20), 32 << 20),
                         48 << 20))

    flops = 2 * N * HW * (Cin * planes + 9 * planes * planes
                          + planes * Cout + proj_k * Cout)
    bytes_accessed = (N * HW * (Cin * 2 + Cout * out_isz) + wt_bytes
                      + (2 * planes + 2 * Cout) * 4)

    kernel = functools.partial(_bottleneck_kernel, H=H, W=W, has_proj=has_proj)

    out = pl.pallas_call(
        kernel,
        out_shape=jax.ShapeDtypeStruct((N, HW, Cout), out_dtype),
        grid=(N,),
        in_specs=in_specs,
        out_specs=pl.BlockSpec((1, HW, Cout), lambda i: (i, 0, 0)),
        compiler_params=pltpu.CompilerParams(
            dimension_semantics=("parallel",),
            vmem_limit_bytes=vmem_limit),
        cost_estimate=pl.CostEstimate(flops=int(flops), transcendentals=0,
                                      bytes_accessed=int(bytes_accessed)),
    )(*args)

    out = out.reshape(N, H, W, Cout)
    if stride != 1:
        # TODO(synk): lower true strided taps in-kernel instead of subsampling
        # the (exact) stride-1 result here.
        out = out[:, ::stride, ::stride, :]
    return jnp.transpose(out, (0, 3, 1, 2))                # NHWC -> NCHW


# ------------------------- deterministic parameters ------------------------ #

def init_raw_params(key, in_planes, planes, stride):
    expansion = 4
    keys = jax.random.split(key, 8)

    def conv_w(k, cout, cin, ksize):
        fan_in = cin * ksize * ksize
        return jax.random.normal(k, (cout, cin, ksize, ksize), jnp.float32) * np.sqrt(2.0 / fan_in)

    def bn_p(k, c):
        k1, k2, k3, k4 = jax.random.split(k, 4)
        gamma = 1.0 + 0.1 * jax.random.normal(k1, (c,), jnp.float32)
        beta = 0.1 * jax.random.normal(k2, (c,), jnp.float32)
        mean = 0.1 * jax.random.normal(k3, (c,), jnp.float32)
        var = 1.0 + 0.1 * jax.random.uniform(k4, (c,), jnp.float32)
        return (gamma, beta, mean, var)

    raw = {
        'w1': conv_w(keys[0], planes, in_planes, 1), 'bn1': bn_p(keys[1], planes),
        'w2': conv_w(keys[2], planes, planes, 3),    'bn2': bn_p(keys[3], planes),
        'w3': conv_w(keys[4], expansion * planes, planes, 1),
        'bn3': bn_p(keys[5], expansion * planes),
    }
    if stride != 1 or in_planes != expansion * planes:
        raw['w_sc'] = conv_w(keys[6], expansion * planes, in_planes, 1)
        raw['bn_sc'] = bn_p(keys[7], expansion * planes)
    return raw


# --------------------------- pure-JAX reference ---------------------------- #

def ref_forward(x_nchw, raw, stride):
    x = jnp.transpose(x_nchw, (0, 2, 3, 1))

    def conv(inp, w, s, pad):
        w_hwio = jnp.transpose(w, (2, 3, 1, 0))
        return jax.lax.conv_general_dilated(
            inp, w_hwio, (s, s), pad,
            dimension_numbers=('NHWC', 'HWIO', 'NHWC'),
            precision=jax.lax.Precision.HIGHEST)

    def bn(inp, p):
        gamma, beta, mean, var = p
        return (inp - mean) / jnp.sqrt(var + _BN_EPS) * gamma + beta

    out = jax.nn.relu(bn(conv(x, raw['w1'], 1, 'VALID'), raw['bn1']))
    out = jax.nn.relu(bn(conv(out, raw['w2'], stride, [(1, 1), (1, 1)]), raw['bn2']))
    out = bn(conv(out, raw['w3'], 1, 'VALID'), raw['bn3'])
    sc = x
    if 'w_sc' in raw:
        sc = bn(conv(x, raw['w_sc'], stride, 'VALID'), raw['bn_sc'])
    return jnp.transpose(jax.nn.relu(out + sc), (0, 3, 1, 2))


# ----------------------------------- main ----------------------------------- #

if __name__ == "__main__":
    key = jax.random.PRNGKey(0)
    k_x, k_p = jax.random.split(key)

    N, in_planes, H, W = 2, 4, 16, 16
    planes, stride = 4, 1          # projection shortcut active (in_planes != 4*planes)

    x = jax.random.normal(k_x, (N, in_planes, H, W), jnp.float32)
    raw = init_raw_params(k_p, in_planes, planes, stride)

    fwd = jax.jit(bottleneck_forward, static_argnums=(2,))
    out = fwd(x, raw, stride)
    out = jax.block_until_ready(out)

    expected_hw = (H - 1) // stride + 1
    assert out.shape == (N, 4 * planes, expected_hw, expected_hw), out.shape

    ref = ref_forward(x, raw, stride)
    max_err = float(jnp.max(jnp.abs(out.astype(jnp.float32) - ref)))
    ref_scale = float(jnp.max(jnp.abs(ref))) + 1e-6
    # bf16 MXU operands / bf16 output vs an f32 HIGHEST-precision reference.
    assert max_err / ref_scale < 3e-2, f"mismatch vs reference: {max_err} (ref max {ref_scale})"

    print("KERNEL_OK")
</pallas_src>

<mosaic_0001>
module attributes {stable_mosaic.version = 11 : i64} {
  func.func @_bottleneck_kernel(%arg0: i32, %arg1: memref<1x256x4xbf16, #tpu.memory_space<vmem>>, %arg2: memref<4x4xbf16, #tpu.memory_space<vmem>>, %arg3: memref<1x4xf32, #tpu.memory_space<vmem>>, %arg4: memref<9x4x4xbf16, #tpu.memory_space<vmem>>, %arg5: memref<1x4xf32, #tpu.memory_space<vmem>>, %arg6: memref<4x16xbf16, #tpu.memory_space<vmem>>, %arg7: memref<1x16xf32, #tpu.memory_space<vmem>>, %arg8: memref<4x16xbf16, #tpu.memory_space<vmem>>, %arg9: memref<1x16xf32, #tpu.memory_space<vmem>>, %arg10: memref<1x256x16xbf16, #tpu.memory_space<vmem>>) attributes {dimension_semantics = [#tpu.dimension_semantics<parallel>], iteration_bounds = array<i64: 2>, scalar_prefetch = 0 : i64, scratch_operands = 0 : i64, tpu.core_type = #tpu.core_type<tc>, window_params = [{transform_indices = @transform_0, window_bounds = array<i64: 1, 256, 4>}, {pipeline_mode = #tpu.pipeline_mode<synchronous>, transform_indices = @transform_1, window_bounds = array<i64: 4, 4>}, {pipeline_mode = #tpu.pipeline_mode<synchronous>, transform_indices = @transform_2, window_bounds = array<i64: 1, 4>}, {pipeline_mode = #tpu.pipeline_mode<synchronous>, transform_indices = @transform_3, window_bounds = array<i64: 9, 4, 4>}, {pipeline_mode = #tpu.pipeline_mode<synchronous>, transform_indices = @transform_4, window_bounds = array<i64: 1, 4>}, {pipeline_mode = #tpu.pipeline_mode<synchronous>, transform_indices = @transform_5, window_bounds = array<i64: 4, 16>}, {pipeline_mode = #tpu.pipeline_mode<synchronous>, transform_indices = @transform_6, window_bounds = array<i64: 1, 16>}, {pipeline_mode = #tpu.pipeline_mode<synchronous>, transform_indices = @transform_7, window_bounds = array<i64: 4, 16>}, {pipeline_mode = #tpu.pipeline_mode<synchronous>, transform_indices = @transform_8, window_bounds = array<i64: 1, 16>}, {transform_indices = @transform_9, window_bounds = array<i64: 1, 256, 16>}]} {
    %c0 = arith.constant 0 : index
    %c0_0 = arith.constant 0 : index
    %c0_1 = arith.constant 0 : index
    %0 = vector.load %arg1[%c0, %c0_0, %c0_1] : memref<1x256x4xbf16, #tpu.memory_space<vmem>>, vector<1x256x4xbf16>
    %1 = vector.shape_cast %0 : vector<1x256x4xbf16> to vector<256x4xbf16>
    %c0_2 = arith.constant 0 : index
    %c0_3 = arith.constant 0 : index
    %2 = vector.load %arg2[%c0_2, %c0_3] : memref<4x4xbf16, #tpu.memory_space<vmem>>, vector<4x4xbf16>
    %cst = arith.constant dense<0.000000e+00> : vector<256x4xf32>
    %3 = tpu.matmul %1, %2, %cst {dimension_numbers = #tpu.dot_dimension_numbers<[1], [0], [0], [1], [0, 0, 1, 1], [], []>} : vector<256x4xbf16>, vector<4x4xbf16>, vector<256x4xf32> -> vector<256x4xf32>
    %c0_4 = arith.constant 0 : index
    %c0_5 = arith.constant 0 : index
    %4 = vector.load %arg3[%c0_4, %c0_5] : memref<1x4xf32, #tpu.memory_space<vmem>>, vector<1x4xf32>
    %5 = vector.broadcast %4 : vector<1x4xf32> to vector<256x4xf32>
    %6 = arith.addf %3, %5 : vector<256x4xf32>
    %cst_6 = arith.constant 0.000000e+00 : f32
    %7 = vector.broadcast %cst_6 : f32 to vector<256x4xf32>
    %8 = arith.maximumf %6, %7 : vector<256x4xf32>
    %cst_7 = arith.constant 0.000000e+00 : f32
    %9 = vector.broadcast %cst_7 : f32 to vector<32x4xf32>
    %10 = tpu.concatenate %9, %8, %9 in 0 : vector<32x4xf32>, vector<256x4xf32>, vector<32x4xf32> -> vector<320x4xf32>
    %11 = tpu.iota {dimensions = array<i32: 0>} : vector<256x4xi32>
    %c16_i32 = arith.constant 16 : i32
    %c0_i32 = arith.constant 0 : i32
    %12 = arith.cmpi eq, %c16_i32, %c0_i32 : i32
    %c1_i32 = arith.constant 1 : i32
    %13 = arith.select %12, %c1_i32, %c16_i32 : i32
    %14 = vector.broadcast %13 : i32 to vector<256x4xi32>
    %15 = arith.remsi %11, %14 : vector<256x4xi32>
    %c0_i32_8 = arith.constant 0 : i32
    %16 = vector.broadcast %c0_i32_8 : i32 to vector<256x4xi32>
    %17 = arith.cmpi ne, %15, %16 : vector<256x4xi32>
    %c0_i32_9 = arith.constant 0 : i32
    %18 = vector.broadcast %c0_i32_9 : i32 to vector<256x4xi32>
    %19 = arith.cmpi slt, %15, %18 : vector<256x4xi32>
    %c0_i32_10 = arith.constant 0 : i32
    %20 = arith.cmpi slt, %13, %c0_i32_10 : i32
    %21 = vector.broadcast %20 : i1 to vector<256x4xi1>
    %22 = vector.broadcast %21 : vector<256x4xi1> to vector<256x4xi1>
    %23 = arith.xori %19, %22 : vector<256x4xi1>
    %24 = arith.andi %23, %17 : vector<256x4xi1>
    %25 = vector.broadcast %13 : i32 to vector<256x4xi32>
    %26 = arith.addi %15, %25 : vector<256x4xi32>
    %27 = arith.select %24, %26, %15 : vector<256x4xi1>, vector<256x4xi32>
    %c0_i32_11 = arith.constant 0 : i32
    %28 = vector.broadcast %c0_i32_11 : i32 to vector<256x4xi32>
    %29 = arith.cmpi ne, %27, %28 : vector<256x4xi32>
    %c15_i32 = arith.constant 15 : i32
    %30 = vector.broadcast %c15_i32 : i32 to vector<256x4xi32>
    %31 = arith.cmpi ne, %27, %30 : vector<256x4xi32>
    %cst_12 = arith.constant 0.000000e+00 : f32
    %32 = vector.broadcast %cst_12 : f32 to vector<256x4xf32>
    %33 = vector.extract_strided_slice %10 {offsets = [15, 0], sizes = [256, 4], strides = [1, 1]} : vector<320x4xf32> to vector<256x4xf32>
    %cst_13 = arith.constant 0.000000e+00 : f32
    %34 = vector.broadcast %cst_13 : f32 to vector<256x4xf32>
    %35 = arith.select %29, %33, %34 : vector<256x4xi1>, vector<256x4xf32>
    %36 = arith.truncf %35 : vector<256x4xf32> to vector<256x4xbf16>
    %c0_14 = arith.constant 0 : index
    %c0_15 = arith.constant 0 : index
    %c0_16 = arith.constant 0 : index
    %37 = vector.load %arg4[%c0_14, %c0_15, %c0_16] : memref<9x4x4xbf16, #tpu.memory_space<vmem>>, vector<1x4x4xbf16>
    %38 = vector.shape_cast %37 : vector<1x4x4xbf16> to vector<4x4xbf16>
    %cst_17 = arith.constant dense<0.000000e+00> : vector<256x4xf32>
    %39 = tpu.matmul %36, %38, %cst_17 {dimension_numbers = #tpu.dot_dimension_numbers<[1], [0], [0], [1], [0, 0, 1, 1], [], []>} : vector<256x4xbf16>, vector<4x4xbf16>, vector<256x4xf32> -> vector<256x4xf32>
    %40 = arith.addf %32, %39 : vector<256x4xf32>
    %41 = vector.extract_strided_slice %10 {offsets = [16, 0], sizes = [256, 4], strides = [1, 1]} : vector<320x4xf32> to vector<256x4xf32>
    %42 = arith.truncf %41 : vector<256x4xf32> to vector<256x4xbf16>
    %c1 = arith.constant 1 : index
    %c0_18 = arith.constant 0 : index
    %c0_19 = arith.constant 0 : index
    %43 = vector.load %arg4[%c1, %c0_18, %c0_19] : memref<9x4x4xbf16, #tpu.memory_space<vmem>>, vector<1x4x4xbf16>
    %44 = vector.shape_cast %43 : vector<1x4x4xbf16> to vector<4x4xbf16>
    %cst_20 = arith.constant dense<0.000000e+00> : vector<256x4xf32>
    %45 = tpu.matmul %42, %44, %cst_20 {dimension_numbers = #tpu.dot_dimension_numbers<[1], [0], [0], [1], [0, 0, 1, 1], [], []>} : vector<256x4xbf16>, vector<4x4xbf16>, vector<256x4xf32> -> vector<256x4xf32>
    %46 = arith.addf %40, %45 : vector<256x4xf32>
    %47 = vector.extract_strided_slice %10 {offsets = [17, 0], sizes = [256, 4], strides = [1, 1]} : vector<320x4xf32> to vector<256x4xf32>
    %cst_21 = arith.constant 0.000000e+00 : f32
    %48 = vector.broadcast %cst_21 : f32 to vector<256x4xf32>
    %49 = arith.select %31, %47, %48 : vector<256x4xi1>, vector<256x4xf32>
    %50 = arith.truncf %49 : vector<256x4xf32> to vector<256x4xbf16>
    %c2 = arith.constant 2 : index
    %c0_22 = arith.constant 0 : index
    %c0_23 = arith.constant 0 : index
    %51 = vector.load %arg4[%c2, %c0_22, %c0_23] : memref<9x4x4xbf16, #tpu.memory_space<vmem>>, vector<1x4x4xbf16>
    %52 = vector.shape_cast %51 : vector<1x4x4xbf16> to vector<4x4xbf16>
    %cst_24 = arith.constant dense<0.000000e+00> : vector<256x4xf32>
    %53 = tpu.matmul %50, %52, %cst_24 {dimension_numbers = #tpu.dot_dimension_numbers<[1], [0], [0], [1], [0, 0, 1, 1], [], []>} : vector<256x4xbf16>, vector<4x4xbf16>, vector<256x4xf32> -> vector<256x4xf32>
    %54 = arith.addf %46, %53 : vector<256x4xf32>
    %55 = vector.extract_strided_slice %10 {offsets = [31, 0], sizes = [256, 4], strides = [1, 1]} : vector<320x4xf32> to vector<256x4xf32>
    %cst_25 = arith.constant 0.000000e+00 : f32
    %56 = vector.broadcast %cst_25 : f32 to vector<256x4xf32>
    %57 = arith.select %29, %55, %56 : vector<256x4xi1>, vector<256x4xf32>
    %58 = arith.truncf %57 : vector<256x4xf32> to vector<256x4xbf16>
    %c3 = arith.constant 3 : index
    %c0_26 = arith.constant 0 : index
    %c0_27 = arith.constant 0 : index
    %59 = vector.load %arg4[%c3, %c0_26, %c0_27] : memref<9x4x4xbf16, #tpu.memory_space<vmem>>, vector<1x4x4xbf16>
    %60 = vector.shape_cast %59 : vector<1x4x4xbf16> to vector<4x4xbf16>
    %cst_28 = arith.constant dense<0.000000e+00> : vector<256x4xf32>
    %61 = tpu.matmul %58, %60, %cst_28 {dimension_numbers = #tpu.dot_dimension_numbers<[1], [0], [0], [1], [0, 0, 1, 1], [], []>} : vector<256x4xbf16>, vector<4x4xbf16>, vector<256x4xf32> -> vector<256x4xf32>
    %62 = arith.addf %54, %61 : vector<256x4xf32>
    %63 = vector.extract_strided_slice %10 {offsets = [32, 0], sizes = [256, 4], strides = [1, 1]} : vector<320x4xf32> to vector<256x4xf32>
    %64 = arith.truncf %63 : vector<256x4xf32> to vector<256x4xbf16>
    %c4 = arith.constant 4 : index
    %c0_29 = arith.constant 0 : index
    %c0_30 = arith.constant 0 : index
    %65 = vector.load %arg4[%c4, %c0_29, %c0_30] : memref<9x4x4xbf16, #tpu.memory_space<vmem>>, vector<1x4x4xbf16>
    %66 = vector.shape_cast %65 : vector<1x4x4xbf16> to vector<4x4xbf16>
    %cst_31 = arith.constant dense<0.000000e+00> : vector<256x4xf32>
    %67 = tpu.matmul %64, %66, %cst_31 {dimension_numbers = #tpu.dot_dimension_numbers<[1], [0], [0], [1], [0, 0, 1, 1], [], []>} : vector<256x4xbf16>, vector<4x4xbf16>, vector<256x4xf32> -> vector<256x4xf32>
    %68 = arith.addf %62, %67 : vector<256x4xf32>
    %69 = vector.extract_strided_slice %10 {offsets = [33, 0], sizes = [256, 4], strides = [1, 1]} : vector<320x4xf32> to vector<256x4xf32>
    %cst_32 = arith.constant 0.000000e+00 : f32
    %70 = vector.broadcast %cst_32 : f32 to vector<256x4xf32>
    %71 = arith.select %31, %69, %70 : vector<256x4xi1>, vector<256x4xf32>
    %72 = arith.truncf %71 : vector<256x4xf32> to vector<256x4xbf16>
    %c5 = arith.constant 5 : index
    %c0_33 = arith.constant 0 : index
    %c0_34 = arith.constant 0 : index
    %73 = vector.load %arg4[%c5, %c0_33, %c0_34] : memref<9x4x4xbf16, #tpu.memory_space<vmem>>, vector<1x4x4xbf16>
    %74 = vector.shape_cast %73 : vector<1x4x4xbf16> to vector<4x4xbf16>
    %cst_35 = arith.constant dense<0.000000e+00> : vector<256x4xf32>
    %75 = tpu.matmul %72, %74, %cst_35 {dimension_numbers = #tpu.dot_dimension_numbers<[1], [0], [0], [1], [0, 0, 1, 1], [], []>} : vector<256x4xbf16>, vector<4x4xbf16>, vector<256x4xf32> -> vector<256x4xf32>
    %76 = arith.addf %68, %75 : vector<256x4xf32>
    %77 = vector.extract_strided_slice %10 {offsets = [47, 0], sizes = [256, 4], strides = [1, 1]} : vector<320x4xf32> to vector<256x4xf32>
    %cst_36 = arith.constant 0.000000e+00 : f32
    %78 = vector.broadcast %cst_36 : f32 to vector<256x4xf32>
    %79 = arith.select %29, %77, %78 : vector<256x4xi1>, vector<256x4xf32>
    %80 = arith.truncf %79 : vector<256x4xf32> to vector<256x4xbf16>
    %c6 = arith.constant 6 : index
    %c0_37 = arith.constant 0 : index
    %c0_38 = arith.constant 0 : index
    %81 = vector.load %arg4[%c6, %c0_37, %c0_38] : memref<9x4x4xbf16, #tpu.memory_space<vmem>>, vector<1x4x4xbf16>
    %82 = vector.shape_cast %81 : vector<1x4x4xbf16> to vector<4x4xbf16>
    %cst_39 = arith.constant dense<0.000000e+00> : vector<256x4xf32>
    %83 = tpu.matmul %80, %82, %cst_39 {dimension_numbers = #tpu.dot_dimension_numbers<[1], [0], [0], [1], [0, 0, 1, 1], [], []>} : vector<256x4xbf16>, vector<4x4xbf16>, vector<256x4xf32> -> vector<256x4xf32>
    %84 = arith.addf %76, %83 : vector<256x4xf32>
    %85 = vector.extract_strided_slice %10 {offsets = [48, 0], sizes = [256, 4], strides = [1, 1]} : vector<320x4xf32> to vector<256x4xf32>
    %86 = arith.truncf %85 : vector<256x4xf32> to vector<256x4xbf16>
    %c7 = arith.constant 7 : index
    %c0_40 = arith.constant 0 : index
    %c0_41 = arith.constant 0 : index
    %87 = vector.load %arg4[%c7, %c0_40, %c0_41] : memref<9x4x4xbf16, #tpu.memory_space<vmem>>, vector<1x4x4xbf16>
    %88 = vector.shape_cast %87 : vector<1x4x4xbf16> to vector<4x4xbf16>
    %cst_42 = arith.constant dense<0.000000e+00> : vector<256x4xf32>
    %89 = tpu.matmul %86, %88, %cst_42 {dimension_numbers = #tpu.dot_dimension_numbers<[1], [0], [0], [1], [0, 0, 1, 1], [], []>} : vector<256x4xbf16>, vector<4x4xbf16>, vector<256x4xf32> -> vector<256x4xf32>
    %90 = arith.addf %84, %89 : vector<256x4xf32>
    %91 = vector.extract_strided_slice %10 {offsets = [49, 0], sizes = [256, 4], strides = [1, 1]} : vector<320x4xf32> to vector<256x4xf32>
    %cst_43 = arith.constant 0.000000e+00 : f32
    %92 = vector.broadcast %cst_43 : f32 to vector<256x4xf32>
    %93 = arith.select %31, %91, %92 : vector<256x4xi1>, vector<256x4xf32>
    %94 = arith.truncf %93 : vector<256x4xf32> to vector<256x4xbf16>
    %c8 = arith.constant 8 : index
    %c0_44 = arith.constant 0 : index
    %c0_45 = arith.constant 0 : index
    %95 = vector.load %arg4[%c8, %c0_44, %c0_45] : memref<9x4x4xbf16, #tpu.memory_space<vmem>>, vector<1x4x4xbf16>
    %96 = vector.shape_cast %95 : vector<1x4x4xbf16> to vector<4x4xbf16>
    %cst_46 = arith.constant dense<0.000000e+00> : vector<256x4xf32>
    %97 = tpu.matmul %94, %96, %cst_46 {dimension_numbers = #tpu.dot_dimension_numbers<[1], [0], [0], [1], [0, 0, 1, 1], [], []>} : vector<256x4xbf16>, vector<4x4xbf16>, vector<256x4xf32> -> vector<256x4xf32>
    %98 = arith.addf %90, %97 : vector<256x4xf32>
    %c0_47 = arith.constant 0 : index
    %c0_48 = arith.constant 0 : index
    %99 = vector.load %arg5[%c0_47, %c0_48] : memref<1x4xf32, #tpu.memory_space<vmem>>, vector<1x4xf32>
    %100 = vector.broadcast %99 : vector<1x4xf32> to vector<256x4xf32>
    %101 = arith.addf %98, %100 : vector<256x4xf32>
    %cst_49 = arith.constant 0.000000e+00 : f32
    %102 = vector.broadcast %cst_49 : f32 to vector<256x4xf32>
    %103 = arith.maximumf %101, %102 : vector<256x4xf32>
    %104 = arith.truncf %103 : vector<256x4xf32> to vector<256x4xbf16>
    %c0_50 = arith.constant 0 : index
    %c0_51 = arith.constant 0 : index
    %105 = vector.load %arg6[%c0_50, %c0_51] : memref<4x16xbf16, #tpu.memory_space<vmem>>, vector<4x16xbf16>
    %cst_52 = arith.constant dense<0.000000e+00> : vector<256x16xf32>
    %106 = tpu.matmul %104, %105, %cst_52 {dimension_numbers = #tpu.dot_dimension_numbers<[1], [0], [0], [1], [0, 0, 1, 1], [], []>} : vector<256x4xbf16>, vector<4x16xbf16>, vector<256x16xf32> -> vector<256x16xf32>
    %c0_53 = arith.constant 0 : index
    %c0_54 = arith.constant 0 : index
    %107 = vector.load %arg7[%c0_53, %c0_54] : memref<1x16xf32, #tpu.memory_space<vmem>>, vector<1x16xf32>
    %108 = vector.broadcast %107 : vector<1x16xf32> to vector<256x16xf32>
    %109 = arith.addf %106, %108 : vector<256x16xf32>
    %c0_55 = arith.constant 0 : index
    %c0_56 = arith.constant 0 : index
    %110 = vector.load %arg8[%c0_55, %c0_56] : memref<4x16xbf16, #tpu.memory_space<vmem>>, vector<4x16xbf16>
    %cst_57 = arith.constant dense<0.000000e+00> : vector<256x16xf32>
    %111 = tpu.matmul %1, %110, %cst_57 {dimension_numbers = #tpu.dot_dimension_numbers<[1], [0], [0], [1], [0, 0, 1, 1], [], []>} : vector<256x4xbf16>, vector<4x16xbf16>, vector<256x16xf32> -> vector<256x16xf32>
    %112 = arith.addf %109, %111 : vector<256x16xf32>
    %c0_58 = arith.constant 0 : index
    %c0_59 = arith.constant 0 : index
    %113 = vector.load %arg9[%c0_58, %c0_59] : memref<1x16xf32, #tpu.memory_space<vmem>>, vector<1x16xf32>
    %114 = vector.broadcast %113 : vector<1x16xf32> to vector<256x16xf32>
    %115 = arith.addf %112, %114 : vector<256x16xf32>
    %cst_60 = arith.constant 0.000000e+00 : f32
    %116 = vector.broadcast %cst_60 : f32 to vector<256x16xf32>
    %117 = arith.maximumf %115, %116 : vector<256x16xf32>
    %118 = arith.truncf %117 : vector<256x16xf32> to vector<256x16xbf16>
    %c0_61 = arith.constant 0 : index
    %c0_62 = arith.constant 0 : index
    %c0_63 = arith.constant 0 : index
    %119 = vector.load %arg10[%c0_61, %c0_62, %c0_63] : memref<1x256x16xbf16, #tpu.memory_space<vmem>>, vector<1x256x16xbf16>
    %120 = vector.shape_cast %119 : vector<1x256x16xbf16> to vector<256x16xbf16>
    %121 = vector.shape_cast %118 : vector<256x16xbf16> to vector<1x256x16xbf16>
    tpu.vector_store %arg10[%c0_61, %c0_62, %c0_63], %121 {strides = array<i32>} : memref<1x256x16xbf16, #tpu.memory_space<vmem>>, vector<1x256x16xbf16>,
    return
  }
  func.func @transform_0(%arg0: i32) -> (i32, i32, i32) {
    %c0_i32 = arith.constant 0 : i32
    %c0_i32_0 = arith.constant 0 : i32
    %c0_i32_1 = arith.constant 0 : i32
    return %arg0, %c0_i32, %c0_i32_0 : i32, i32, i32
  }
  func.func @transform_1(%arg0: i32) -> (i32, i32) {
    %c0_i32 = arith.constant 0 : i32
    %c0_i32_0 = arith.constant 0 : i32
    %c0_i32_1 = arith.constant 0 : i32
    return %c0_i32, %c0_i32_0 : i32, i32
  }
  func.func @transform_2(%arg0: i32) -> (i32, i32) {
    %c0_i32 = arith.constant 0 : i32
    %c0_i32_0 = arith.constant 0 : i32
    %c0_i32_1 = arith.constant 0 : i32
    return %c0_i32, %c0_i32_0 : i32, i32
  }
  func.func @transform_3(%arg0: i32) -> (i32, i32, i32) {
    %c0_i32 = arith.constant 0 : i32
    %c0_i32_0 = arith.constant 0 : i32
    %c0_i32_1 = arith.constant 0 : i32
    %c0_i32_2 = arith.constant 0 : i32
    return %c0_i32, %c0_i32_0, %c0_i32_1 : i32, i32, i32
  }
  func.func @transform_4(%arg0: i32) -> (i32, i32) {
    %c0_i32 = arith.constant 0 : i32
    %c0_i32_0 = arith.constant 0 : i32
    %c0_i32_1 = arith.constant 0 : i32
    return %c0_i32, %c0_i32_0 : i32, i32
  }
  func.func @transform_5(%arg0: i32) -> (i32, i32) {
    %c0_i32 = arith.constant 0 : i32
    %c0_i32_0 = arith.constant 0 : i32
    %c0_i32_1 = arith.constant 0 : i32
    return %c0_i32, %c0_i32_0 : i32, i32
  }
  func.func @transform_6(%arg0: i32) -> (i32, i32) {
    %c0_i32 = arith.constant 0 : i32
    %c0_i32_0 = arith.constant 0 : i32
    %c0_i32_1 = arith.constant 0 : i32
    return %c0_i32, %c0_i32_0 : i32, i32
  }
  func.func @transform_7(%arg0: i32) -> (i32, i32) {
    %c0_i32 = arith.constant 0 : i32
    %c0_i32_0 = arith.constant 0 : i32
    %c0_i32_1 = arith.constant 0 : i32
    return %c0_i32, %c0_i32_0 : i32, i32
  }
  func.func @transform_8(%arg0: i32) -> (i32, i32) {
    %c0_i32 = arith.constant 0 : i32
    %c0_i32_0 = arith.constant 0 : i32
    %c0_i32_1 = arith.constant 0 : i32
    return %c0_i32, %c0_i32_0 : i32, i32
  }
  func.func @transform_9(%arg0: i32) -> (i32, i32, i32) {
    %c0_i32 = arith.constant 0 : i32
    %c0_i32_0 = arith.constant 0 : i32
    %c0_i32_1 = arith.constant 0 : i32
    return %arg0, %c0_i32, %c0_i32_0 : i32, i32, i32
  }
}

</mosaic_0001>

<llo_original>
// kernel: bottleneck_forward.1
$region0: #{bottleneck_forward.1}
  #allocation0 [shape = 'u32[]', space=smem, size = 0x4, offset = 0x4, fixed_abs, tag = 'smem constant byte address 0x4 - core index']
  #allocation1 [shape = 'u32[144,128]{1,0:T(1,128)}', space=vmem, size = 0x12000, scoped, tag = 'internal scratch']
  %s0 = inlined_call_operand.vmem [shape: bf16[2,256,4], index: 0, kind: input, shape index: {}]
  %s1 = inlined_call_operand.vmem [shape: bf16[4,4], index: 1, kind: input, shape index: {}]
  %s2 = inlined_call_operand.vmem [shape: f32[1,4], index: 2, kind: input, shape index: {}]
  %s3 = inlined_call_operand.vmem [shape: bf16[9,4,4], index: 3, kind: input, shape index: {}]
  %s4 = inlined_call_operand.vmem [shape: f32[1,4], index: 4, kind: input, shape index: {}]
  %s5 = inlined_call_operand.vmem [shape: bf16[4,16], index: 5, kind: input, shape index: {}]
  %s6 = inlined_call_operand.vmem [shape: f32[1,16], index: 6, kind: input, shape index: {}]
  %s7 = inlined_call_operand.vmem [shape: bf16[4,16], index: 7, kind: input, shape index: {}]
  %s8 = inlined_call_operand.vmem [shape: f32[1,16], index: 8, kind: input, shape index: {}]
  %s9 = inlined_call_operand.vmem [shape: bf16[2,256,16], index: 9, kind: output, shape index: {}]
  %s10 = sld [smem:[#allocation0]]
  $region69: #{bottleneck_forward.1} parent=0
    _
  %s12 = ssub.s32 1, %s10
  %s13 = scalar_select 0, %s12, %s10
  loop: start=0, step=1, limit=4
  $region2: #{bottleneck_forward.1} parent=0 // loop_pre_header
    _
  $region3: #{bottleneck_forward.1} parent=0 // loop_header
    %s15 = sphi 0, %s19
    %p16 = scmp.ge.s32.totalorder %s15, 4
    %s25 = sphi 0, %s27
    %s28 = sphi 0, %s25
    %s29 = sphi 0, %s28
    %s45 = sphi 0, %s29
    %s49 = sphi 0, %s49
    %s51 = sphi 0, %s49
    %s52 = sphi 0, %s51
    %s66 = sphi 0, %s52
    %s70 = sphi 0, %s70
    %s72 = sphi 0, %s70
    %s73 = sphi 0, %s72
    %s87 = sphi 0, %s73
    %s91 = sphi 0, %s91
    %s93 = sphi 0, %s91
    %s94 = sphi 0, %s93
    %s108 = sphi 0, %s94
    %s112 = sphi 0, %s112
    %s114 = sphi 0, %s112
    %s115 = sphi 0, %s114
    %s129 = sphi 0, %s115
    %s133 = sphi 0, %s133
    %s135 = sphi 0, %s133
    %s136 = sphi 0, %s135
    %s150 = sphi 0, %s136
    %s154 = sphi 0, %s154
    %s156 = sphi 0, %s154
    %s157 = sphi 0, %s156
    %s171 = sphi 0, %s157
    %s175 = sphi 0, %s175
    %s177 = sphi 0, %s175
    %s178 = sphi 0, %s177
    %s192 = sphi 0, %s178
    %s196 = sphi 0, %s196
    %s198 = sphi 0, %s196
    %s199 = sphi 0, %s198
    %s213 = sphi 0, %s199
    %s219 = sphi 0, %s221
    %s222 = sphi 0, %s219
    %s223 = sphi 0, %s222
    %s239 = sphi 0, %s223
  $region4: #{bottleneck_forward.1} parent=0 // loop_header_branch
    %18 = sbr.rel (%p16) target = $region8
  $region5: #{bottleneck_forward.1} parent=0 // loop_body
    %s20 = ssub.s32 %s15, 1
    %s21 = ssub.s32 %s15, 2
    %s22 = sadd.s32 %s15, 1
    %s23 = ssub.s32 %s15, %s22
    %p24 = scmp.eq.s32.totalorder %s23, 0
    %s26 = sadd.s32 %s25, 1
    %s27 = scalar_select %p24, %s25, %s26
    %p30 = pneg %p24
    %p31 = scmp.eq.s32.totalorder %s15, 1
    %p32 = por %p30, %p31
    %p33 = scmp.ne.s32.totalorder %s25, %s28
    %p34 = scmp.eq.s32.totalorder %s15, 0
    %p35 = por %p33, %p34
    %p36 = scmp.ne.s32.totalorder %s25, %s28
    %p37 = scmp.eq.s32.totalorder %s20, 1
    %p38 = por %p36, %p37
    %p39 = scmp.ne.s32.totalorder %s28, %s29
    %p40 = scmp.eq.s32.totalorder %s20, 0
    %p41 = por %p39, %p40
    %p42 = scmp.ne.s32.totalorder %s28, %s29
    %p43 = scmp.eq.s32.totalorder %s21, 1
    %p44 = por %p42, %p43
    %p46 = scmp.ne.s32.totalorder %s29, %s45
    %p47 = scmp.eq.s32.totalorder %s21, 0
    %p48 = por %p46, %p47
    %s50 = sadd.s32 %s49, 1
    %p53 = scmp.eq.s32.totalorder %s15, 1
    %p54 = scmp.ne.s32.totalorder %s49, %s51
    %p55 = scmp.eq.s32.totalorder %s15, 0
    %p56 = por %p54, %p55
    %p57 = scmp.ne.s32.totalorder %s49, %s51
    %p58 = scmp.eq.s32.totalorder %s20, 1
    %p59 = por %p57, %p58
    %p60 = scmp.ne.s32.totalorder %s51, %s52
    %p61 = scmp.eq.s32.totalorder %s20, 0
    %p62 = por %p60, %p61
    %p63 = scmp.ne.s32.totalorder %s51, %s52
    %p64 = scmp.eq.s32.totalorder %s21, 1
    %p65 = por %p63, %p64
    %p67 = scmp.ne.s32.totalorder %s52, %s66
    %p68 = scmp.eq.s32.totalorder %s21, 0
    %p69 = por %p67, %p68
    %s71 = sadd.s32 %s70, 1
    %p74 = scmp.eq.s32.totalorder %s15, 1
    %p75 = scmp.ne.s32.totalorder %s70, %s72
    %p76 = scmp.eq.s32.totalorder %s15, 0
    %p77 = por %p75, %p76
    %p78 = scmp.ne.s32.totalorder %s70, %s72
    %p79 = scmp.eq.s32.totalorder %s20, 1
    %p80 = por %p78, %p79
    %p81 = scmp.ne.s32.totalorder %s72, %s73
    %p82 = scmp.eq.s32.totalorder %s20, 0
    %p83 = por %p81, %p82
    %p84 = scmp.ne.s32.totalorder %s72, %s73
    %p85 = scmp.eq.s32.totalorder %s21, 1
    %p86 = por %p84, %p85
    %p88 = scmp.ne.s32.totalorder %s73, %s87
    %p89 = scmp.eq.s32.totalorder %s21, 0
    %p90 = por %p88, %p89
    %s92 = sadd.s32 %s91, 1
    %p95 = scmp.eq.s32.totalorder %s15, 1
    %p96 = scmp.ne.s32.totalorder %s91, %s93
    %p97 = scmp.eq.s32.totalorder %s15, 0
    %p98 = por %p96, %p97
    %p99 = scmp.ne.s32.totalorder %s91, %s93
    %p100 = scmp.eq.s32.totalorder %s20, 1
    %p101 = por %p99, %p100
    %p102 = scmp.ne.s32.totalorder %s93, %s94
    %p103 = scmp.eq.s32.totalorder %s20, 0
    %p104 = por %p102, %p103
    %p105 = scmp.ne.s32.totalorder %s93, %s94
    %p106 = scmp.eq.s32.totalorder %s21, 1
    %p107 = por %p105, %p106
    %p109 = scmp.ne.s32.totalorder %s94, %s108
    %p110 = scmp.eq.s32.totalorder %s21, 0
    %p111 = por %p109, %p110
    %s113 = sadd.s32 %s112, 1
    %p116 = scmp.eq.s32.totalorder %s15, 1
    %p117 = scmp.ne.s32.totalorder %s112, %s114
    %p118 = scmp.eq.s32.totalorder %s15, 0
    %p119 = por %p117, %p118
    %p120 = scmp.ne.s32.totalorder %s112, %s114
    %p121 = scmp.eq.s32.totalorder %s20, 1
    %p122 = por %p120, %p121
    %p123 = scmp.ne.s32.totalorder %s114, %s115
    %p124 = scmp.eq.s32.totalorder %s20, 0
    %p125 = por %p123, %p124
    %p126 = scmp.ne.s32.totalorder %s114, %s115
    %p127 = scmp.eq.s32.totalorder %s21, 1
    %p128 = por %p126, %p127
    %p130 = scmp.ne.s32.totalorder %s115, %s129
    %p131 = scmp.eq.s32.totalorder %s21, 0
    %p132 = por %p130, %p131
    %s134 = sadd.s32 %s133, 1
    %p137 = scmp.eq.s32.totalorder %s15, 1
    %p138 = scmp.ne.s32.totalorder %s133, %s135
    %p139 = scmp.eq.s32.totalorder %s15, 0
    %p140 = por %p138, %p139
    %p141 = scmp.ne.s32.totalorder %s133, %s135
    %p142 = scmp.eq.s32.totalorder %s20, 1
    %p143 = por %p141, %p142
    %p144 = scmp.ne.s32.totalorder %s135, %s136
    %p145 = scmp.eq.s32.totalorder %s20, 0
    %p146 = por %p144, %p145
    %p147 = scmp.ne.s32.totalorder %s135, %s136
    %p148 = scmp.eq.s32.totalorder %s21, 1
    %p149 = por %p147, %p148
    %p151 = scmp.ne.s32.totalorder %s136, %s150
    %p152 = scmp.eq.s32.totalorder %s21, 0
    %p153 = por %p151, %p152
    %s155 = sadd.s32 %s154, 1
    %p158 = scmp.eq.s32.totalorder %s15, 1
    %p159 = scmp.ne.s32.totalorder %s154, %s156
    %p160 = scmp.eq.s32.totalorder %s15, 0
    %p161 = por %p159, %p160
    %p162 = scmp.ne.s32.totalorder %s154, %s156
    %p163 = scmp.eq.s32.totalorder %s20, 1
    %p164 = por %p162, %p163
    %p165 = scmp.ne.s32.totalorder %s156, %s157
    %p166 = scmp.eq.s32.totalorder %s20, 0
    %p167 = por %p165, %p166
    %p168 = scmp.ne.s32.totalorder %s156, %s157
    %p169 = scmp.eq.s32.totalorder %s21, 1
    %p170 = por %p168, %p169
    %p172 = scmp.ne.s32.totalorder %s157, %s171
    %p173 = scmp.eq.s32.totalorder %s21, 0
    %p174 = por %p172, %p173
    %s176 = sadd.s32 %s175, 1
    %p179 = scmp.eq.s32.totalorder %s15, 1
    %p180 = scmp.ne.s32.totalorder %s175, %s177
    %p181 = scmp.eq.s32.totalorder %s15, 0
    %p182 = por %p180, %p181
    %p183 = scmp.ne.s32.totalorder %s175, %s177
    %p184 = scmp.eq.s32.totalorder %s20, 1
    %p185 = por %p183, %p184
    %p186 = scmp.ne.s32.totalorder %s177, %s178
    %p187 = scmp.eq.s32.totalorder %s20, 0
    %p188 = por %p186, %p187
    %p189 = scmp.ne.s32.totalorder %s177, %s178
    %p190 = scmp.eq.s32.totalorder %s21, 1
    %p191 = por %p189, %p190
    %p193 = scmp.ne.s32.totalorder %s178, %s192
    %p194 = scmp.eq.s32.totalorder %s21, 0
    %p195 = por %p193, %p194
    %s197 = sadd.s32 %s196, 1
    %p200 = scmp.eq.s32.totalorder %s15, 1
    %p201 = scmp.ne.s32.totalorder %s196, %s198
    %p202 = scmp.eq.s32.totalorder %s15, 0
    %p203 = por %p201, %p202
    %p204 = scmp.ne.s32.totalorder %s196, %s198
    %p205 = scmp.eq.s32.totalorder %s20, 1
    %p206 = por %p204, %p205
    %p207 = scmp.ne.s32.totalorder %s198, %s199
    %p208 = scmp.eq.s32.totalorder %s20, 0
    %p209 = por %p207, %p208
    %p210 = scmp.ne.s32.totalorder %s198, %s199
    %p211 = scmp.eq.s32.totalorder %s21, 1
    %p212 = por %p210, %p211
    %p214 = scmp.ne.s32.totalorder %s199, %s213
    %p215 = scmp.eq.s32.totalorder %s21, 0
    %p216 = por %p214, %p215
    %s217 = ssub.s32 %s15, %s22
    %p218 = scmp.eq.s32.totalorder %s217, 0
    %s220 = sadd.s32 %s219, 1
    %s221 = scalar_select %p218, %s219, %s220
    %p224 = pneg %p218
    %p225 = scmp.eq.s32.totalorder %s15, 1
    %p226 = por %p224, %p225
    %p227 = scmp.ne.s32.totalorder %s219, %s222
    %p228 = scmp.eq.s32.totalorder %s15, 0
    %p229 = por %p227, %p228
    %p230 = scmp.ne.s32.totalorder %s219, %s222
    %p231 = scmp.eq.s32.totalorder %s20, 1
    %p232 = por %p230, %p231
    %p233 = scmp.ne.s32.totalorder %s222, %s223
    %p234 = scmp.eq.s32.totalorder %s20, 0
    %p235 = por %p233, %p234
    %p236 = scmp.ne.s32.totalorder %s222, %s223
    %p237 = scmp.eq.s32.totalorder %s21, 1
    %p238 = por %p236, %p237
    %p240 = scmp.ne.s32.totalorder %s223, %s239
    %p241 = scmp.eq.s32.totalorder %s21, 0
    %p242 = por %p240, %p241
    %p243 = scmp.le.s32.totalorder 1, %s15
    %p244 = scmp.lt.s32.totalorder %s15, 3
    %p245 = pnand %p243, %p244
    %p246 = pneg %p245
    // Predicated region
    $region9: #{bottleneck_forward.1} parent=5 // pred_check
      _
    $region10: #{bottleneck_forward.1} parent=5 // pred_check_branch
      %248 = sbr.rel (%p245) target = $region12
    $region11: #{bottleneck_forward.1} parent=5 // pred_region
      %s249 = ssub.s32 %s15, 1
      // Predicated region
      $region13: #{bottleneck_forward.1} parent=11 // pred_check
        %p250 = pneg %p62
      $region14: #{bottleneck_forward.1} parent=11 // pred_check_branch
        %252 = sbr.rel (%p250) target = $region16
      $region15: #{bottleneck_forward.1} parent=11 // pred_region
        _
      $region16: #{bottleneck_forward.1} parent=11 // pred_fallthru
        _
      // Predicated region
      $region17: #{bottleneck_forward.1} parent=11 // pred_check
        %p253 = pneg %p83
      $region18: #{bottleneck_forward.1} parent=11 // pred_check_branch
        %255 = sbr.rel (%p253) target = $region20
      $region19: #{bottleneck_forward.1} parent=11 // pred_region
        _
      $region20: #{bottleneck_forward.1} parent=11 // pred_fallthru
        _
      // Predicated region
      $region21: #{bottleneck_forward.1} parent=11 // pred_check
        %p256 = pneg %p104
      $region22: #{bottleneck_forward.1} parent=11 // pred_check_branch
        %258 = sbr.rel (%p256) target = $region24
      $region23: #{bottleneck_forward.1} parent=11 // pred_region
        _
      $region24: #{bottleneck_forward.1} parent=11 // pred_fallthru
        _
      // Predicated region
      $region25: #{bottleneck_forward.1} parent=11 // pred_check
        %p259 = pneg %p125
      $region26: #{bottleneck_forward.1} parent=11 // pred_check_branch
        %261 = sbr.rel (%p259) target = $region28
      $region27: #{bottleneck_forward.1} parent=11 // pred_region
        _
      $region28: #{bottleneck_forward.1} parent=11 // pred_fallthru
        _
      // Predicated region
      $region29: #{bottleneck_forward.1} parent=11 // pred_check
        %p262 = pneg %p146
      $region30: #{bottleneck_forward.1} parent=11 // pred_check_branch
        %264 = sbr.rel (%p262) target = $region32
      $region31: #{bottleneck_forward.1} parent=11 // pred_region
        _
      $region32: #{bottleneck_forward.1} parent=11 // pred_fallthru
        _
      // Predicated region
      $region33: #{bottleneck_forward.1} parent=11 // pred_check
        %p265 = pneg %p167
      $region34: #{bottleneck_forward.1} parent=11 // pred_check_branch
        %267 = sbr.rel (%p265) target = $region36
      $region35: #{bottleneck_forward.1} parent=11 // pred_region
        _
      $region36: #{bottleneck_forward.1} parent=11 // pred_fallthru
        _
      // Predicated region
      $region37: #{bottleneck_forward.1} parent=11 // pred_check
        %p268 = pneg %p188
      $region38: #{bottleneck_forward.1} parent=11 // pred_check_branch
        %270 = sbr.rel (%p268) target = $region40
      $region39: #{bottleneck_forward.1} parent=11 // pred_region
        _
      $region40: #{bottleneck_forward.1} parent=11 // pred_fallthru
        _
      // Predicated region
      $region41: #{bottleneck_forward.1} parent=11 // pred_check
        %p271 = pneg %p209
      $region42: #{bottleneck_forward.1} parent=11 // pred_check_branch
        %273 = sbr.rel (%p271) target = $region44
      $region43: #{bottleneck_forward.1} parent=11 // pred_region
        _
      $region44: #{bottleneck_forward.1} parent=11 // pred_fallthru
        _
    $region12: #{bottleneck_forward.1} parent=5 // pred_fallthru
      _
    %p274 = scmp.lt.s32.totalorder %s15, 2
    // Predicated region
    $region45: #{bottleneck_forward.1} parent=5 // pred_check
      %p275 = pneg %p274
    $region46: #{bottleneck_forward.1} parent=5 // pred_check_branch
      %277 = sbr.rel (%p275) target = $region48
    $region47: #{bottleneck_forward.1} parent=5 // pred_region
      // Predicated region
      $region49: #{bottleneck_forward.1} parent=47 // pred_check
        %p278 = pneg %p35
      $region50: #{bottleneck_forward.1} parent=47 // pred_check_branch
        %280 = sbr.rel (%p278) target = $region52
      $region51: #{bottleneck_forward.1} parent=47 // pred_region
        %p281 = scmp.lt.s32.totalorder %s15, 1
        %s282 = scalar_select %p281, %s15, 1
        %s283 = smul.addr %s282, 32
        %s284 = smul.addr %s283, 4
        %s285 = scalar_lea.vmem %s0, %s284
      $region52: #{bottleneck_forward.1} parent=47 // pred_fallthru
        _
    $region48: #{bottleneck_forward.1} parent=5 // pred_fallthru
      _
    %p286 = scmp.le.s32.totalorder 1, %s15
    %p287 = scmp.lt.s32.totalorder %s15, 3
    %p288 = pnand %p286, %p287
    %p289 = pneg %p288
    // Predicated region
    $region53: #{bottleneck_forward.1} parent=5 // pred_check
      _
    $region54: #{bottleneck_forward.1} parent=5 // pred_check_branch
      %291 = sbr.rel (%p288) target = $region56
    $region55: #{bottleneck_forward.1} parent=5 // pred_region
      %s292 = ssub.s32 %s15, 1
      %p293 = scmp.lt.s32.totalorder %s20, 1
      %s294 = scalar_select %p293, %s20, 1
      %s295 = smul.addr %s294, 32
      %s296 = smul.addr %s295, 4
      %s297 = scalar_lea.vmem %s0, %s296
      %p298 = pneg %p41
      %p299 = pneg %p38
      %p300 = pneg %p62
      %p301 = pneg %p59
      %p302 = pneg %p83
      %p303 = pneg %p80
      %p304 = pneg %p104
      %p305 = pneg %p101
      %p306 = pneg %p125
      %p307 = pneg %p122
      %p308 = pneg %p146
      %p309 = pneg %p143
      %p310 = pneg %p167
      %p311 = pneg %p164
      %p312 = pneg %p188
      %p313 = pneg %p185
      %p314 = pneg %p209
      %p315 = pneg %p206
      %p316 = pneg %p235
      %p317 = pneg %p232
      %p318 = scmp.lt.s32.totalorder %s20, 1
      %s319 = scalar_select %p318, %s20, 1
      %s320 = smul.addr %s319, 32
      %s321 = smul.addr %s320, 4
      %s322 = scalar_lea.vmem %s9, %s321
      %p323 = scmp.lt.s32.totalorder %s20, 1
      %s324 = scalar_select %p323, %s20, 1
      %s325 = smul.addr %s324, 32
      %s326 = smul.addr %s325, 4
      %s327 = scalar_lea.vmem %s0, %s326
      %p328 = scmp.lt.s32.totalorder %s20, 1
      %s329 = scalar_select %p328, %s20, 1
      %s330 = smul.addr %s329, 32
      %s331 = smul.addr %s330, 4
      %s332 = scalar_lea.vmem %s9, %s331
      %v334 = vld [vmem:[%s327] sm:$0xf]
      %v335 = vld [vmem:[%s327 + $0x4] sm:$0xf]
      %v336 = vld [vmem:[%s327 + $0x8] sm:$0xf]
      %v337 = vld [vmem:[%s327 + $0xc] sm:$0xf]
      %v338 = vld [vmem:[%s327 + $0x10] sm:$0xf]
      %v339 = vld [vmem:[%s327 + $0x14] sm:$0xf]
      %v340 = vld [vmem:[%s327 + $0x18] sm:$0xf]
      %v341 = vld [vmem:[%s327 + $0x1c] sm:$0xf]
      %v342 = vld [vmem:[%s327 + $0x20] sm:$0xf]
      %v343 = vld [vmem:[%s327 + $0x24] sm:$0xf]
      %v344 = vld [vmem:[%s327 + $0x28] sm:$0xf]
      %v345 = vld [vmem:[%s327 + $0x2c] sm:$0xf]
      %v346 = vld [vmem:[%s327 + $0x30] sm:$0xf]
      %v347 = vld [vmem:[%s327 + $0x34] sm:$0xf]
      %v348 = vld [vmem:[%s327 + $0x38] sm:$0xf]
      %v349 = vld [vmem:[%s327 + $0x3c] sm:$0xf]
      %v350 = vld [vmem:[%s327 + $0x40] sm:$0xf]
      %v351 = vld [vmem:[%s327 + $0x44] sm:$0xf]
      %v352 = vld [vmem:[%s327 + $0x48] sm:$0xf]
      %v353 = vld [vmem:[%s327 + $0x4c] sm:$0xf]
      %v354 = vld [vmem:[%s327 + $0x50] sm:$0xf]
      %v355 = vld [vmem:[%s327 + $0x54] sm:$0xf]
      %v356 = vld [vmem:[%s327 + $0x58] sm:$0xf]
      %v357 = vld [vmem:[%s327 + $0x5c] sm:$0xf]
      %v358 = vld [vmem:[%s327 + $0x60] sm:$0xf]
      %v359 = vld [vmem:[%s327 + $0x64] sm:$0xf]
      %v360 = vld [vmem:[%s327 + $0x68] sm:$0xf]
      %v361 = vld [vmem:[%s327 + $0x6c] sm:$0xf]
      %v362 = vld [vmem:[%s327 + $0x70] sm:$0xf]
      %v363 = vld [vmem:[%s327 + $0x74] sm:$0xf]
      %v364 = vld [vmem:[%s327 + $0x78] sm:$0xf]
      %v365 = vld [vmem:[%s327 + $0x7c] sm:$0xf]
      %v366 = vld [vmem:[%s1] sm:$0x3]
      %v367 = vld [vmem:[%s2] sm:$0x1]
      %v369 = vlaneseq
      %v370 = vshrl.u32 %v369, 7
      %v371 = vsub.s32 0, %v370
      %v372 = vrot.slane %v367, %v371
      %v406 = vunpack.c.l.b16 %v334
      %v407 = vunpack.c.l.b16 %v335
      %v408 = vunpack.c.l.b16 %v336
      %v409 = vunpack.c.l.b16 %v337
      %v410 = vunpack.c.l.b16 %v338
      %v411 = vunpack.c.l.b16 %v339
      %v412 = vunpack.c.l.b16 %v340
      %v413 = vunpack.c.l.b16 %v341
      %v414 = vunpack.c.l.b16 %v342
      %v415 = vunpack.c.l.b16 %v343
      %v416 = vunpack.c.l.b16 %v344
      %v417 = vunpack.c.l.b16 %v345
      %v418 = vunpack.c.l.b16 %v346
      %v419 = vunpack.c.l.b16 %v347
      %v420 = vunpack.c.l.b16 %v348
      %v421 = vunpack.c.l.b16 %v349
      %v422 = vunpack.c.l.b16 %v350
      %v423 = vunpack.c.l.b16 %v351
      %v424 = vunpack.c.l.b16 %v352
      %v425 = vunpack.c.l.b16 %v353
      %v426 = vunpack.c.l.b16 %v354
      %v427 = vunpack.c.l.b16 %v355
      %v428 = vunpack.c.l.b16 %v356
      %v429 = vunpack.c.l.b16 %v357
      %v430 = vunpack.c.l.b16 %v358
      %v431 = vunpack.c.l.b16 %v359
      %v432 = vunpack.c.l.b16 %v360
      %v433 = vunpack.c.l.b16 %v361
      %v434 = vunpack.c.l.b16 %v362
      %v435 = vunpack.c.l.b16 %v363
      %v436 = vunpack.c.l.b16 %v364
      %v437 = vunpack.c.l.b16 %v365
      %v438 = vpack.c.b16 %v407, %v406
      %v439 = vpack.c.b16 %v409, %v408
      %v440 = vpack.c.b16 %v411, %v410
      %v441 = vpack.c.b16 %v413, %v412
      %v442 = vpack.c.b16 %v415, %v414
      %v443 = vpack.c.b16 %v417, %v416
      %v444 = vpack.c.b16 %v419, %v418
      %v445 = vpack.c.b16 %v421, %v420
      %v446 = vpack.c.b16 %v423, %v422
      %v447 = vpack.c.b16 %v425, %v424
      %v448 = vpack.c.b16 %v427, %v426
      %v449 = vpack.c.b16 %v429, %v428
      %v450 = vpack.c.b16 %v431, %v430
      %v451 = vpack.c.b16 %v433, %v432
      %v452 = vpack.c.b16 %v435, %v434
      %v453 = vpack.c.b16 %v437, %v436
      %vm454 = vcmask 31744
      %v456 = vsel %vm454, %v438, 0
      %v459 = vsel %vm454, %v439, 0
      %v462 = vsel %vm454, %v440, 0
      %v465 = vsel %vm454, %v441, 0
      %v468 = vsel %vm454, %v442, 0
      %v471 = vsel %vm454, %v443, 0
      %v474 = vsel %vm454, %v444, 0
      %v477 = vsel %vm454, %v445, 0
      %v480 = vsel %vm454, %v446, 0
      %v483 = vsel %vm454, %v447, 0
      %v486 = vsel %vm454, %v448, 0
      %v489 = vsel %vm454, %v449, 0
      %v492 = vsel %vm454, %v450, 0
      %v495 = vsel %vm454, %v451, 0
      %v498 = vsel %vm454, %v452, 0
      %v501 = vsel %vm454, %v453, 0
      %vm503 = vcmask 1041408
      %v505 = vsel %vm503, %v366, 0
      %507 = vmatprep.subr.bf16.mxu0 0
      %508 = vmatpush1.bf16.msra.mxu0 %v505
      %509 = vmatprep.subr.bf16.mxu0 0
      %510 = vmatpush1.bf16.msra.mxu0 0
      %511 = vmatprep.subr.bf16.mxu0 0
      %512 = vmatpush1.bf16.msra.mxu0 0
      %513 = vmatprep.subr.bf16.mxu0 0
      %514 = vmatpush1.bf16.msra.mxu0 0
      %515 = vmatprep.subr.bf16.mxu0 0
      %516 = vmatpush1.bf16.msra.mxu0 0
      %517 = vmatprep.subr.bf16.mxu0 0
      %518 = vmatpush1.bf16.msra.mxu0 0
      %519 = vmatprep.subr.bf16.mxu0 0
      %520 = vmatpush1.bf16.msra.mxu0 0
      %521 = vmatprep.subr.bf16.mxu0 0
      %522 = vmatpush1.bf16.msra.mxu0 0
      %523 = vmatprep.subr.bf16.mxu0 0
      %524 = vmatpush1.bf16.msra.mxu0 0
      %525 = vmatprep.subr.bf16.mxu0 0
      %526 = vmatpush1.bf16.msra.mxu0 0
      %527 = vmatprep.subr.bf16.mxu0 0
      %528 = vmatpush1.bf16.msra.mxu0 0
      %529 = vmatprep.subr.bf16.mxu0 0
      %530 = vmatpush1.bf16.msra.mxu0 0
      %531 = vmatprep.subr.bf16.mxu0 0
      %532 = vmatpush1.bf16.msra.mxu0 0
      %533 = vmatprep.subr.bf16.mxu0 0
      %534 = vmatpush1.bf16.msra.mxu0 0
      %535 = vmatprep.subr.bf16.mxu0 0
      %536 = vmatpush1.bf16.msra.mxu0 0
      %537 = vmatprep.subr.bf16.mxu0 0
      %538 = vmatpush1.bf16.msra.mxu0 0
      %539 = vmatprep.mubr.bf16.mxu0 0
      %540 = vmatmul.mubr.bf16.gmra.mrb[0].mxu0 %v456
      %v541 = vpop.f32.mrb[0].mxu0
      %v542 = vadd.f32 %v372, %v541
      %v543 = vpop.f32.mrb[0].mxu0
      %v544 = vpop.f32.mrb[0].mxu0
      %v545 = vadd.f32 %v372, %v544
      %v546 = vpop.f32.mrb[0].mxu0
      %547 = vmatprep.mubr.bf16.mxu0 0
      %548 = vmatmul.mubr.bf16.gmra.mrb[0].mxu0 %v459
      %v549 = vpop.f32.mrb[0].mxu0
      %v550 = vadd.f32 %v372, %v549
      %v551 = vpop.f32.mrb[0].mxu0
      %v552 = vpop.f32.mrb[0].mxu0
      %v553 = vadd.f32 %v372, %v552
      %v554 = vpop.f32.mrb[0].mxu0
      %555 = vmatprep.mubr.bf16.mxu0 0
      %556 = vmatmul.mubr.bf16.gmra.mrb[0].mxu0 %v462
      %v557 = vpop.f32.mrb[0].mxu0
      %v558 = vadd.f32 %v372, %v557
      %v559 = vpop.f32.mrb[0].mxu0
      %v560 = vpop.f32.mrb[0].mxu0
      %v561 = vadd.f32 %v372, %v560
      %v562 = vpop.f32.mrb[0].mxu0
      %563 = vmatprep.mubr.bf16.mxu0 0
      %564 = vmatmul.mubr.bf16.gmra.mrb[0].mxu0 %v465
      %v565 = vpop.f32.mrb[0].mxu0
      %v566 = vadd.f32 %v372, %v565
      %v567 = vpop.f32.mrb[0].mxu0
      %v568 = vpop.f32.mrb[0].mxu0
      %v569 = vadd.f32 %v372, %v568
      %v570 = vpop.f32.mrb[0].mxu0
      %571 = vmatprep.mubr.bf16.mxu0 0
      %572 = vmatmul.mubr.bf16.gmra.mrb[0].mxu0 %v468
      %v573 = vpop.f32.mrb[0].mxu0
      %v574 = vadd.f32 %v372, %v573
      %v575 = vpop.f32.mrb[0].mxu0
      %v576 = vpop.f32.mrb[0].mxu0
      %v577 = vadd.f32 %v372, %v576
      %v578 = vpop.f32.mrb[0].mxu0
      %579 = vmatprep.mubr.bf16.mxu0 0
      %580 = vmatmul.mubr.bf16.gmra.mrb[0].mxu0 %v471
      %v581 = vpop.f32.mrb[0].mxu0
      %v582 = vadd.f32 %v372, %v581
      %v583 = vpop.f32.mrb[0].mxu0
      %v584 = vpop.f32.mrb[0].mxu0
      %v585 = vadd.f32 %v372, %v584
      %v586 = vpop.f32.mrb[0].mxu0
      %587 = vmatprep.mubr.bf16.mxu0 0
      %588 = vmatmul.mubr.bf16.gmra.mrb[0].mxu0 %v474
      %v589 = vpop.f32.mrb[0].mxu0
      %v590 = vadd.f32 %v372, %v589
      %v591 = vpop.f32.mrb[0].mxu0
      %v592 = vpop.f32.mrb[0].mxu0
      %v593 = vadd.f32 %v372, %v592
      %v594 = vpop.f32.mrb[0].mxu0
      %595 = vmatprep.mubr.bf16.mxu0 0
      %596 = vmatmul.mubr.bf16.gmra.mrb[0].mxu0 %v477
      %v597 = vpop.f32.mrb[0].mxu0
      %v598 = vadd.f32 %v372, %v597
      %v599 = vpop.f32.mrb[0].mxu0
      %v600 = vpop.f32.mrb[0].mxu0
      %v601 = vadd.f32 %v372, %v600
      %v602 = vpop.f32.mrb[0].mxu0
      %603 = vmatprep.mubr.bf16.mxu0 0
      %604 = vmatmul.mubr.bf16.gmra.mrb[0].mxu0 %v480
      %v605 = vpop.f32.mrb[0].mxu0
      %v606 = vadd.f32 %v372, %v605
      %v607 = vpop.f32.mrb[0].mxu0
      %v608 = vpop.f32.mrb[0].mxu0
      %v609 = vadd.f32 %v372, %v608
      %v610 = vpop.f32.mrb[0].mxu0
      %611 = vmatprep.mubr.bf16.mxu0 0
      %612 = vmatmul.mubr.bf16.gmra.mrb[0].mxu0 %v483
      %v613 = vpop.f32.mrb[0].mxu0
      %v614 = vadd.f32 %v372, %v613
      %v615 = vpop.f32.mrb[0].mxu0
      %v616 = vpop.f32.mrb[0].mxu0
      %v617 = vadd.f32 %v372, %v616
      %v618 = vpop.f32.mrb[0].mxu0
      %619 = vmatprep.mubr.bf16.mxu0 0
      %620 = vmatmul.mubr.bf16.gmra.mrb[0].mxu0 %v486
      %v621 = vpop.f32.mrb[0].mxu0
      %v622 = vadd.f32 %v372, %v621
      %v623 = vpop.f32.mrb[0].mxu0
      %v624 = vpop.f32.mrb[0].mxu0
      %v625 = vadd.f32 %v372, %v624
      %v626 = vpop.f32.mrb[0].mxu0
      %627 = vmatprep.mubr.bf16.mxu0 0
      %628 = vmatmul.mubr.bf16.gmra.mrb[0].mxu0 %v489
      %v629 = vpop.f32.mrb[0].mxu0
      %v630 = vadd.f32 %v372, %v629
      %v631 = vpop.f32.mrb[0].mxu0
      %v632 = vpop.f32.mrb[0].mxu0
      %v633 = vadd.f32 %v372, %v632
      %v634 = vpop.f32.mrb[0].mxu0
      %635 = vmatprep.mubr.bf16.mxu0 0
      %636 = vmatmul.mubr.bf16.gmra.mrb[0].mxu0 %v492
      %v637 = vpop.f32.mrb[0].mxu0
      %v638 = vadd.f32 %v372, %v637
      %v639 = vpop.f32.mrb[0].mxu0
      %v640 = vpop.f32.mrb[0].mxu0
      %v641 = vadd.f32 %v372, %v640
      %v642 = vpop.f32.mrb[0].mxu0
      %643 = vmatprep.mubr.bf16.mxu0 0
      %644 = vmatmul.mubr.bf16.gmra.mrb[0].mxu0 %v495
      %v645 = vpop.f32.mrb[0].mxu0
      %v646 = vadd.f32 %v372, %v645
      %v647 = vpop.f32.mrb[0].mxu0
      %v648 = vpop.f32.mrb[0].mxu0
      %v649 = vadd.f32 %v372, %v648
      %v650 = vpop.f32.mrb[0].mxu0
      %651 = vmatprep.mubr.bf16.mxu0 0
      %652 = vmatmul.mubr.bf16.gmra.mrb[0].mxu0 %v498
      %v653 = vpop.f32.mrb[0].mxu0
      %v654 = vadd.f32 %v372, %v653
      %v655 = vpop.f32.mrb[0].mxu0
      %v656 = vpop.f32.mrb[0].mxu0
      %v657 = vadd.f32 %v372, %v656
      %v658 = vpop.f32.mrb[0].mxu0
      %659 = vmatprep.mubr.bf16.mxu0 0
      %660 = vmatmul.mubr.bf16.gmra.mrb[0].mxu0 %v501
      %v661 = vpop.f32.mrb[0].mxu0
      %v662 = vadd.f32 %v372, %v661
      %v663 = vpop.f32.mrb[0].mxu0
      %v664 = vpop.f32.mrb[0].mxu0
      %v665 = vadd.f32 %v372, %v664
      %v666 = vpop.f32.mrb[0].mxu0
      %667 = vdwg.mxu0
      %v668 = vmax.f32 %v542, 0.0
      %v669 = vmax.f32 %v545, 0.0
      %v670 = vmax.f32 %v550, 0.0
      %v671 = vmax.f32 %v553, 0.0
      %v672 = vmax.f32 %v558, 0.0
      %v673 = vmax.f32 %v561, 0.0
      %v674 = vmax.f32 %v566, 0.0
      %v675 = vmax.f32 %v569, 0.0
      %v676 = vmax.f32 %v574, 0.0
      %v677 = vmax.f32 %v577, 0.0
      %v678 = vmax.f32 %v582, 0.0
      %v679 = vmax.f32 %v585, 0.0
      %v680 = vmax.f32 %v590, 0.0
      %v681 = vmax.f32 %v593, 0.0
      %v682 = vmax.f32 %v598, 0.0
      %v683 = vmax.f32 %v601, 0.0
      %v684 = vmax.f32 %v606, 0.0
      %v685 = vmax.f32 %v609, 0.0
      %v686 = vmax.f32 %v614, 0.0
      %v687 = vmax.f32 %v617, 0.0
      %v688 = vmax.f32 %v622, 0.0
      %v689 = vmax.f32 %v625, 0.0
      %v690 = vmax.f32 %v630, 0.0
      %v691 = vmax.f32 %v633, 0.0
      %v692 = vmax.f32 %v638, 0.0
      %v693 = vmax.f32 %v641, 0.0
      %v694 = vmax.f32 %v646, 0.0
      %v695 = vmax.f32 %v649, 0.0
      %v696 = vmax.f32 %v654, 0.0
      %v697 = vmax.f32 %v657, 0.0
      %v698 = vmax.f32 %v662, 0.0
      %v699 = vmax.f32 %v665, 0.0
      %v700 = vlaneseq
      %v701 = vshrl.u32 %v700, 7
      %v702 = vadd.s32 %v701, 8
      %v703 = vadd.s32 %v701, 16
      %v704 = vadd.s32 %v701, 24
      %v705 = vadd.s32 %v701, 32
      %v706 = vadd.s32 %v701, 40
      %v707 = vadd.s32 %v701, 48
      %v708 = vadd.s32 %v701, 56
      %v709 = vadd.s32 %v701, 64
      %v710 = vadd.s32 %v701, 72
      %v711 = vadd.s32 %v701, 80
      %v712 = vadd.s32 %v701, 88
      %v713 = vadd.s32 %v701, 96
      %v714 = vadd.s32 %v701, 104
      %v715 = vadd.s32 %v701, 112
      %v716 = vadd.s32 %v701, 120
      %v717 = vadd.s32 %v701, 128
      %v718 = vadd.s32 %v701, 136
      %v719 = vadd.s32 %v701, 144
      %v720 = vadd.s32 %v701, 152
      %v721 = vadd.s32 %v701, 160
      %v722 = vadd.s32 %v701, 168
      %v723 = vadd.s32 %v701, 176
      %v724 = vadd.s32 %v701, 184
      %v725 = vadd.s32 %v701, 192
      %v726 = vadd.s32 %v701, 200
      %v727 = vadd.s32 %v701, 208
      %v728 = vadd.s32 %v701, 216
      %v729 = vadd.s32 %v701, 224
      %v730 = vadd.s32 %v701, 232
      %v731 = vadd.s32 %v701, 240
      %v732 = vadd.s32 %v701, 248
      %vm733 = vcmp.lt.s32.totalorder %v701, 0
      %v734 = vsub.s32 0, %v701
      %v735 = vsel %vm733, %v734, %v701
      %v736 = vshrl.u32 %v735, 4
      %v737 = vand.u32 %v735, 15
      %v738 = vsub.s32 0, %v737
      %v739 = vsel %vm733, %v738, %v737
      %vm740 = vcmp.lt.s32.totalorder %v702, 0
      %v741 = vsub.s32 0, %v702
      %v742 = vsel %vm740, %v741, %v702
      %v743 = vshrl.u32 %v742, 4
      %v744 = vand.u32 %v742, 15
      %v745 = vsub.s32 0, %v744
      %v746 = vsel %vm740, %v745, %v744
      %vm747 = vcmp.lt.s32.totalorder %v703, 0
      %v748 = vsub.s32 0, %v703
      %v749 = vsel %vm747, %v748, %v703
      %v750 = vshrl.u32 %v749, 4
      %v751 = vand.u32 %v749, 15
      %v752 = vsub.s32 0, %v751
      %v753 = vsel %vm747, %v752, %v751
      %vm754 = vcmp.lt.s32.totalorder %v704, 0
      %v755 = vsub.s32 0, %v704
      %v756 = vsel %vm754, %v755, %v704
      %v757 = vshrl.u32 %v756, 4
      %v758 = vand.u32 %v756, 15
      %v759 = vsub.s32 0, %v758
      %v760 = vsel %vm754, %v759, %v758
      %vm761 = vcmp.lt.s32.totalorder %v705, 0
      %v762 = vsub.s32 0, %v705
      %v763 = vsel %vm761, %v762, %v705
      %v764 = vshrl.u32 %v763, 4
      %v765 = vand.u32 %v763, 15
      %v766 = vsub.s32 0, %v765
      %v767 = vsel %vm761, %v766, %v765
      %vm768 = vcmp.lt.s32.totalorder %v706, 0
      %v769 = vsub.s32 0, %v706
      %v770 = vsel %vm768, %v769, %v706
      %v771 = vshrl.u32 %v770, 4
      %v772 = vand.u32 %v770, 15
      %v773 = vsub.s32 0, %v772
      %v774 = vsel %vm768, %v773, %v772
      %vm775 = vcmp.lt.s32.totalorder %v707, 0
      %v776 = vsub.s32 0, %v707
      %v777 = vsel %vm775, %v776, %v707
      %v778 = vshrl.u32 %v777, 4
      %v779 = vand.u32 %v777, 15
      %v780 = vsub.s32 0, %v779
      %v781 = vsel %vm775, %v780, %v779
      %vm782 = vcmp.lt.s32.totalorder %v708, 0
      %v783 = vsub.s32 0, %v708
      %v784 = vsel %vm782, %v783, %v708
      %v785 = vshrl.u32 %v784, 4
      %v786 = vand.u32 %v784, 15
      %v787 = vsub.s32 0, %v786
      %v788 = vsel %vm782, %v787, %v786
      %vm789 = vcmp.lt.s32.totalorder %v709, 0
      %v790 = vsub.s32 0, %v709
      %v791 = vsel %vm789, %v790, %v709
      %v792 = vshrl.u32 %v791, 4
      %v793 = vand.u32 %v791, 15
      %v794 = vsub.s32 0, %v793
      %v795 = vsel %vm789, %v794, %v793
      %vm796 = vcmp.lt.s32.totalorder %v710, 0
      %v797 = vsub.s32 0, %v710
      %v798 = vsel %vm796, %v797, %v710
      %v799 = vshrl.u32 %v798, 4
      %v800 = vand.u32 %v798, 15
      %v801 = vsub.s32 0, %v800
      %v802 = vsel %vm796, %v801, %v800
      %vm803 = vcmp.lt.s32.totalorder %v711, 0
      %v804 = vsub.s32 0, %v711
      %v805 = vsel %vm803, %v804, %v711
      %v806 = vshrl.u32 %v805, 4
      %v807 = vand.u32 %v805, 15
      %v808 = vsub.s32 0, %v807
      %v809 = vsel %vm803, %v808, %v807
      %vm810 = vcmp.lt.s32.totalorder %v712, 0
      %v811 = vsub.s32 0, %v712
      %v812 = vsel %vm810, %v811, %v712
      %v813 = vshrl.u32 %v812, 4
      %v814 = vand.u32 %v812, 15
      %v815 = vsub.s32 0, %v814
      %v816 = vsel %vm810, %v815, %v814
      %vm817 = vcmp.lt.s32.totalorder %v713, 0
      %v818 = vsub.s32 0, %v713
      %v819 = vsel %vm817, %v818, %v713
      %v820 = vshrl.u32 %v819, 4
      %v821 = vand.u32 %v819, 15
      %v822 = vsub.s32 0, %v821
      %v823 = vsel %vm817, %v822, %v821
      %vm824 = vcmp.lt.s32.totalorder %v714, 0
      %v825 = vsub.s32 0, %v714
      %v826 = vsel %vm824, %v825, %v714
      %v827 = vshrl.u32 %v826, 4
      %v828 = vand.u32 %v826, 15
      %v829 = vsub.s32 0, %v828
      %v830 = vsel %vm824, %v829, %v828
      %vm831 = vcmp.lt.s32.totalorder %v715, 0
      %v832 = vsub.s32 0, %v715
      %v833 = vsel %vm831, %v832, %v715
      %v834 = vshrl.u32 %v833, 4
      %v835 = vand.u32 %v833, 15
      %v836 = vsub.s32 0, %v835
      %v837 = vsel %vm831, %v836, %v835
      %vm838 = vcmp.lt.s32.totalorder %v716, 0
      %v839 = vsub.s32 0, %v716
      %v840 = vsel %vm838, %v839, %v716
      %v841 = vshrl.u32 %v840, 4
      %v842 = vand.u32 %v840, 15
      %v843 = vsub.s32 0, %v842
      %v844 = vsel %vm838, %v843, %v842
      %vm845 = vcmp.lt.s32.totalorder %v717, 0
      %v846 = vsub.s32 0, %v717
      %v847 = vsel %vm845, %v846, %v717
      %v848 = vshrl.u32 %v847, 4
      %v849 = vand.u32 %v847, 15
      %v850 = vsub.s32 0, %v849
      %v851 = vsel %vm845, %v850, %v849
      %vm852 = vcmp.lt.s32.totalorder %v718, 0
      %v853 = vsub.s32 0, %v718
      %v854 = vsel %vm852, %v853, %v718
      %v855 = vshrl.u32 %v854, 4
      %v856 = vand.u32 %v854, 15
      %v857 = vsub.s32 0, %v856
      %v858 = vsel %vm852, %v857, %v856
      %vm859 = vcmp.lt.s32.totalorder %v719, 0
      %v860 = vsub.s32 0, %v719
      %v861 = vsel %vm859, %v860, %v719
      %v862 = vshrl.u32 %v861, 4
      %v863 = vand.u32 %v861, 15
      %v864 = vsub.s32 0, %v863
      %v865 = vsel %vm859, %v864, %v863
      %vm866 = vcmp.lt.s32.totalorder %v720, 0
      %v867 = vsub.s32 0, %v720
      %v868 = vsel %vm866, %v867, %v720
      %v869 = vshrl.u32 %v868, 4
      %v870 = vand.u32 %v868, 15
      %v871 = vsub.s32 0, %v870
      %v872 = vsel %vm866, %v871, %v870
      %vm873 = vcmp.lt.s32.totalorder %v721, 0
      %v874 = vsub.s32 0, %v721
      %v875 = vsel %vm873, %v874, %v721
      %v876 = vshrl.u32 %v875, 4
      %v877 = vand.u32 %v875, 15
      %v878 = vsub.s32 0, %v877
      %v879 = vsel %vm873, %v878, %v877
      %vm880 = vcmp.lt.s32.totalorder %v722, 0
      %v881 = vsub.s32 0, %v722
      %v882 = vsel %vm880, %v881, %v722
      %v883 = vshrl.u32 %v882, 4
      %v884 = vand.u32 %v882, 15
      %v885 = vsub.s32 0, %v884
      %v886 = vsel %vm880, %v885, %v884
      %vm887 = vcmp.lt.s32.totalorder %v723, 0
      %v888 = vsub.s32 0, %v723
      %v889 = vsel %vm887, %v888, %v723
      %v890 = vshrl.u32 %v889, 4
      %v891 = vand.u32 %v889, 15
      %v892 = vsub.s32 0, %v891
      %v893 = vsel %vm887, %v892, %v891
      %vm894 = vcmp.lt.s32.totalorder %v724, 0
      %v895 = vsub.s32 0, %v724
      %v896 = vsel %vm894, %v895, %v724
      %v897 = vshrl.u32 %v896, 4
      %v898 = vand.u32 %v896, 15
      %v899 = vsub.s32 0, %v898
      %v900 = vsel %vm894, %v899, %v898
      %vm901 = vcmp.lt.s32.totalorder %v725, 0
      %v902 = vsub.s32 0, %v725
      %v903 = vsel %vm901, %v902, %v725
      %v904 = vshrl.u32 %v903, 4
      %v905 = vand.u32 %v903, 15
      %v906 = vsub.s32 0, %v905
      %v907 = vsel %vm901, %v906, %v905
      %vm908 = vcmp.lt.s32.totalorder %v726, 0
      %v909 = vsub.s32 0, %v726
      %v910 = vsel %vm908, %v909, %v726
      %v911 = vshrl.u32 %v910, 4
      %v912 = vand.u32 %v910, 15
      %v913 = vsub.s32 0, %v912
      %v914 = vsel %vm908, %v913, %v912
      %vm915 = vcmp.lt.s32.totalorder %v727, 0
      %v916 = vsub.s32 0, %v727
      %v917 = vsel %vm915, %v916, %v727
      %v918 = vshrl.u32 %v917, 4
      %v919 = vand.u32 %v917, 15
      %v920 = vsub.s32 0, %v919
      %v921 = vsel %vm915, %v920, %v919
      %vm922 = vcmp.lt.s32.totalorder %v728, 0
      %v923 = vsub.s32 0, %v728
      %v924 = vsel %vm922, %v923, %v728
      %v925 = vshrl.u32 %v924, 4
      %v926 = vand.u32 %v924, 15
      %v927 = vsub.s32 0, %v926
      %v928 = vsel %vm922, %v927, %v926
      %vm929 = vcmp.lt.s32.totalorder %v729, 0
      %v930 = vsub.s32 0, %v729
      %v931 = vsel %vm929, %v930, %v729
      %v932 = vshrl.u32 %v931, 4
      %v933 = vand.u32 %v931, 15
      %v934 = vsub.s32 0, %v933
      %v935 = vsel %vm929, %v934, %v933
      %vm936 = vcmp.lt.s32.totalorder %v730, 0
      %v937 = vsub.s32 0, %v730
      %v938 = vsel %vm936, %v937, %v730
      %v939 = vshrl.u32 %v938, 4
      %v940 = vand.u32 %v938, 15
      %v941 = vsub.s32 0, %v940
      %v942 = vsel %vm936, %v941, %v940
      %vm943 = vcmp.lt.s32.totalorder %v731, 0
      %v944 = vsub.s32 0, %v731
      %v945 = vsel %vm943, %v944, %v731
      %v946 = vshrl.u32 %v945, 4
      %v947 = vand.u32 %v945, 15
      %v948 = vsub.s32 0, %v947
      %v949 = vsel %vm943, %v948, %v947
      %vm950 = vcmp.lt.s32.totalorder %v732, 0
      %v951 = vsub.s32 0, %v732
      %v952 = vsel %vm950, %v951, %v732
      %v953 = vshrl.u32 %v952, 4
      %v954 = vand.u32 %v952, 15
      %v955 = vsub.s32 0, %v954
      %v956 = vsel %vm950, %v955, %v954
      %vm957 = vcmp.ne.s32.totalorder %v739, 0
      %vm958 = vcmp.ne.s32.totalorder %v746, 0
      %vm959 = vcmp.ne.s32.totalorder %v753, 0
      %vm960 = vcmp.ne.s32.totalorder %v760, 0
      %vm961 = vcmp.ne.s32.totalorder %v767, 0
      %vm962 = vcmp.ne.s32.totalorder %v774, 0
      %vm963 = vcmp.ne.s32.totalorder %v781, 0
      %vm964 = vcmp.ne.s32.totalorder %v788, 0
      %vm965 = vcmp.ne.s32.totalorder %v795, 0
      %vm966 = vcmp.ne.s32.totalorder %v802, 0
      %vm967 = vcmp.ne.s32.totalorder %v809, 0
      %vm968 = vcmp.ne.s32.totalorder %v816, 0
      %vm969 = vcmp.ne.s32.totalorder %v823, 0
      %vm970 = vcmp.ne.s32.totalorder %v830, 0
      %vm971 = vcmp.ne.s32.totalorder %v837, 0
      %vm972 = vcmp.ne.s32.totalorder %v844, 0
      %vm973 = vcmp.ne.s32.totalorder %v851, 0
      %vm974 = vcmp.ne.s32.totalorder %v858, 0
      %vm975 = vcmp.ne.s32.totalorder %v865, 0
      %vm976 = vcmp.ne.s32.totalorder %v872, 0
      %vm977 = vcmp.ne.s32.totalorder %v879, 0
      %vm978 = vcmp.ne.s32.totalorder %v886, 0
      %vm979 = vcmp.ne.s32.totalorder %v893, 0
      %vm980 = vcmp.ne.s32.totalorder %v900, 0
      %vm981 = vcmp.ne.s32.totalorder %v907, 0
      %vm982 = vcmp.ne.s32.totalorder %v914, 0
      %vm983 = vcmp.ne.s32.totalorder %v921, 0
      %vm984 = vcmp.ne.s32.totalorder %v928, 0
      %vm985 = vcmp.ne.s32.totalorder %v935, 0
      %vm986 = vcmp.ne.s32.totalorder %v942, 0
      %vm987 = vcmp.ne.s32.totalorder %v949, 0
      %vm988 = vcmp.ne.s32.totalorder %v956, 0
      %vm989 = vcmp.lt.s32.totalorder %v739, 0
      %vm990 = vcmp.lt.s32.totalorder %v746, 0
      %vm991 = vcmp.lt.s32.totalorder %v753, 0
      %vm992 = vcmp.lt.s32.totalorder %v760, 0
      %vm993 = vcmp.lt.s32.totalorder %v767, 0
      %vm994 = vcmp.lt.s32.totalorder %v774, 0
      %vm995 = vcmp.lt.s32.totalorder %v781, 0
      %vm996 = vcmp.lt.s32.totalorder %v788, 0
      %vm997 = vcmp.lt.s32.totalorder %v795, 0
      %vm998 = vcmp.lt.s32.totalorder %v802, 0
      %vm999 = vcmp.lt.s32.totalorder %v809, 0
      %vm1000 = vcmp.lt.s32.totalorder %v816, 0
      %vm1001 = vcmp.lt.s32.totalorder %v823, 0
      %vm1002 = vcmp.lt.s32.totalorder %v830, 0
      %vm1003 = vcmp.lt.s32.totalorder %v837, 0
      %vm1004 = vcmp.lt.s32.totalorder %v844, 0
      %vm1005 = vcmp.lt.s32.totalorder %v851, 0
      %vm1006 = vcmp.lt.s32.totalorder %v858, 0
      %vm1007 = vcmp.lt.s32.totalorder %v865, 0
      %vm1008 = vcmp.lt.s32.totalorder %v872, 0
      %vm1009 = vcmp.lt.s32.totalorder %v879, 0
      %vm1010 = vcmp.lt.s32.totalorder %v886, 0
      %vm1011 = vcmp.lt.s32.totalorder %v893, 0
      %vm1012 = vcmp.lt.s32.totalorder %v900, 0
      %vm1013 = vcmp.lt.s32.totalorder %v907, 0
      %vm1014 = vcmp.lt.s32.totalorder %v914, 0
      %vm1015 = vcmp.lt.s32.totalorder %v921, 0
      %vm1016 = vcmp.lt.s32.totalorder %v928, 0
      %vm1017 = vcmp.lt.s32.totalorder %v935, 0
      %vm1018 = vcmp.lt.s32.totalorder %v942, 0
      %vm1019 = vcmp.lt.s32.totalorder %v949, 0
      %vm1020 = vcmp.lt.s32.totalorder %v956, 0
      %vm1021 = vmand %vm989, %vm957
      %vm1022 = vmand %vm990, %vm958
      %vm1023 = vmand %vm991, %vm959
      %vm1024 = vmand %vm992, %vm960
      %vm1025 = vmand %vm993, %vm961
      %vm1026 = vmand %vm994, %vm962
      %vm1027 = vmand %vm995, %vm963
      %vm1028 = vmand %vm996, %vm964
      %vm1029 = vmand %vm997, %vm965
      %vm1030 = vmand %vm998, %vm966
      %vm1031 = vmand %vm999, %vm967
      %vm1032 = vmand %vm1000, %vm968
      %vm1033 = vmand %vm1001, %vm969
      %vm1034 = vmand %vm1002, %vm970
      %vm1035 = vmand %vm1003, %vm971
      %vm1036 = vmand %vm1004, %vm972
      %vm1037 = vmand %vm1005, %vm973
      %vm1038 = vmand %vm1006, %vm974
      %vm1039 = vmand %vm1007, %vm975
      %vm1040 = vmand %vm1008, %vm976
      %vm1041 = vmand %vm1009, %vm977
      %vm1042 = vmand %vm1010, %vm978
      %vm1043 = vmand %vm1011, %vm979
      %vm1044 = vmand %vm1012, %vm980
      %vm1045 = vmand %vm1013, %vm981
      %vm1046 = vmand %vm1014, %vm982
      %vm1047 = vmand %vm1015, %vm983
      %vm1048 = vmand %vm1016, %vm984
      %vm1049 = vmand %vm1017, %vm985
      %vm1050 = vmand %vm1018, %vm986
      %vm1051 = vmand %vm1019, %vm987
      %vm1052 = vmand %vm1020, %vm988
      %v1053 = vadd.s32 %v739, 16
      %v1054 = vadd.s32 %v746, 16
      %v1055 = vadd.s32 %v753, 16
      %v1056 = vadd.s32 %v760, 16
      %v1057 = vadd.s32 %v767, 16
      %v1058 = vadd.s32 %v774, 16
      %v1059 = vadd.s32 %v781, 16
      %v1060 = vadd.s32 %v788, 16
      %v1061 = vadd.s32 %v795, 16
      %v1062 = vadd.s32 %v802, 16
      %v1063 = vadd.s32 %v809, 16
      %v1064 = vadd.s32 %v816, 16
      %v1065 = vadd.s32 %v823, 16
      %v1066 = vadd.s32 %v830, 16
      %v1067 = vadd.s32 %v837, 16
      %v1068 = vadd.s32 %v844, 16
      %v1069 = vadd.s32 %v851, 16
      %v1070 = vadd.s32 %v858, 16
      %v1071 = vadd.s32 %v865, 16
      %v1072 = vadd.s32 %v872, 16
      %v1073 = vadd.s32 %v879, 16
      %v1074 = vadd.s32 %v886, 16
      %v1075 = vadd.s32 %v893, 16
      %v1076 = vadd.s32 %v900, 16
      %v1077 = vadd.s32 %v907, 16
      %v1078 = vadd.s32 %v914, 16
      %v1079 = vadd.s32 %v921, 16
      %v1080 = vadd.s32 %v928, 16
      %v1081 = vadd.s32 %v935, 16
      %v1082 = vadd.s32 %v942, 16
      %v1083 = vadd.s32 %v949, 16
      %v1084 = vadd.s32 %v956, 16
      %v1085 = vsel %vm1021, %v1053, %v739
      %v1086 = vsel %vm1022, %v1054, %v746
      %v1087 = vsel %vm1023, %v1055, %v753
      %v1088 = vsel %vm1024, %v1056, %v760
      %v1089 = vsel %vm1025, %v1057, %v767
      %v1090 = vsel %vm1026, %v1058, %v774
      %v1091 = vsel %vm1027, %v1059, %v781
      %v1092 = vsel %vm1028, %v1060, %v788
      %v1093 = vsel %vm1029, %v1061, %v795
      %v1094 = vsel %vm1030, %v1062, %v802
      %v1095 = vsel %vm1031, %v1063, %v809
      %v1096 = vsel %vm1032, %v1064, %v816
      %v1097 = vsel %vm1033, %v1065, %v823
      %v1098 = vsel %vm1034, %v1066, %v830
      %v1099 = vsel %vm1035, %v1067, %v837
      %v1100 = vsel %vm1036, %v1068, %v844
      %v1101 = vsel %vm1037, %v1069, %v851
      %v1102 = vsel %vm1038, %v1070, %v858
      %v1103 = vsel %vm1039, %v1071, %v865
      %v1104 = vsel %vm1040, %v1072, %v872
      %v1105 = vsel %vm1041, %v1073, %v879
      %v1106 = vsel %vm1042, %v1074, %v886
      %v1107 = vsel %vm1043, %v1075, %v893
      %v1108 = vsel %vm1044, %v1076, %v900
      %v1109 = vsel %vm1045, %v1077, %v907
      %v1110 = vsel %vm1046, %v1078, %v914
      %v1111 = vsel %vm1047, %v1079, %v921
      %v1112 = vsel %vm1048, %v1080, %v928
      %v1113 = vsel %vm1049, %v1081, %v935
      %v1114 = vsel %vm1050, %v1082, %v942
      %v1115 = vsel %vm1051, %v1083, %v949
      %v1116 = vsel %vm1052, %v1084, %v956
      %vm1117 = vcmp.ne.s32.totalorder %v1085, 0
      %vm1118 = vcmp.ne.s32.totalorder %v1086, 0
      %vm1119 = vcmp.ne.s32.totalorder %v1087, 0
      %vm1120 = vcmp.ne.s32.totalorder %v1088, 0
      %vm1121 = vcmp.ne.s32.totalorder %v1089, 0
      %vm1122 = vcmp.ne.s32.totalorder %v1090, 0
      %vm1123 = vcmp.ne.s32.totalorder %v1091, 0
      %vm1124 = vcmp.ne.s32.totalorder %v1092, 0
      %vm1125 = vcmp.ne.s32.totalorder %v1093, 0
      %vm1126 = vcmp.ne.s32.totalorder %v1094, 0
      %vm1127 = vcmp.ne.s32.totalorder %v1095, 0
      %vm1128 = vcmp.ne.s32.totalorder %v1096, 0
      %vm1129 = vcmp.ne.s32.totalorder %v1097, 0
      %vm1130 = vcmp.ne.s32.totalorder %v1098, 0
      %vm1131 = vcmp.ne.s32.totalorder %v1099, 0
      %vm1132 = vcmp.ne.s32.totalorder %v1100, 0
      %vm1133 = vcmp.ne.s32.totalorder %v1101, 0
      %vm1134 = vcmp.ne.s32.totalorder %v1102, 0
      %vm1135 = vcmp.ne.s32.totalorder %v1103, 0
      %vm1136 = vcmp.ne.s32.totalorder %v1104, 0
      %vm1137 = vcmp.ne.s32.totalorder %v1105, 0
      %vm1138 = vcmp.ne.s32.totalorder %v1106, 0
      %vm1139 = vcmp.ne.s32.totalorder %v1107, 0
      %vm1140 = vcmp.ne.s32.totalorder %v1108, 0
      %vm1141 = vcmp.ne.s32.totalorder %v1109, 0
      %vm1142 = vcmp.ne.s32.totalorder %v1110, 0
      %vm1143 = vcmp.ne.s32.totalorder %v1111, 0
      %vm1144 = vcmp.ne.s32.totalorder %v1112, 0
      %vm1145 = vcmp.ne.s32.totalorder %v1113, 0
      %vm1146 = vcmp.ne.s32.totalorder %v1114, 0
      %vm1147 = vcmp.ne.s32.totalorder %v1115, 0
      %vm1148 = vcmp.ne.s32.totalorder %v1116, 0
      %vm1149 = vcmp.ne.s32.totalorder %v1085, 15
      %vm1150 = vcmp.ne.s32.totalorder %v1086, 15
      %vm1151 = vcmp.ne.s32.totalorder %v1087, 15
      %vm1152 = vcmp.ne.s32.totalorder %v1088, 15
      %vm1153 = vcmp.ne.s32.totalorder %v1089, 15
      %vm1154 = vcmp.ne.s32.totalorder %v1090, 15
      %vm1155 = vcmp.ne.s32.totalorder %v1091, 15
      %vm1156 = vcmp.ne.s32.totalorder %v1092, 15
      %vm1157 = vcmp.ne.s32.totalorder %v1093, 15
      %vm1158 = vcmp.ne.s32.totalorder %v1094, 15
      %vm1159 = vcmp.ne.s32.totalorder %v1095, 15
      %vm1160 = vcmp.ne.s32.totalorder %v1096, 15
      %vm1161 = vcmp.ne.s32.totalorder %v1097, 15
      %vm1162 = vcmp.ne.s32.totalorder %v1098, 15
      %vm1163 = vcmp.ne.s32.totalorder %v1099, 15
      %vm1164 = vcmp.ne.s32.totalorder %v1100, 15
      %vm1165 = vcmp.ne.s32.totalorder %v1101, 15
      %vm1166 = vcmp.ne.s32.totalorder %v1102, 15
      %vm1167 = vcmp.ne.s32.totalorder %v1103, 15
      %vm1168 = vcmp.ne.s32.totalorder %v1104, 15
      %vm1169 = vcmp.ne.s32.totalorder %v1105, 15
      %vm1170 = vcmp.ne.s32.totalorder %v1106, 15
      %vm1171 = vcmp.ne.s32.totalorder %v1107, 15
      %vm1172 = vcmp.ne.s32.totalorder %v1108, 15
      %vm1173 = vcmp.ne.s32.totalorder %v1109, 15
      %vm1174 = vcmp.ne.s32.totalorder %v1110, 15
      %vm1175 = vcmp.ne.s32.totalorder %v1111, 15
      %vm1176 = vcmp.ne.s32.totalorder %v1112, 15
      %vm1177 = vcmp.ne.s32.totalorder %v1113, 15
      %vm1178 = vcmp.ne.s32.totalorder %v1114, 15
      %vm1179 = vcmp.ne.s32.totalorder %v1115, 15
      %vm1180 = vcmp.ne.s32.totalorder %v1116, 15
      %vm1212 = vcmask 1040384
      %v1213 = vrot.slane 0.0, 7
      %v1214 = vsel %vm1212, %v1213, %v1213
      %v1215 = vrot.slane %v668, 7
      %v1216 = vsel %vm1212, %v1213, %v1215
      %v1217 = vrot.slane %v669, 7
      %v1218 = vsel %vm1212, %v1215, %v1217
      %v1219 = vrot.slane %v670, 7
      %v1220 = vsel %vm1212, %v1217, %v1219
      %v1221 = vrot.slane %v671, 7
      %v1222 = vsel %vm1212, %v1219, %v1221
      %v1223 = vrot.slane %v672, 7
      %v1224 = vsel %vm1212, %v1221, %v1223
      %v1225 = vrot.slane %v673, 7
      %v1226 = vsel %vm1212, %v1223, %v1225
      %v1227 = vrot.slane %v674, 7
      %v1228 = vsel %vm1212, %v1225, %v1227
      %v1229 = vrot.slane %v675, 7
      %v1230 = vsel %vm1212, %v1227, %v1229
      %v1231 = vrot.slane %v676, 7
      %v1232 = vsel %vm1212, %v1229, %v1231
      %v1233 = vrot.slane %v677, 7
      %v1234 = vsel %vm1212, %v1231, %v1233
      %v1235 = vrot.slane %v678, 7
      %v1236 = vsel %vm1212, %v1233, %v1235
      %v1237 = vrot.slane %v679, 7
      %v1238 = vsel %vm1212, %v1235, %v1237
      %v1239 = vrot.slane %v680, 7
      %v1240 = vsel %vm1212, %v1237, %v1239
      %v1241 = vrot.slane %v681, 7
      %v1242 = vsel %vm1212, %v1239, %v1241
      %v1243 = vrot.slane %v682, 7
      %v1244 = vsel %vm1212, %v1241, %v1243
      %v1245 = vrot.slane %v683, 7
      %v1246 = vsel %vm1212, %v1243, %v1245
      %v1247 = vrot.slane %v684, 7
      %v1248 = vsel %vm1212, %v1245, %v1247
      %v1249 = vrot.slane %v685, 7
      %v1250 = vsel %vm1212, %v1247, %v1249
      %v1251 = vrot.slane %v686, 7
      %v1252 = vsel %vm1212, %v1249, %v1251
      %v1253 = vrot.slane %v687, 7
      %v1254 = vsel %vm1212, %v1251, %v1253
      %v1255 = vrot.slane %v688, 7
      %v1256 = vsel %vm1212, %v1253, %v1255
      %v1257 = vrot.slane %v689, 7
      %v1258 = vsel %vm1212, %v1255, %v1257
      %v1259 = vrot.slane %v690, 7
      %v1260 = vsel %vm1212, %v1257, %v1259
      %v1261 = vrot.slane %v691, 7
      %v1262 = vsel %vm1212, %v1259, %v1261
      %v1263 = vrot.slane %v692, 7
      %v1264 = vsel %vm1212, %v1261, %v1263
      %v1265 = vrot.slane %v693, 7
      %v1266 = vsel %vm1212, %v1263, %v1265
      %v1267 = vrot.slane %v694, 7
      %v1268 = vsel %vm1212, %v1265, %v1267
      %v1269 = vrot.slane %v695, 7
      %v1270 = vsel %vm1212, %v1267, %v1269
      %v1271 = vrot.slane %v696, 7
      %v1272 = vsel %vm1212, %v1269, %v1271
      %v1273 = vrot.slane %v697, 7
      %v1274 = vsel %vm1212, %v1271, %v1273
      %v1306 = vsel %vm1117, %v1214, 0.0
      %v1307 = vsel %vm1118, %v1214, 0.0
      %v1308 = vsel %vm1119, %v1216, 0.0
      %v1309 = vsel %vm1120, %v1218, 0.0
      %v1310 = vsel %vm1121, %v1220, 0.0
      %v1311 = vsel %vm1122, %v1222, 0.0
      %v1312 = vsel %vm1123, %v1224, 0.0
      %v1313 = vsel %vm1124, %v1226, 0.0
      %v1314 = vsel %vm1125, %v1228, 0.0
      %v1315 = vsel %vm1126, %v1230, 0.0
      %v1316 = vsel %vm1127, %v1232, 0.0
      %v1317 = vsel %vm1128, %v1234, 0.0
      %v1318 = vsel %vm1129, %v1236, 0.0
      %v1319 = vsel %vm1130, %v1238, 0.0
      %v1320 = vsel %vm1131, %v1240, 0.0
      %v1321 = vsel %vm1132, %v1242, 0.0
      %v1322 = vsel %vm1133, %v1244, 0.0
      %v1323 = vsel %vm1134, %v1246, 0.0
      %v1324 = vsel %vm1135, %v1248, 0.0
      %v1325 = vsel %vm1136, %v1250, 0.0
      %v1326 = vsel %vm1137, %v1252, 0.0
      %v1327 = vsel %vm1138, %v1254, 0.0
      %v1328 = vsel %vm1139, %v1256, 0.0
      %v1329 = vsel %vm1140, %v1258, 0.0
      %v1330 = vsel %vm1141, %v1260, 0.0
      %v1331 = vsel %vm1142, %v1262, 0.0
      %v1332 = vsel %vm1143, %v1264, 0.0
      %v1333 = vsel %vm1144, %v1266, 0.0
      %v1334 = vsel %vm1145, %v1268, 0.0
      %v1335 = vsel %vm1146, %v1270, 0.0
      %v1336 = vsel %vm1147, %v1272, 0.0
      %v1337 = vsel %vm1148, %v1274, 0.0
      %v1338 = vpack.c.bf16 %v1307, %v1306
      %v1339 = vpack.c.bf16 %v1309, %v1308
      %v1340 = vpack.c.bf16 %v1311, %v1310
      %v1341 = vpack.c.bf16 %v1313, %v1312
      %v1342 = vpack.c.bf16 %v1315, %v1314
      %v1343 = vpack.c.bf16 %v1317, %v1316
      %v1344 = vpack.c.bf16 %v1319, %v1318
      %v1345 = vpack.c.bf16 %v1321, %v1320
      %v1346 = vpack.c.bf16 %v1323, %v1322
      %v1347 = vpack.c.bf16 %v1325, %v1324
      %v1348 = vpack.c.bf16 %v1327, %v1326
      %v1349 = vpack.c.bf16 %v1329, %v1328
      %v1350 = vpack.c.bf16 %v1331, %v1330
      %v1351 = vpack.c.bf16 %v1333, %v1332
      %v1352 = vpack.c.bf16 %v1335, %v1334
      %v1353 = vpack.c.bf16 %v1337, %v1336
      %v1354 = vld [vmem:[%s3] sm:$0x3]
      %v1355 = vpack.c.bf16 0.0, 0.0
      %v1356 = vpack.c.bf16 %v669, %v668
      %v1357 = vpack.c.bf16 %v671, %v670
      %v1358 = vpack.c.bf16 %v673, %v672
      %v1359 = vpack.c.bf16 %v675, %v674
      %v1360 = vpack.c.bf16 %v677, %v676
      %v1361 = vpack.c.bf16 %v679, %v678
      %v1362 = vpack.c.bf16 %v681, %v680
      %v1363 = vpack.c.bf16 %v683, %v682
      %v1364 = vpack.c.bf16 %v685, %v684
      %v1365 = vpack.c.bf16 %v687, %v686
      %v1366 = vpack.c.bf16 %v689, %v688
      %v1367 = vpack.c.bf16 %v691, %v690
      %v1368 = vpack.c.bf16 %v693, %v692
      %v1369 = vpack.c.bf16 %v695, %v694
      %v1370 = vpack.c.bf16 %v697, %v696
      %s1371 = scalar_lea.vmem %s3, 2
      %v1372 = vld [vmem:[%s1371] sm:$0x3]
      %v1374 = vsel %vm454, %v1355, 0
      %v1377 = vsel %vm454, %v1356, 0
      %v1380 = vsel %vm454, %v1357, 0
      %v1383 = vsel %vm454, %v1358, 0
      %v1386 = vsel %vm454, %v1359, 0
      %v1389 = vsel %vm454, %v1360, 0
      %v1392 = vsel %vm454, %v1361, 0
      %v1395 = vsel %vm454, %v1362, 0
      %v1398 = vsel %vm454, %v1363, 0
      %v1401 = vsel %vm454, %v1364, 0
      %v1404 = vsel %vm454, %v1365, 0
      %v1407 = vsel %vm454, %v1366, 0
      %v1410 = vsel %vm454, %v1367, 0
      %v1413 = vsel %vm454, %v1368, 0
      %v1416 = vsel %vm454, %v1369, 0
      %v1419 = vsel %vm454, %v1370, 0
      %v1422 = vsel %vm503, %v1372, 0
      %1424 = vmatprep.subr.bf16.mxu0 0
      %1425 = vmatpush1.bf16.msra.mxu0 %v1422
      %1426 = vmatprep.subr.bf16.mxu0 0
      %1427 = vmatpush1.bf16.msra.mxu0 0
      %1428 = vmatprep.subr.bf16.mxu0 0
      %1429 = vmatpush1.bf16.msra.mxu0 0
      %1430 = vmatprep.subr.bf16.mxu0 0
      %1431 = vmatpush1.bf16.msra.mxu0 0
      %1432 = vmatprep.subr.bf16.mxu0 0
      %1433 = vmatpush1.bf16.msra.mxu0 0
      %1434 = vmatprep.subr.bf16.mxu0 0
      %1435 = vmatpush1.bf16.msra.mxu0 0
      %1436 = vmatprep.subr.bf16.mxu0 0
      %1437 = vmatpush1.bf16.msra.mxu0 0
      %1438 = vmatprep.subr.bf16.mxu0 0
      %1439 = vmatpush1.bf16.msra.mxu0 0
      %1440 = vmatprep.subr.bf16.mxu0 0
      %1441 = vmatpush1.bf16.msra.mxu0 0
      %1442 = vmatprep.subr.bf16.mxu0 0
      %1443 = vmatpush1.bf16.msra.mxu0 0
      %1444 = vmatprep.subr.bf16.mxu0 0
      %1445 = vmatpush1.bf16.msra.mxu0 0
      %1446 = vmatprep.subr.bf16.mxu0 0
      %1447 = vmatpush1.bf16.msra.mxu0 0
      %1448 = vmatprep.subr.bf16.mxu0 0
      %1449 = vmatpush1.bf16.msra.mxu0 0
      %1450 = vmatprep.subr.bf16.mxu0 0
      %1451 = vmatpush1.bf16.msra.mxu0 0
      %1452 = vmatprep.subr.bf16.mxu0 0
      %1453 = vmatpush1.bf16.msra.mxu0 0
      %1454 = vmatprep.subr.bf16.mxu0 0
      %1455 = vmatpush1.bf16.msra.mxu0 0
      %1456 = vmatprep.mubr.bf16.mxu0 0
      %1457 = vmatmul.mubr.bf16.gmra.mrb[0].mxu0 %v1374
      %v1458 = vpop.f32.mrb[0].mxu0
      %v1459 = vadd.f32 0.0, %v1458
      %v1460 = vpop.f32.mrb[0].mxu0
      %v1461 = vpop.f32.mrb[0].mxu0
      %v1462 = vadd.f32 0.0, %v1461
      %v1463 = vpop.f32.mrb[0].mxu0
      %1464 = vmatprep.mubr.bf16.mxu0 0
      %1465 = vmatmul.mubr.bf16.gmra.mrb[0].mxu0 %v1377
      %v1466 = vpop.f32.mrb[0].mxu0
      %v1467 = vadd.f32 0.0, %v1466
      %v1468 = vpop.f32.mrb[0].mxu0
      %v1469 = vpop.f32.mrb[0].mxu0
      %v1470 = vadd.f32 0.0, %v1469
      %v1471 = vpop.f32.mrb[0].mxu0
      %1472 = vmatprep.mubr.bf16.mxu0 0
      %1473 = vmatmul.mubr.bf16.gmra.mrb[0].mxu0 %v1380
      %v1474 = vpop.f32.mrb[0].mxu0
      %v1475 = vadd.f32 0.0, %v1474
      %v1476 = vpop.f32.mrb[0].mxu0
      %v1477 = vpop.f32.mrb[0].mxu0
      %v1478 = vadd.f32 0.0, %v1477
      %v1479 = vpop.f32.mrb[0].mxu0
      %1480 = vmatprep.mubr.bf16.mxu0 0
      %1481 = vmatmul.mubr.bf16.gmra.mrb[0].mxu0 %v1383
      %v1482 = vpop.f32.mrb[0].mxu0
      %v1483 = vadd.f32 0.0, %v1482
      %v1484 = vpop.f32.mrb[0].mxu0
      %v1485 = vpop.f32.mrb[0].mxu0
      %v1486 = vadd.f32 0.0, %v1485
      %v1487 = vpop.f32.mrb[0].mxu0
      %1488 = vmatprep.mubr.bf16.mxu0 0
      %1489 = vmatmul.mubr.bf16.gmra.mrb[0].mxu0 %v1386
      %v1490 = vpop.f32.mrb[0].mxu0
      %v1491 = vadd.f32 0.0, %v1490
      %v1492 = vpop.f32.mrb[0].mxu0
      %v1493 = vpop.f32.mrb[0].mxu0
      %v1494 = vadd.f32 0.0, %v1493
      %v1495 = vpop.f32.mrb[0].mxu0
      %1496 = vmatprep.mubr.bf16.mxu0 0
      %1497 = vmatmul.mubr.bf16.gmra.mrb[0].mxu0 %v1389
      %v1498 = vpop.f32.mrb[0].mxu0
      %v1499 = vadd.f32 0.0, %v1498
      %v1500 = vpop.f32.mrb[0].mxu0
      %v1501 = vpop.f32.mrb[0].mxu0
      %v1502 = vadd.f32 0.0, %v1501
      %v1503 = vpop.f32.mrb[0].mxu0
      %1504 = vmatprep.mubr.bf16.mxu0 0
      %1505 = vmatmul.mubr.bf16.gmra.mrb[0].mxu0 %v1392
      %v1506 = vpop.f32.mrb[0].mxu0
      %v1507 = vadd.f32 0.0, %v1506
      %v1508 = vpop.f32.mrb[0].mxu0
      %v1509 = vpop.f32.mrb[0].mxu0
      %v1510 = vadd.f32 0.0, %v1509
      %v1511 = vpop.f32.mrb[0].mxu0
      %1512 = vmatprep.mubr.bf16.mxu0 0
      %1513 = vmatmul.mubr.bf16.gmra.mrb[0].mxu0 %v1395
      %v1514 = vpop.f32.mrb[0].mxu0
      %v1515 = vadd.f32 0.0, %v1514
      %v1516 = vpop.f32.mrb[0].mxu0
      %v1517 = vpop.f32.mrb[0].mxu0
      %v1518 = vadd.f32 0.0, %v1517
      %v1519 = vpop.f32.mrb[0].mxu0
      %1520 = vmatprep.mubr.bf16.mxu0 0
      %1521 = vmatmul.mubr.bf16.gmra.mrb[0].mxu0 %v1398
      %v1522 = vpop.f32.mrb[0].mxu0
      %v1523 = vadd.f32 0.0, %v1522
      %v1524 = vpop.f32.mrb[0].mxu0
      %v1525 = vpop.f32.mrb[0].mxu0
      %v1526 = vadd.f32 0.0, %v1525
      %v1527 = vpop.f32.mrb[0].mxu0
      %1528 = vmatprep.mubr.bf16.mxu0 0
      %1529 = vmatmul.mubr.bf16.gmra.mrb[0].mxu0 %v1401
      %v1530 = vpop.f32.mrb[0].mxu0
      %v1531 = vadd.f32 0.0, %v1530
      %v1532 = vpop.f32.mrb[0].mxu0
      %v1533 = vpop.f32.mrb[0].mxu0
      %v1534 = vadd.f32 0.0, %v1533
      %v1535 = vpop.f32.mrb[0].mxu0
      %1536 = vmatprep.mubr.bf16.mxu0 0
      %1537 = vmatmul.mubr.bf16.gmra.mrb[0].mxu0 %v1404
      %v1538 = vpop.f32.mrb[0].mxu0
      %v1539 = vadd.f32 0.0, %v1538
      %v1540 = vpop.f32.mrb[0].mxu0
      %v1541 = vpop.f32.mrb[0].mxu0
      %v1542 = vadd.f32 0.0, %v1541
      %v1543 = vpop.f32.mrb[0].mxu0
      %1544 = vmatprep.mubr.bf16.mxu0 0
      %1545 = vmatmul.mubr.bf16.gmra.mrb[0].mxu0 %v1407
      %v1546 = vpop.f32.mrb[0].mxu0
      %v1547 = vadd.f32 0.0, %v1546
      %v1548 = vpop.f32.mrb[0].mxu0
      %v1549 = vpop.f32.mrb[0].mxu0
      %v1550 = vadd.f32 0.0, %v1549
      %v1551 = vpop.f32.mrb[0].mxu0
      %1552 = vmatprep.mubr.bf16.mxu0 0
      %1553 = vmatmul.mubr.bf16.gmra.mrb[0].mxu0 %v1410
      %v1554 = vpop.f32.mrb[0].mxu0
      %v1555 = vadd.f32 0.0, %v1554
      %v1556 = vpop.f32.mrb[0].mxu0
      %v1557 = vpop.f32.mrb[0].mxu0
      %v1558 = vadd.f32 0.0, %v1557
      %v1559 = vpop.f32.mrb[0].mxu0
      %1560 = vmatprep.mubr.bf16.mxu0 0
      %1561 = vmatmul.mubr.bf16.gmra.mrb[0].mxu0 %v1413
      %v1562 = vpop.f32.mrb[0].mxu0
      %v1563 = vadd.f32 0.0, %v1562
      %v1564 = vpop.f32.mrb[0].mxu0
      %v1565 = vpop.f32.mrb[0].mxu0
      %v1566 = vadd.f32 0.0, %v1565
      %v1567 = vpop.f32.mrb[0].mxu0
      %1568 = vmatprep.mubr.bf16.mxu0 0
      %1569 = vmatmul.mubr.bf16.gmra.mrb[0].mxu0 %v1416
      %v1570 = vpop.f32.mrb[0].mxu0
      %v1571 = vadd.f32 0.0, %v1570
      %v1572 = vpop.f32.mrb[0].mxu0
      %v1573 = vpop.f32.mrb[0].mxu0
      %v1574 = vadd.f32 0.0, %v1573
      %v1575 = vpop.f32.mrb[0].mxu0
      %1576 = vmatprep.mubr.bf16.mxu0 0
      %1577 = vmatmul.mubr.bf16.gmra.mrb[0].mxu0 %v1419
      %v1578 = vpop.f32.mrb[0].mxu0
      %v1579 = vadd.f32 0.0, %v1578
      %v1580 = vpop.f32.mrb[0].mxu0
      %v1581 = vpop.f32.mrb[0].mxu0
      %v1582 = vadd.f32 0.0, %v1581
      %v1583 = vpop.f32.mrb[0].mxu0
      %1584 = vdwg.mxu0
      %v1586 = vsel %vm454, %v1338, 0
      %v1589 = vsel %vm454, %v1339, 0
      %v1592 = vsel %vm454, %v1340, 0
      %v1595 = vsel %vm454, %v1341, 0
      %v1598 = vsel %vm454, %v1342, 0
      %v1601 = vsel %vm454, %v1343, 0
      %v1604 = vsel %vm454, %v1344, 0
      %v1607 = vsel %vm454, %v1345, 0
      %v1610 = vsel %vm454, %v1346, 0
      %v1613 = vsel %vm454, %v1347, 0
      %v1616 = vsel %vm454, %v1348, 0
      %v1619 = vsel %vm454, %v1349, 0
      %v1622 = vsel %vm454, %v1350, 0
      %v1625 = vsel %vm454, %v1351, 0
      %v1628 = vsel %vm454, %v1352, 0
      %v1631 = vsel %vm454, %v1353, 0
      %v1634 = vsel %vm503, %v1354, 0
      %1636 = vmatprep.subr.bf16.mxu0 0
      %1637 = vmatpush1.bf16.msra.mxu0 %v1634
      %1638 = vmatprep.subr.bf16.mxu0 0
      %1639 = vmatpush1.bf16.msra.mxu0 0
      %1640 = vmatprep.subr.bf16.mxu0 0
      %1641 = vmatpush1.bf16.msra.mxu0 0
      %1642 = vmatprep.subr.bf16.mxu0 0
      %1643 = vmatpush1.bf16.msra.mxu0 0
      %1644 = vmatprep.subr.bf16.mxu0 0
      %1645 = vmatpush1.bf16.msra.mxu0 0
      %1646 = vmatprep.subr.bf16.mxu0 0
      %1647 = vmatpush1.bf16.msra.mxu0 0
      %1648 = vmatprep.subr.bf16.mxu0 0
      %1649 = vmatpush1.bf16.msra.mxu0 0
      %1650 = vmatprep.subr.bf16.mxu0 0
      %1651 = vmatpush1.bf16.msra.mxu0 0
      %1652 = vmatprep.subr.bf16.mxu0 0
      %1653 = vmatpush1.bf16.msra.mxu0 0
      %1654 = vmatprep.subr.bf16.mxu0 0
      %1655 = vmatpush1.bf16.msra.mxu0 0
      %1656 = vmatprep.subr.bf16.mxu0 0
      %1657 = vmatpush1.bf16.msra.mxu0 0
      %1658 = vmatprep.subr.bf16.mxu0 0
      %1659 = vmatpush1.bf16.msra.mxu0 0
      %1660 = vmatprep.subr.bf16.mxu0 0
      %1661 = vmatpush1.bf16.msra.mxu0 0
      %1662 = vmatprep.subr.bf16.mxu0 0
      %1663 = vmatpush1.bf16.msra.mxu0 0
      %1664 = vmatprep.subr.bf16.mxu0 0
      %1665 = vmatpush1.bf16.msra.mxu0 0
      %1666 = vmatprep.subr.bf16.mxu0 0
      %1667 = vmatpush1.bf16.msra.mxu0 0
      %1668 = vmatprep.mubr.bf16.mxu0 0
      %1669 = vmatmul.mubr.bf16.gmra.mrb[0].mxu0 %v1586
      %v1670 = vpop.f32.mrb[0].mxu0
      %v1671 = vadd.f32 %v1459, %v1670
      %v1672 = vpop.f32.mrb[0].mxu0
      %v1673 = vpop.f32.mrb[0].mxu0
      %v1674 = vadd.f32 %v1462, %v1673
      %v1675 = vpop.f32.mrb[0].mxu0
      %1676 = vmatprep.mubr.bf16.mxu0 0
      %1677 = vmatmul.mubr.bf16.gmra.mrb[0].mxu0 %v1589
      %v1678 = vpop.f32.mrb[0].mxu0
      %v1679 = vadd.f32 %v1467, %v1678
      %v1680 = vpop.f32.mrb[0].mxu0
      %v1681 = vpop.f32.mrb[0].mxu0
      %v1682 = vadd.f32 %v1470, %v1681
      %v1683 = vpop.f32.mrb[0].mxu0
      %1684 = vmatprep.mubr.bf16.mxu0 0
      %1685 = vmatmul.mubr.bf16.gmra.mrb[0].mxu0 %v1592
      %v1686 = vpop.f32.mrb[0].mxu0
      %v1687 = vadd.f32 %v1475, %v1686
      %v1688 = vpop.f32.mrb[0].mxu0
      %v1689 = vpop.f32.mrb[0].mxu0
      %v1690 = vadd.f32 %v1478, %v1689
      %v1691 = vpop.f32.mrb[0].mxu0
      %1692 = vmatprep.mubr.bf16.mxu0 0
      %1693 = vmatmul.mubr.bf16.gmra.mrb[0].mxu0 %v1595
      %v1694 = vpop.f32.mrb[0].mxu0
      %v1695 = vadd.f32 %v1483, %v1694
      %v1696 = vpop.f32.mrb[0].mxu0
      %v1697 = vpop.f32.mrb[0].mxu0
      %v1698 = vadd.f32 %v1486, %v1697
      %v1699 = vpop.f32.mrb[0].mxu0
      %1700 = vmatprep.mubr.bf16.mxu0 0
      %1701 = vmatmul.mubr.bf16.gmra.mrb[0].mxu0 %v1598
      %v1702 = vpop.f32.mrb[0].mxu0
      %v1703 = vadd.f32 %v1491, %v1702
      %v1704 = vpop.f32.mrb[0].mxu0
      %v1705 = vpop.f32.mrb[0].mxu0
      %v1706 = vadd.f32 %v1494, %v1705
      %v1707 = vpop.f32.mrb[0].mxu0
      %1708 = vmatprep.mubr.bf16.mxu0 0
      %1709 = vmatmul.mubr.bf16.gmra.mrb[0].mxu0 %v1601
      %v1710 = vpop.f32.mrb[0].mxu0
      %v1711 = vadd.f32 %v1499, %v1710
      %v1712 = vpop.f32.mrb[0].mxu0
      %v1713 = vpop.f32.mrb[0].mxu0
      %v1714 = vadd.f32 %v1502, %v1713
      %v1715 = vpop.f32.mrb[0].mxu0
      %1716 = vmatprep.mubr.bf16.mxu0 0
      %1717 = vmatmul.mubr.bf16.gmra.mrb[0].mxu0 %v1604
      %v1718 = vpop.f32.mrb[0].mxu0
      %v1719 = vadd.f32 %v1507, %v1718
      %v1720 = vpop.f32.mrb[0].mxu0
      %v1721 = vpop.f32.mrb[0].mxu0
      %v1722 = vadd.f32 %v1510, %v1721
      %v1723 = vpop.f32.mrb[0].mxu0
      %1724 = vmatprep.mubr.bf16.mxu0 0
      %1725 = vmatmul.mubr.bf16.gmra.mrb[0].mxu0 %v1607
      %v1726 = vpop.f32.mrb[0].mxu0
      %v1727 = vadd.f32 %v1515, %v1726
      %v1728 = vpop.f32.mrb[0].mxu0
      %v1729 = vpop.f32.mrb[0].mxu0
      %v1730 = vadd.f32 %v1518, %v1729
      %v1731 = vpop.f32.mrb[0].mxu0
      %1732 = vmatprep.mubr.bf16.mxu0 0
      %1733 = vmatmul.mubr.bf16.gmra.mrb[0].mxu0 %v1610
      %v1734 = vpop.f32.mrb[0].mxu0
      %v1735 = vadd.f32 %v1523, %v1734
      %v1736 = vpop.f32.mrb[0].mxu0
      %v1737 = vpop.f32.mrb[0].mxu0
      %v1738 = vadd.f32 %v1526, %v1737
      %v1739 = vpop.f32.mrb[0].mxu0
      %1740 = vmatprep.mubr.bf16.mxu0 0
      %1741 = vmatmul.mubr.bf16.gmra.mrb[0].mxu0 %v1613
      %v1742 = vpop.f32.mrb[0].mxu0
      %v1743 = vadd.f32 %v1531, %v1742
      %v1744 = vpop.f32.mrb[0].mxu0
      %v1745 = vpop.f32.mrb[0].mxu0
      %v1746 = vadd.f32 %v1534, %v1745
      %v1747 = vpop.f32.mrb[0].mxu0
      %1748 = vmatprep.mubr.bf16.mxu0 0
      %1749 = vmatmul.mubr.bf16.gmra.mrb[0].mxu0 %v1616
      %v1750 = vpop.f32.mrb[0].mxu0
      %v1751 = vadd.f32 %v1539, %v1750
      %v1752 = vpop.f32.mrb[0].mxu0
      %v1753 = vpop.f32.mrb[0].mxu0
      %v1754 = vadd.f32 %v1542, %v1753
      %v1755 = vpop.f32.mrb[0].mxu0
      %1756 = vmatprep.mubr.bf16.mxu0 0
      %1757 = vmatmul.mubr.bf16.gmra.mrb[0].mxu0 %v1619
      %v1758 = vpop.f32.mrb[0].mxu0
      %v1759 = vadd.f32 %v1547, %v1758
      %v1760 = vpop.f32.mrb[0].mxu0
      %v1761 = vpop.f32.mrb[0].mxu0
      %v1762 = vadd.f32 %v1550, %v1761
      %v1763 = vpop.f32.mrb[0].mxu0
      %1764 = vmatprep.mubr.bf16.mxu0 0
      %1765 = vmatmul.mubr.bf16.gmra.mrb[0].mxu0 %v1622
      %v1766 = vpop.f32.mrb[0].mxu0
      %v1767 = vadd.f32 %v1555, %v1766
      %v1768 = vpop.f32.mrb[0].mxu0
      %v1769 = vpop.f32.mrb[0].mxu0
      %v1770 = vadd.f32 %v1558, %v1769
      %v1771 = vpop.f32.mrb[0].mxu0
      %1772 = vmatprep.mubr.bf16.mxu0 0
      %1773 = vmatmul.mubr.bf16.gmra.mrb[0].mxu0 %v1625
      %v1774 = vpop.f32.mrb[0].mxu0
      %v1775 = vadd.f32 %v1563, %v1774
      %v1776 = vpop.f32.mrb[0].mxu0
      %v1777 = vpop.f32.mrb[0].mxu0
      %v1778 = vadd.f32 %v1566, %v1777
      %v1779 = vpop.f32.mrb[0].mxu0
      %1780 = vmatprep.mubr.bf16.mxu0 0
      %1781 = vmatmul.mubr.bf16.gmra.mrb[0].mxu0 %v1628
      %v1782 = vpop.f32.mrb[0].mxu0
      %v1783 = vadd.f32 %v1571, %v1782
      %v1784 = vpop.f32.mrb[0].mxu0
      %v1785 = vpop.f32.mrb[0].mxu0
      %v1786 = vadd.f32 %v1574, %v1785
      %v1787 = vpop.f32.mrb[0].mxu0
      %1788 = vmatprep.mubr.bf16.mxu0 0
      %1789 = vmatmul.mubr.bf16.gmra.mrb[0].mxu0 %v1631
      %v1790 = vpop.f32.mrb[0].mxu0
      %v1791 = vadd.f32 %v1579, %v1790
      %v1792 = vpop.f32.mrb[0].mxu0
      %v1793 = vpop.f32.mrb[0].mxu0
      %v1794 = vadd.f32 %v1582, %v1793
      %v1795 = vpop.f32.mrb[0].mxu0
      %1796 = vdwg.mxu0
      %vm1798 = vcmask 1046528
      %v1799 = vrot.slane 0.0, 1
      %v1800 = vsel %vm1798, %v1799, %v1799
      %v1801 = vrot.slane %v668, 1
      %v1802 = vsel %vm1798, %v1799, %v1801
      %v1803 = vrot.slane %v669, 1
      %v1804 = vsel %vm1798, %v1801, %v1803
      %v1805 = vrot.slane %v670, 1
      %v1806 = vsel %vm1798, %v1803, %v1805
      %v1807 = vrot.slane %v671, 1
      %v1808 = vsel %vm1798, %v1805, %v1807
      %v1809 = vrot.slane %v672, 1
      %v1810 = vsel %vm1798, %v1807, %v1809
      %v1811 = vrot.slane %v673, 1
      %v1812 = vsel %vm1798, %v1809, %v1811
      %v1813 = vrot.slane %v674, 1
      %v1814 = vsel %vm1798, %v1811, %v1813
      %v1815 = vrot.slane %v675, 1
      %v1816 = vsel %vm1798, %v1813, %v1815
      %v1817 = vrot.slane %v676, 1
      %v1818 = vsel %vm1798, %v1815, %v1817
      %v1819 = vrot.slane %v677, 1
      %v1820 = vsel %vm1798, %v1817, %v1819
      %v1821 = vrot.slane %v678, 1
      %v1822 = vsel %vm1798, %v1819, %v1821
      %v1823 = vrot.slane %v679, 1
      %v1824 = vsel %vm1798, %v1821, %v1823
      %v1825 = vrot.slane %v680, 1
      %v1826 = vsel %vm1798, %v1823, %v1825
      %v1827 = vrot.slane %v681, 1
      %v1828 = vsel %vm1798, %v1825, %v1827
      %v1829 = vrot.slane %v682, 1
      %v1830 = vsel %vm1798, %v1827, %v1829
      %v1831 = vrot.slane %v683, 1
      %v1832 = vsel %vm1798, %v1829, %v1831
      %v1833 = vrot.slane %v684, 1
      %v1834 = vsel %vm1798, %v1831, %v1833
      %v1835 = vrot.slane %v685, 1
      %v1836 = vsel %vm1798, %v1833, %v1835
      %v1837 = vrot.slane %v686, 1
      %v1838 = vsel %vm1798, %v1835, %v1837
      %v1839 = vrot.slane %v687, 1
      %v1840 = vsel %vm1798, %v1837, %v1839
      %v1841 = vrot.slane %v688, 1
      %v1842 = vsel %vm1798, %v1839, %v1841
      %v1843 = vrot.slane %v689, 1
      %v1844 = vsel %vm1798, %v1841, %v1843
      %v1845 = vrot.slane %v690, 1
      %v1846 = vsel %vm1798, %v1843, %v1845
      %v1847 = vrot.slane %v691, 1
      %v1848 = vsel %vm1798, %v1845, %v1847
      %v1849 = vrot.slane %v692, 1
      %v1850 = vsel %vm1798, %v1847, %v1849
      %v1851 = vrot.slane %v693, 1
      %v1852 = vsel %vm1798, %v1849, %v1851
      %v1853 = vrot.slane %v694, 1
      %v1854 = vsel %vm1798, %v1851, %v1853
      %v1855 = vrot.slane %v695, 1
      %v1856 = vsel %vm1798, %v1853, %v1855
      %v1857 = vrot.slane %v696, 1
      %v1858 = vsel %vm1798, %v1855, %v1857
      %v1859 = vrot.slane %v697, 1
      %v1860 = vsel %vm1798, %v1857, %v1859
      %v1861 = vrot.slane %v698, 1
      %v1862 = vsel %vm1798, %v1859, %v1861
      %v1895 = vsel %vm1149, %v1800, 0.0
      %v1896 = vsel %vm1150, %v1802, 0.0
      %v1897 = vsel %vm1151, %v1804, 0.0
      %v1898 = vsel %vm1152, %v1806, 0.0
      %v1899 = vsel %vm1153, %v1808, 0.0
      %v1900 = vsel %vm1154, %v1810, 0.0
      %v1901 = vsel %vm1155, %v1812, 0.0
      %v1902 = vsel %vm1156, %v1814, 0.0
      %v1903 = vsel %vm1157, %v1816, 0.0
      %v1904 = vsel %vm1158, %v1818, 0.0
      %v1905 = vsel %vm1159, %v1820, 0.0
      %v1906 = vsel %vm1160, %v1822, 0.0
      %v1907 = vsel %vm1161, %v1824, 0.0
      %v1908 = vsel %vm1162, %v1826, 0.0
      %v1909 = vsel %vm1163, %v1828, 0.0
      %v1910 = vsel %vm1164, %v1830, 0.0
      %v1911 = vsel %vm1165, %v1832, 0.0
      %v1912 = vsel %vm1166, %v1834, 0.0
      %v1913 = vsel %vm1167, %v1836, 0.0
      %v1914 = vsel %vm1168, %v1838, 0.0
      %v1915 = vsel %vm1169, %v1840, 0.0
      %v1916 = vsel %vm1170, %v1842, 0.0
      %v1917 = vsel %vm1171, %v1844, 0.0
      %v1918 = vsel %vm1172, %v1846, 0.0
      %v1919 = vsel %vm1173, %v1848, 0.0
      %v1920 = vsel %vm1174, %v1850, 0.0
      %v1921 = vsel %vm1175, %v1852, 0.0
      %v1922 = vsel %vm1176, %v1854, 0.0
      %v1923 = vsel %vm1177, %v1856, 0.0
      %v1924 = vsel %vm1178, %v1858, 0.0
      %v1925 = vsel %vm1179, %v1860, 0.0
      %v1926 = vsel %vm1180, %v1862, 0.0
      %v1927 = vpack.c.bf16 %v1896, %v1895
      %v1928 = vpack.c.bf16 %v1898, %v1897
      %v1929 = vpack.c.bf16 %v1900, %v1899
      %v1930 = vpack.c.bf16 %v1902, %v1901
      %v1931 = vpack.c.bf16 %v1904, %v1903
      %v1932 = vpack.c.bf16 %v1906, %v1905
      %v1933 = vpack.c.bf16 %v1908, %v1907
      %v1934 = vpack.c.bf16 %v1910, %v1909
      %v1935 = vpack.c.bf16 %v1912, %v1911
      %v1936 = vpack.c.bf16 %v1914, %v1913
      %v1937 = vpack.c.bf16 %v1916, %v1915
      %v1938 = vpack.c.bf16 %v1918, %v1917
      %v1939 = vpack.c.bf16 %v1920, %v1919
      %v1940 = vpack.c.bf16 %v1922, %v1921
      %v1941 = vpack.c.bf16 %v1924, %v1923
      %v1942 = vpack.c.bf16 %v1926, %v1925
      %s1943 = scalar_lea.vmem %s3, 4
      %v1944 = vld [vmem:[%s1943] sm:$0x3]
      %v1946 = vsel %vm454, %v1927, 0
      %v1949 = vsel %vm454, %v1928, 0
      %v1952 = vsel %vm454, %v1929, 0
      %v1955 = vsel %vm454, %v1930, 0
      %v1958 = vsel %vm454, %v1931, 0
      %v1961 = vsel %vm454, %v1932, 0
      %v1964 = vsel %vm454, %v1933, 0
      %v1967 = vsel %vm454, %v1934, 0
      %v1970 = vsel %vm454, %v1935, 0
      %v1973 = vsel %vm454, %v1936, 0
      %v1976 = vsel %vm454, %v1937, 0
      %v1979 = vsel %vm454, %v1938, 0
      %v1982 = vsel %vm454, %v1939, 0
      %v1985 = vsel %vm454, %v1940, 0
      %v1988 = vsel %vm454, %v1941, 0
      %v1991 = vsel %vm454, %v1942, 0
      %v1994 = vsel %vm503, %v1944, 0
      %1996 = vmatprep.subr.bf16.mxu0 0
      %1997 = vmatpush1.bf16.msra.mxu0 %v1994
      %1998 = vmatprep.subr.bf16.mxu0 0
      %1999 = vmatpush1.bf16.msra.mxu0 0
      %2000 = vmatprep.subr.bf16.mxu0 0
      %2001 = vmatpush1.bf16.msra.mxu0 0
      %2002 = vmatprep.subr.bf16.mxu0 0
      %2003 = vmatpush1.bf16.msra.mxu0 0
      %2004 = vmatprep.subr.bf16.mxu0 0
      %2005 = vmatpush1.bf16.msra.mxu0 0
      %2006 = vmatprep.subr.bf16.mxu0 0
      %2007 = vmatpush1.bf16.msra.mxu0 0
      %2008 = vmatprep.subr.bf16.mxu0 0
      %2009 = vmatpush1.bf16.msra.mxu0 0
      %2010 = vmatprep.subr.bf16.mxu0 0
      %2011 = vmatpush1.bf16.msra.mxu0 0
      %2012 = vmatprep.subr.bf16.mxu0 0
      %2013 = vmatpush1.bf16.msra.mxu0 0
      %2014 = vmatprep.subr.bf16.mxu0 0
      %2015 = vmatpush1.bf16.msra.mxu0 0
      %2016 = vmatprep.subr.bf16.mxu0 0
      %2017 = vmatpush1.bf16.msra.mxu0 0
      %2018 = vmatprep.subr.bf16.mxu0 0
      %2019 = vmatpush1.bf16.msra.mxu0 0
      %2020 = vmatprep.subr.bf16.mxu0 0
      %2021 = vmatpush1.bf16.msra.mxu0 0
      %2022 = vmatprep.subr.bf16.mxu0 0
      %2023 = vmatpush1.bf16.msra.mxu0 0
      %2024 = vmatprep.subr.bf16.mxu0 0
      %2025 = vmatpush1.bf16.msra.mxu0 0
      %2026 = vmatprep.subr.bf16.mxu0 0
      %2027 = vmatpush1.bf16.msra.mxu0 0
      %2028 = vmatprep.mubr.bf16.mxu0 0
      %2029 = vmatmul.mubr.bf16.gmra.mrb[0].mxu0 %v1946
      %v2030 = vpop.f32.mrb[0].mxu0
      %v2031 = vadd.f32 0.0, %v2030
      %v2032 = vpop.f32.mrb[0].mxu0
      %v2033 = vpop.f32.mrb[0].mxu0
      %v2034 = vadd.f32 0.0, %v2033
      %v2035 = vpop.f32.mrb[0].mxu0
      %2036 = vmatprep.mubr.bf16.mxu0 0
      %2037 = vmatmul.mubr.bf16.gmra.mrb[0].mxu0 %v1949
      %v2038 = vpop.f32.mrb[0].mxu0
      %v2039 = vadd.f32 0.0, %v2038
      %v2040 = vpop.f32.mrb[0].mxu0
      %v2041 = vpop.f32.mrb[0].mxu0
      %v2042 = vadd.f32 0.0, %v2041
      %v2043 = vpop.f32.mrb[0].mxu0
      %2044 = vmatprep.mubr.bf16.mxu0 0
      %2045 = vmatmul.mubr.bf16.gmra.mrb[0].mxu0 %v1952
      %v2046 = vpop.f32.mrb[0].mxu0
      %v2047 = vadd.f32 0.0, %v2046
      %v2048 = vpop.f32.mrb[0].mxu0
      %v2049 = vpop.f32.mrb[0].mxu0
      %v2050 = vadd.f32 0.0, %v2049
      %v2051 = vpop.f32.mrb[0].mxu0
      %2052 = vmatprep.mubr.bf16.mxu0 0
      %2053 = vmatmul.mubr.bf16.gmra.mrb[0].mxu0 %v1955
      %v2054 = vpop.f32.mrb[0].mxu0
      %v2055 = vadd.f32 0.0, %v2054
      %v2056 = vpop.f32.mrb[0].mxu0
      %v2057 = vpop.f32.mrb[0].mxu0
      %v2058 = vadd.f32 0.0, %v2057
      %v2059 = vpop.f32.mrb[0].mxu0
      %2060 = vmatprep.mubr.bf16.mxu0 0
      %2061 = vmatmul.mubr.bf16.gmra.mrb[0].mxu0 %v1958
      %v2062 = vpop.f32.mrb[0].mxu0
      %v2063 = vadd.f32 0.0, %v2062
      %v2064 = vpop.f32.mrb[0].mxu0
      %v2065 = vpop.f32.mrb[0].mxu0
      %v2066 = vadd.f32 0.0, %v2065
      %v2067 = vpop.f32.mrb[0].mxu0
      %2068 = vmatprep.mubr.bf16.mxu0 0
      %2069 = vmatmul.mubr.bf16.gmra.mrb[0].mxu0 %v1961
      %v2070 = vpop.f32.mrb[0].mxu0
      %v2071 = vadd.f32 0.0, %v2070
      %v2072 = vpop.f32.mrb[0].mxu0
      %v2073 = vpop.f32.mrb[0].mxu0
      %v2074 = vadd.f32 0.0, %v2073
      %v2075 = vpop.f32.mrb[0].mxu0
      %2076 = vmatprep.mubr.bf16.mxu0 0
      %2077 = vmatmul.mubr.bf16.gmra.mrb[0].mxu0 %v1964
      %v2078 = vpop.f32.mrb[0].mxu0
      %v2079 = vadd.f32 0.0, %v2078
      %v2080 = vpop.f32.mrb[0].mxu0
      %v2081 = vpop.f32.mrb[0].mxu0
      %v2082 = vadd.f32 0.0, %v2081
      %v2083 = vpop.f32.mrb[0].mxu0
      %2084 = vmatprep.mubr.bf16.mxu0 0
      %2085 = vmatmul.mubr.bf16.gmra.mrb[0].mxu0 %v1967
      %v2086 = vpop.f32.mrb[0].mxu0
      %v2087 = vadd.f32 0.0, %v2086
      %v2088 = vpop.f32.mrb[0].mxu0
      %v2089 = vpop.f32.mrb[0].mxu0
      %v2090 = vadd.f32 0.0, %v2089
      %v2091 = vpop.f32.mrb[0].mxu0
      %2092 = vmatprep.mubr.bf16.mxu0 0
      %2093 = vmatmul.mubr.bf16.gmra.mrb[0].mxu0 %v1970
      %v2094 = vpop.f32.mrb[0].mxu0
      %v2095 = vadd.f32 0.0, %v2094
      %v2096 = vpop.f32.mrb[0].mxu0
      %v2097 = vpop.f32.mrb[0].mxu0
      %v2098 = vadd.f32 0.0, %v2097
      %v2099 = vpop.f32.mrb[0].mxu0
      %2100 = vmatprep.mubr.bf16.mxu0 0
      %2101 = vmatmul.mubr.bf16.gmra.mrb[0].mxu0 %v1973
      %v2102 = vpop.f32.mrb[0].mxu0
      %v2103 = vadd.f32 0.0, %v2102
      %v2104 = vpop.f32.mrb[0].mxu0
      %v2105 = vpop.f32.mrb[0].mxu0
      %v2106 = vadd.f32 0.0, %v2105
      %v2107 = vpop.f32.mrb[0].mxu0
      %2108 = vmatprep.mubr.bf16.mxu0 0
      %2109 = vmatmul.mubr.bf16.gmra.mrb[0].mxu0 %v1976
      %v2110 = vpop.f32.mrb[0].mxu0
      %v2111 = vadd.f32 0.0, %v2110
      %v2112 = vpop.f32.mrb[0].mxu0
      %v2113 = vpop.f32.mrb[0].mxu0
      %v2114 = vadd.f32 0.0, %v2113
      %v2115 = vpop.f32.mrb[0].mxu0
      %2116 = vmatprep.mubr.bf16.mxu0 0
      %2117 = vmatmul.mubr.bf16.gmra.mrb[0].mxu0 %v1979
      %v2118 = vpop.f32.mrb[0].mxu0
      %v2119 = vadd.f32 0.0, %v2118
      %v2120 = vpop.f32.mrb[0].mxu0
      %v2121 = vpop.f32.mrb[0].mxu0
      %v2122 = vadd.f32 0.0, %v2121
      %v2123 = vpop.f32.mrb[0].mxu0
      %2124 = vmatprep.mubr.bf16.mxu0 0
      %2125 = vmatmul.mubr.bf16.gmra.mrb[0].mxu0 %v1982
      %v2126 = vpop.f32.mrb[0].mxu0
      %v2127 = vadd.f32 0.0, %v2126
      %v2128 = vpop.f32.mrb[0].mxu0
      %v2129 = vpop.f32.mrb[0].mxu0
      %v2130 = vadd.f32 0.0, %v2129
      %v2131 = vpop.f32.mrb[0].mxu0
      %2132 = vmatprep.mubr.bf16.mxu0 0
      %2133 = vmatmul.mubr.bf16.gmra.mrb[0].mxu0 %v1985
      %v2134 = vpop.f32.mrb[0].mxu0
      %v2135 = vadd.f32 0.0, %v2134
      %v2136 = vpop.f32.mrb[0].mxu0
      %v2137 = vpop.f32.mrb[0].mxu0
      %v2138 = vadd.f32 0.0, %v2137
      %v2139 = vpop.f32.mrb[0].mxu0
      %2140 = vmatprep.mubr.bf16.mxu0 0
      %2141 = vmatmul.mubr.bf16.gmra.mrb[0].mxu0 %v1988
      %v2142 = vpop.f32.mrb[0].mxu0
      %v2143 = vadd.f32 0.0, %v2142
      %v2144 = vpop.f32.mrb[0].mxu0
      %v2145 = vpop.f32.mrb[0].mxu0
      %v2146 = vadd.f32 0.0, %v2145
      %v2147 = vpop.f32.mrb[0].mxu0
      %2148 = vmatprep.mubr.bf16.mxu0 0
      %2149 = vmatmul.mubr.bf16.gmra.mrb[0].mxu0 %v1991
      %v2150 = vpop.f32.mrb[0].mxu0
      %v2151 = vadd.f32 0.0, %v2150
      %v2152 = vpop.f32.mrb[0].mxu0
      %v2153 = vpop.f32.mrb[0].mxu0
      %v2154 = vadd.f32 0.0, %v2153
      %v2155 = vpop.f32.mrb[0].mxu0
      %2156 = vdwg.mxu0
      %v2157 = vadd.f32 %v1671, %v2031
      %v2158 = vadd.f32 %v1674, %v2034
      %v2159 = vadd.f32 %v1679, %v2039
      %v2160 = vadd.f32 %v1682, %v2042
      %v2161 = vadd.f32 %v1687, %v2047
      %v2162 = vadd.f32 %v1690, %v2050
      %v2163 = vadd.f32 %v1695, %v2055
      %v2164 = vadd.f32 %v1698, %v2058
      %v2165 = vadd.f32 %v1703, %v2063
      %v2166 = vadd.f32 %v1706, %v2066
      %v2167 = vadd.f32 %v1711, %v2071
      %v2168 = vadd.f32 %v1714, %v2074
      %v2169 = vadd.f32 %v1719, %v2079
      %v2170 = vadd.f32 %v1722, %v2082
      %v2171 = vadd.f32 %v1727, %v2087
      %v2172 = vadd.f32 %v1730, %v2090
      %v2173 = vadd.f32 %v1735, %v2095
      %v2174 = vadd.f32 %v1738, %v2098
      %v2175 = vadd.f32 %v1743, %v2103
      %v2176 = vadd.f32 %v1746, %v2106
      %v2177 = vadd.f32 %v1751, %v2111
      %v2178 = vadd.f32 %v1754, %v2114
      %v2179 = vadd.f32 %v1759, %v2119
      %v2180 = vadd.f32 %v1762, %v2122
      %v2181 = vadd.f32 %v1767, %v2127
      %v2182 = vadd.f32 %v1770, %v2130
      %v2183 = vadd.f32 %v1775, %v2135
      %v2184 = vadd.f32 %v1778, %v2138
      %v2185 = vadd.f32 %v1783, %v2143
      %v2186 = vadd.f32 %v1786, %v2146
      %v2187 = vadd.f32 %v1791, %v2151
      %v2188 = vadd.f32 %v1794, %v2154
      %v2190 = vrot.slane %v698, 7
      %v2191 = vsel %vm1212, %v1273, %v2190
      %v2192 = vrot.slane %v699, 7
      %v2193 = vsel %vm1212, %v2190, %v2192
      %v2196 = vsel %vm1117, %v1216, 0.0
      %v2197 = vsel %vm1118, %v1218, 0.0
      %v2198 = vsel %vm1119, %v1220, 0.0
      %v2199 = vsel %vm1120, %v1222, 0.0
      %v2200 = vsel %vm1121, %v1224, 0.0
      %v2201 = vsel %vm1122, %v1226, 0.0
      %v2202 = vsel %vm1123, %v1228, 0.0
      %v2203 = vsel %vm1124, %v1230, 0.0
      %v2204 = vsel %vm1125, %v1232, 0.0
      %v2205 = vsel %vm1126, %v1234, 0.0
      %v2206 = vsel %vm1127, %v1236, 0.0
      %v2207 = vsel %vm1128, %v1238, 0.0
      %v2208 = vsel %vm1129, %v1240, 0.0
      %v2209 = vsel %vm1130, %v1242, 0.0
      %v2210 = vsel %vm1131, %v1244, 0.0
      %v2211 = vsel %vm1132, %v1246, 0.0
      %v2212 = vsel %vm1133, %v1248, 0.0
      %v2213 = vsel %vm1134, %v1250, 0.0
      %v2214 = vsel %vm1135, %v1252, 0.0
      %v2215 = vsel %vm1136, %v1254, 0.0
      %v2216 = vsel %vm1137, %v1256, 0.0
      %v2217 = vsel %vm1138, %v1258, 0.0
      %v2218 = vsel %vm1139, %v1260, 0.0
      %v2219 = vsel %vm1140, %v1262, 0.0
      %v2220 = vsel %vm1141, %v1264, 0.0
      %v2221 = vsel %vm1142, %v1266, 0.0
      %v2222 = vsel %vm1143, %v1268, 0.0
      %v2223 = vsel %vm1144, %v1270, 0.0
      %v2224 = vsel %vm1145, %v1272, 0.0
      %v2225 = vsel %vm1146, %v1274, 0.0
      %v2226 = vsel %vm1147, %v2191, 0.0
      %v2227 = vsel %vm1148, %v2193, 0.0
      %v2228 = vpack.c.bf16 %v2197, %v2196
      %v2229 = vpack.c.bf16 %v2199, %v2198
      %v2230 = vpack.c.bf16 %v2201, %v2200
      %v2231 = vpack.c.bf16 %v2203, %v2202
      %v2232 = vpack.c.bf16 %v2205, %v2204
      %v2233 = vpack.c.bf16 %v2207, %v2206
      %v2234 = vpack.c.bf16 %v2209, %v2208
      %v2235 = vpack.c.bf16 %v2211, %v2210
      %v2236 = vpack.c.bf16 %v2213, %v2212
      %v2237 = vpack.c.bf16 %v2215, %v2214
      %v2238 = vpack.c.bf16 %v2217, %v2216
      %v2239 = vpack.c.bf16 %v2219, %v2218
      %v2240 = vpack.c.bf16 %v2221, %v2220
      %v2241 = vpack.c.bf16 %v2223, %v2222
      %v2242 = vpack.c.bf16 %v2225, %v2224
      %v2243 = vpack.c.bf16 %v2227, %v2226
      %s2244 = scalar_lea.vmem %s3, 6
      %v2245 = vld [vmem:[%s2244] sm:$0x3]
      %v2247 = vsel %vm454, %v2228, 0
      %v2250 = vsel %vm454, %v2229, 0
      %v2253 = vsel %vm454, %v2230, 0
      %v2256 = vsel %vm454, %v2231, 0
      %v2259 = vsel %vm454, %v2232, 0
      %v2262 = vsel %vm454, %v2233, 0
      %v2265 = vsel %vm454, %v2234, 0
      %v2268 = vsel %vm454, %v2235, 0
      %v2271 = vsel %vm454, %v2236, 0
      %v2274 = vsel %vm454, %v2237, 0
      %v2277 = vsel %vm454, %v2238, 0
      %v2280 = vsel %vm454, %v2239, 0
      %v2283 = vsel %vm454, %v2240, 0
      %v2286 = vsel %vm454, %v2241, 0
      %v2289 = vsel %vm454, %v2242, 0
      %v2292 = vsel %vm454, %v2243, 0
      %v2295 = vsel %vm503, %v2245, 0
      %2297 = vmatprep.subr.bf16.mxu0 0
      %2298 = vmatpush1.bf16.msra.mxu0 %v2295
      %2299 = vmatprep.subr.bf16.mxu0 0
      %2300 = vmatpush1.bf16.msra.mxu0 0
      %2301 = vmatprep.subr.bf16.mxu0 0
      %2302 = vmatpush1.bf16.msra.mxu0 0
      %2303 = vmatprep.subr.bf16.mxu0 0
      %2304 = vmatpush1.bf16.msra.mxu0 0
      %2305 = vmatprep.subr.bf16.mxu0 0
      %2306 = vmatpush1.bf16.msra.mxu0 0
      %2307 = vmatprep.subr.bf16.mxu0 0
      %2308 = vmatpush1.bf16.msra.mxu0 0
      %2309 = vmatprep.subr.bf16.mxu0 0
      %2310 = vmatpush1.bf16.msra.mxu0 0
      %2311 = vmatprep.subr.bf16.mxu0 0
      %2312 = vmatpush1.bf16.msra.mxu0 0
      %2313 = vmatprep.subr.bf16.mxu0 0
      %2314 = vmatpush1.bf16.msra.mxu0 0
      %2315 = vmatprep.subr.bf16.mxu0 0
      %2316 = vmatpush1.bf16.msra.mxu0 0
      %2317 = vmatprep.subr.bf16.mxu0 0
      %2318 = vmatpush1.bf16.msra.mxu0 0
      %2319 = vmatprep.subr.bf16.mxu0 0
      %2320 = vmatpush1.bf16.msra.mxu0 0
      %2321 = vmatprep.subr.bf16.mxu0 0
      %2322 = vmatpush1.bf16.msra.mxu0 0
      %2323 = vmatprep.subr.bf16.mxu0 0
      %2324 = vmatpush1.bf16.msra.mxu0 0
      %2325 = vmatprep.subr.bf16.mxu0 0
      %2326 = vmatpush1.bf16.msra.mxu0 0
      %2327 = vmatprep.subr.bf16.mxu0 0
      %2328 = vmatpush1.bf16.msra.mxu0 0
      %2329 = vmatprep.mubr.bf16.mxu0 0
      %2330 = vmatmul.mubr.bf16.gmra.mrb[0].mxu0 %v2247
      %v2331 = vpop.f32.mrb[0].mxu0
      %v2332 = vadd.f32 0.0, %v2331
      %v2333 = vpop.f32.mrb[0].mxu0
      %v2334 = vpop.f32.mrb[0].mxu0
      %v2335 = vadd.f32 0.0, %v2334
      %v2336 = vpop.f32.mrb[0].mxu0
      %2337 = vmatprep.mubr.bf16.mxu0 0
      %2338 = vmatmul.mubr.bf16.gmra.mrb[0].mxu0 %v2250
      %v2339 = vpop.f32.mrb[0].mxu0
      %v2340 = vadd.f32 0.0, %v2339
      %v2341 = vpop.f32.mrb[0].mxu0
      %v2342 = vpop.f32.mrb[0].mxu0
      %v2343 = vadd.f32 0.0, %v2342
      %v2344 = vpop.f32.mrb[0].mxu0
      %2345 = vmatprep.mubr.bf16.mxu0 0
      %2346 = vmatmul.mubr.bf16.gmra.mrb[0].mxu0 %v2253
      %v2347 = vpop.f32.mrb[0].mxu0
      %v2348 = vadd.f32 0.0, %v2347
      %v2349 = vpop.f32.mrb[0].mxu0
      %v2350 = vpop.f32.mrb[0].mxu0
      %v2351 = vadd.f32 0.0, %v2350
      %v2352 = vpop.f32.mrb[0].mxu0
      %2353 = vmatprep.mubr.bf16.mxu0 0
      %2354 = vmatmul.mubr.bf16.gmra.mrb[0].mxu0 %v2256
      %v2355 = vpop.f32.mrb[0].mxu0
      %v2356 = vadd.f32 0.0, %v2355
      %v2357 = vpop.f32.mrb[0].mxu0
      %v2358 = vpop.f32.mrb[0].mxu0
      %v2359 = vadd.f32 0.0, %v2358
      %v2360 = vpop.f32.mrb[0].mxu0
      %2361 = vmatprep.mubr.bf16.mxu0 0
      %2362 = vmatmul.mubr.bf16.gmra.mrb[0].mxu0 %v2259
      %v2363 = vpop.f32.mrb[0].mxu0
      %v2364 = vadd.f32 0.0, %v2363
      %v2365 = vpop.f32.mrb[0].mxu0
      %v2366 = vpop.f32.mrb[0].mxu0
      %v2367 = vadd.f32 0.0, %v2366
      %v2368 = vpop.f32.mrb[0].mxu0
      %2369 = vmatprep.mubr.bf16.mxu0 0
      %2370 = vmatmul.mubr.bf16.gmra.mrb[0].mxu0 %v2262
      %v2371 = vpop.f32.mrb[0].mxu0
      %v2372 = vadd.f32 0.0, %v2371
      %v2373 = vpop.f32.mrb[0].mxu0
      %v2374 = vpop.f32.mrb[0].mxu0
      %v2375 = vadd.f32 0.0, %v2374
      %v2376 = vpop.f32.mrb[0].mxu0
      %2377 = vmatprep.mubr.bf16.mxu0 0
      %2378 = vmatmul.mubr.bf16.gmra.mrb[0].mxu0 %v2265
      %v2379 = vpop.f32.mrb[0].mxu0
      %v2380 = vadd.f32 0.0, %v2379
      %v2381 = vpop.f32.mrb[0].mxu0
      %v2382 = vpop.f32.mrb[0].mxu0
      %v2383 = vadd.f32 0.0, %v2382
      %v2384 = vpop.f32.mrb[0].mxu0
      %2385 = vmatprep.mubr.bf16.mxu0 0
      %2386 = vmatmul.mubr.bf16.gmra.mrb[0].mxu0 %v2268
      %v2387 = vpop.f32.mrb[0].mxu0
      %v2388 = vadd.f32 0.0, %v2387
      %v2389 = vpop.f32.mrb[0].mxu0
      %v2390 = vpop.f32.mrb[0].mxu0
      %v2391 = vadd.f32 0.0, %v2390
      %v2392 = vpop.f32.mrb[0].mxu0
      %2393 = vmatprep.mubr.bf16.mxu0 0
      %2394 = vmatmul.mubr.bf16.gmra.mrb[0].mxu0 %v2271
      %v2395 = vpop.f32.mrb[0].mxu0
      %v2396 = vadd.f32 0.0, %v2395
      %v2397 = vpop.f32.mrb[0].mxu0
      %v2398 = vpop.f32.mrb[0].mxu0
      %v2399 = vadd.f32 0.0, %v2398
      %v2400 = vpop.f32.mrb[0].mxu0
      %2401 = vmatprep.mubr.bf16.mxu0 0
      %2402 = vmatmul.mubr.bf16.gmra.mrb[0].mxu0 %v2274
      %v2403 = vpop.f32.mrb[0].mxu0
      %v2404 = vadd.f32 0.0, %v2403
      %v2405 = vpop.f32.mrb[0].mxu0
      %v2406 = vpop.f32.mrb[0].mxu0
      %v2407 = vadd.f32 0.0, %v2406
      %v2408 = vpop.f32.mrb[0].mxu0
      %2409 = vmatprep.mubr.bf16.mxu0 0
      %2410 = vmatmul.mubr.bf16.gmra.mrb[0].mxu0 %v2277
      %v2411 = vpop.f32.mrb[0].mxu0
      %v2412 = vadd.f32 0.0, %v2411
      %v2413 = vpop.f32.mrb[0].mxu0
      %v2414 = vpop.f32.mrb[0].mxu0
      %v2415 = vadd.f32 0.0, %v2414
      %v2416 = vpop.f32.mrb[0].mxu0
      %2417 = vmatprep.mubr.bf16.mxu0 0
      %2418 = vmatmul.mubr.bf16.gmra.mrb[0].mxu0 %v2280
      %v2419 = vpop.f32.mrb[0].mxu0
      %v2420 = vadd.f32 0.0, %v2419
      %v2421 = vpop.f32.mrb[0].mxu0
      %v2422 = vpop.f32.mrb[0].mxu0
      %v2423 = vadd.f32 0.0, %v2422
      %v2424 = vpop.f32.mrb[0].mxu0
      %2425 = vmatprep.mubr.bf16.mxu0 0
      %2426 = vmatmul.mubr.bf16.gmra.mrb[0].mxu0 %v2283
      %v2427 = vpop.f32.mrb[0].mxu0
      %v2428 = vadd.f32 0.0, %v2427
      %v2429 = vpop.f32.mrb[0].mxu0
      %v2430 = vpop.f32.mrb[0].mxu0
      %v2431 = vadd.f32 0.0, %v2430
      %v2432 = vpop.f32.mrb[0].mxu0
      %2433 = vmatprep.mubr.bf16.mxu0 0
      %2434 = vmatmul.mubr.bf16.gmra.mrb[0].mxu0 %v2286
      %v2435 = vpop.f32.mrb[0].mxu0
      %v2436 = vadd.f32 0.0, %v2435
      %v2437 = vpop.f32.mrb[0].mxu0
      %v2438 = vpop.f32.mrb[0].mxu0
      %v2439 = vadd.f32 0.0, %v2438
      %v2440 = vpop.f32.mrb[0].mxu0
      %2441 = vmatprep.mubr.bf16.mxu0 0
      %2442 = vmatmul.mubr.bf16.gmra.mrb[0].mxu0 %v2289
      %v2443 = vpop.f32.mrb[0].mxu0
      %v2444 = vadd.f32 0.0, %v2443
      %v2445 = vpop.f32.mrb[0].mxu0
      %v2446 = vpop.f32.mrb[0].mxu0
      %v2447 = vadd.f32 0.0, %v2446
      %v2448 = vpop.f32.mrb[0].mxu0
      %2449 = vmatprep.mubr.bf16.mxu0 0
      %2450 = vmatmul.mubr.bf16.gmra.mrb[0].mxu0 %v2292
      %v2451 = vpop.f32.mrb[0].mxu0
      %v2452 = vadd.f32 0.0, %v2451
      %v2453 = vpop.f32.mrb[0].mxu0
      %v2454 = vpop.f32.mrb[0].mxu0
      %v2455 = vadd.f32 0.0, %v2454
      %v2456 = vpop.f32.mrb[0].mxu0
      %2457 = vdwg.mxu0
      %v2458 = vadd.f32 %v2157, %v2332
      %v2459 = vadd.f32 %v2158, %v2335
      %v2460 = vadd.f32 %v2159, %v2340
      %v2461 = vadd.f32 %v2160, %v2343
      %v2462 = vadd.f32 %v2161, %v2348
      %v2463 = vadd.f32 %v2162, %v2351
      %v2464 = vadd.f32 %v2163, %v2356
      %v2465 = vadd.f32 %v2164, %v2359
      %v2466 = vadd.f32 %v2165, %v2364
      %v2467 = vadd.f32 %v2166, %v2367
      %v2468 = vadd.f32 %v2167, %v2372
      %v2469 = vadd.f32 %v2168, %v2375
      %v2470 = vadd.f32 %v2169, %v2380
      %v2471 = vadd.f32 %v2170, %v2383
      %v2472 = vadd.f32 %v2171, %v2388
      %v2473 = vadd.f32 %v2172, %v2391
      %v2474 = vadd.f32 %v2173, %v2396
      %v2475 = vadd.f32 %v2174, %v2399
      %v2476 = vadd.f32 %v2175, %v2404
      %v2477 = vadd.f32 %v2176, %v2407
      %v2478 = vadd.f32 %v2177, %v2412
      %v2479 = vadd.f32 %v2178, %v2415
      %v2480 = vadd.f32 %v2179, %v2420
      %v2481 = vadd.f32 %v2180, %v2423
      %v2482 = vadd.f32 %v2181, %v2428
      %v2483 = vadd.f32 %v2182, %v2431
      %v2484 = vadd.f32 %v2183, %v2436
      %v2485 = vadd.f32 %v2184, %v2439
      %v2486 = vadd.f32 %v2185, %v2444
      %v2487 = vadd.f32 %v2186, %v2447
      %v2488 = vadd.f32 %v2187, %v2452
      %v2489 = vadd.f32 %v2188, %v2455
      %v2490 = vpack.c.bf16 %v699, %v698
      %s2491 = scalar_lea.vmem %s3, 8
      %v2492 = vld [vmem:[%s2491] sm:$0x3]
      %v2494 = vsel %vm454, %v2490, 0
      %v2497 = vsel %vm503, %v2492, 0
      %2499 = vmatprep.subr.bf16.mxu0 0
      %2500 = vmatpush1.bf16.msra.mxu0 %v2497
      %2501 = vmatprep.subr.bf16.mxu0 0
      %2502 = vmatpush1.bf16.msra.mxu0 0
      %2503 = vmatprep.subr.bf16.mxu0 0
      %2504 = vmatpush1.bf16.msra.mxu0 0
      %2505 = vmatprep.subr.bf16.mxu0 0
      %2506 = vmatpush1.bf16.msra.mxu0 0
      %2507 = vmatprep.subr.bf16.mxu0 0
      %2508 = vmatpush1.bf16.msra.mxu0 0
      %2509 = vmatprep.subr.bf16.mxu0 0
      %2510 = vmatpush1.bf16.msra.mxu0 0
      %2511 = vmatprep.subr.bf16.mxu0 0
      %2512 = vmatpush1.bf16.msra.mxu0 0
      %2513 = vmatprep.subr.bf16.mxu0 0
      %2514 = vmatpush1.bf16.msra.mxu0 0
      %2515 = vmatprep.subr.bf16.mxu0 0
      %2516 = vmatpush1.bf16.msra.mxu0 0
      %2517 = vmatprep.subr.bf16.mxu0 0
      %2518 = vmatpush1.bf16.msra.mxu0 0
      %2519 = vmatprep.subr.bf16.mxu0 0
      %2520 = vmatpush1.bf16.msra.mxu0 0
      %2521 = vmatprep.subr.bf16.mxu0 0
      %2522 = vmatpush1.bf16.msra.mxu0 0
      %2523 = vmatprep.subr.bf16.mxu0 0
      %2524 = vmatpush1.bf16.msra.mxu0 0
      %2525 = vmatprep.subr.bf16.mxu0 0
      %2526 = vmatpush1.bf16.msra.mxu0 0
      %2527 = vmatprep.subr.bf16.mxu0 0
      %2528 = vmatpush1.bf16.msra.mxu0 0
      %2529 = vmatprep.subr.bf16.mxu0 0
      %2530 = vmatpush1.bf16.msra.mxu0 0
      %2531 = vmatprep.mubr.bf16.mxu0 0
      %2532 = vmatmul.mubr.bf16.gmra.mrb[0].mxu0 %v1377
      %v2533 = vpop.f32.mrb[0].mxu0
      %v2534 = vadd.f32 0.0, %v2533
      %v2535 = vpop.f32.mrb[0].mxu0
      %v2536 = vpop.f32.mrb[0].mxu0
      %v2537 = vadd.f32 0.0, %v2536
      %v2538 = vpop.f32.mrb[0].mxu0
      %2539 = vmatprep.mubr.bf16.mxu0 0
      %2540 = vmatmul.mubr.bf16.gmra.mrb[0].mxu0 %v1380
      %v2541 = vpop.f32.mrb[0].mxu0
      %v2542 = vadd.f32 0.0, %v2541
      %v2543 = vpop.f32.mrb[0].mxu0
      %v2544 = vpop.f32.mrb[0].mxu0
      %v2545 = vadd.f32 0.0, %v2544
      %v2546 = vpop.f32.mrb[0].mxu0
      %2547 = vmatprep.mubr.bf16.mxu0 0
      %2548 = vmatmul.mubr.bf16.gmra.mrb[0].mxu0 %v1383
      %v2549 = vpop.f32.mrb[0].mxu0
      %v2550 = vadd.f32 0.0, %v2549
      %v2551 = vpop.f32.mrb[0].mxu0
      %v2552 = vpop.f32.mrb[0].mxu0
      %v2553 = vadd.f32 0.0, %v2552
      %v2554 = vpop.f32.mrb[0].mxu0
      %2555 = vmatprep.mubr.bf16.mxu0 0
      %2556 = vmatmul.mubr.bf16.gmra.mrb[0].mxu0 %v1386
      %v2557 = vpop.f32.mrb[0].mxu0
      %v2558 = vadd.f32 0.0, %v2557
      %v2559 = vpop.f32.mrb[0].mxu0
      %v2560 = vpop.f32.mrb[0].mxu0
      %v2561 = vadd.f32 0.0, %v2560
      %v2562 = vpop.f32.mrb[0].mxu0
      %2563 = vmatprep.mubr.bf16.mxu0 0
      %2564 = vmatmul.mubr.bf16.gmra.mrb[0].mxu0 %v1389
      %v2565 = vpop.f32.mrb[0].mxu0
      %v2566 = vadd.f32 0.0, %v2565
      %v2567 = vpop.f32.mrb[0].mxu0
      %v2568 = vpop.f32.mrb[0].mxu0
      %v2569 = vadd.f32 0.0, %v2568
      %v2570 = vpop.f32.mrb[0].mxu0
      %2571 = vmatprep.mubr.bf16.mxu0 0
      %2572 = vmatmul.mubr.bf16.gmra.mrb[0].mxu0 %v1392
      %v2573 = vpop.f32.mrb[0].mxu0
      %v2574 = vadd.f32 0.0, %v2573
      %v2575 = vpop.f32.mrb[0].mxu0
      %v2576 = vpop.f32.mrb[0].mxu0
      %v2577 = vadd.f32 0.0, %v2576
      %v2578 = vpop.f32.mrb[0].mxu0
      %2579 = vmatprep.mubr.bf16.mxu0 0
      %2580 = vmatmul.mubr.bf16.gmra.mrb[0].mxu0 %v1395
      %v2581 = vpop.f32.mrb[0].mxu0
      %v2582 = vadd.f32 0.0, %v2581
      %v2583 = vpop.f32.mrb[0].mxu0
      %v2584 = vpop.f32.mrb[0].mxu0
      %v2585 = vadd.f32 0.0, %v2584
      %v2586 = vpop.f32.mrb[0].mxu0
      %2587 = vmatprep.mubr.bf16.mxu0 0
      %2588 = vmatmul.mubr.bf16.gmra.mrb[0].mxu0 %v1398
      %v2589 = vpop.f32.mrb[0].mxu0
      %v2590 = vadd.f32 0.0, %v2589
      %v2591 = vpop.f32.mrb[0].mxu0
      %v2592 = vpop.f32.mrb[0].mxu0
      %v2593 = vadd.f32 0.0, %v2592
      %v2594 = vpop.f32.mrb[0].mxu0
      %2595 = vmatprep.mubr.bf16.mxu0 0
      %2596 = vmatmul.mubr.bf16.gmra.mrb[0].mxu0 %v1401
      %v2597 = vpop.f32.mrb[0].mxu0
      %v2598 = vadd.f32 0.0, %v2597
      %v2599 = vpop.f32.mrb[0].mxu0
      %v2600 = vpop.f32.mrb[0].mxu0
      %v2601 = vadd.f32 0.0, %v2600
      %v2602 = vpop.f32.mrb[0].mxu0
      %2603 = vmatprep.mubr.bf16.mxu0 0
      %2604 = vmatmul.mubr.bf16.gmra.mrb[0].mxu0 %v1404
      %v2605 = vpop.f32.mrb[0].mxu0
      %v2606 = vadd.f32 0.0, %v2605
      %v2607 = vpop.f32.mrb[0].mxu0
      %v2608 = vpop.f32.mrb[0].mxu0
      %v2609 = vadd.f32 0.0, %v2608
      %v2610 = vpop.f32.mrb[0].mxu0
      %2611 = vmatprep.mubr.bf16.mxu0 0
      %2612 = vmatmul.mubr.bf16.gmra.mrb[0].mxu0 %v1407
      %v2613 = vpop.f32.mrb[0].mxu0
      %v2614 = vadd.f32 0.0, %v2613
      %v2615 = vpop.f32.mrb[0].mxu0
      %v2616 = vpop.f32.mrb[0].mxu0
      %v2617 = vadd.f32 0.0, %v2616
      %v2618 = vpop.f32.mrb[0].mxu0
      %2619 = vmatprep.mubr.bf16.mxu0 0
      %2620 = vmatmul.mubr.bf16.gmra.mrb[0].mxu0 %v1410
      %v2621 = vpop.f32.mrb[0].mxu0
      %v2622 = vadd.f32 0.0, %v2621
      %v2623 = vpop.f32.mrb[0].mxu0
      %v2624 = vpop.f32.mrb[0].mxu0
      %v2625 = vadd.f32 0.0, %v2624
      %v2626 = vpop.f32.mrb[0].mxu0
      %2627 = vmatprep.mubr.bf16.mxu0 0
      %2628 = vmatmul.mubr.bf16.gmra.mrb[0].mxu0 %v1413
      %v2629 = vpop.f32.mrb[0].mxu0
      %v2630 = vadd.f32 0.0, %v2629
      %v2631 = vpop.f32.mrb[0].mxu0
      %v2632 = vpop.f32.mrb[0].mxu0
      %v2633 = vadd.f32 0.0, %v2632
      %v2634 = vpop.f32.mrb[0].mxu0
      %2635 = vmatprep.mubr.bf16.mxu0 0
      %2636 = vmatmul.mubr.bf16.gmra.mrb[0].mxu0 %v1416
      %v2637 = vpop.f32.mrb[0].mxu0
      %v2638 = vadd.f32 0.0, %v2637
      %v2639 = vpop.f32.mrb[0].mxu0
      %v2640 = vpop.f32.mrb[0].mxu0
      %v2641 = vadd.f32 0.0, %v2640
      %v2642 = vpop.f32.mrb[0].mxu0
      %2643 = vmatprep.mubr.bf16.mxu0 0
      %2644 = vmatmul.mubr.bf16.gmra.mrb[0].mxu0 %v1419
      %v2645 = vpop.f32.mrb[0].mxu0
      %v2646 = vadd.f32 0.0, %v2645
      %v2647 = vpop.f32.mrb[0].mxu0
      %v2648 = vpop.f32.mrb[0].mxu0
      %v2649 = vadd.f32 0.0, %v2648
      %v2650 = vpop.f32.mrb[0].mxu0
      %2651 = vmatprep.mubr.bf16.mxu0 0
      %2652 = vmatmul.mubr.bf16.gmra.mrb[0].mxu0 %v2494
      %v2653 = vpop.f32.mrb[0].mxu0
      %v2654 = vadd.f32 0.0, %v2653
      %v2655 = vpop.f32.mrb[0].mxu0
      %v2656 = vpop.f32.mrb[0].mxu0
      %v2657 = vadd.f32 0.0, %v2656
      %v2658 = vpop.f32.mrb[0].mxu0
      %2659 = vdwg.mxu0
      %v2660 = vadd.f32 %v2458, %v2534
      %v2661 = vadd.f32 %v2459, %v2537
      %v2662 = vadd.f32 %v2460, %v2542
      %v2663 = vadd.f32 %v2461, %v2545
      %v2664 = vadd.f32 %v2462, %v2550
      %v2665 = vadd.f32 %v2463, %v2553
      %v2666 = vadd.f32 %v2464, %v2558
      %v2667 = vadd.f32 %v2465, %v2561
      %v2668 = vadd.f32 %v2466, %v2566
      %v2669 = vadd.f32 %v2467, %v2569
      %v2670 = vadd.f32 %v2468, %v2574
      %v2671 = vadd.f32 %v2469, %v2577
      %v2672 = vadd.f32 %v2470, %v2582
      %v2673 = vadd.f32 %v2471, %v2585
      %v2674 = vadd.f32 %v2472, %v2590
      %v2675 = vadd.f32 %v2473, %v2593
      %v2676 = vadd.f32 %v2474, %v2598
      %v2677 = vadd.f32 %v2475, %v2601
      %v2678 = vadd.f32 %v2476, %v2606
      %v2679 = vadd.f32 %v2477, %v2609
      %v2680 = vadd.f32 %v2478, %v2614
      %v2681 = vadd.f32 %v2479, %v2617
      %v2682 = vadd.f32 %v2480, %v2622
      %v2683 = vadd.f32 %v2481, %v2625
      %v2684 = vadd.f32 %v2482, %v2630
      %v2685 = vadd.f32 %v2483, %v2633
      %v2686 = vadd.f32 %v2484, %v2638
      %v2687 = vadd.f32 %v2485, %v2641
      %v2688 = vadd.f32 %v2486, %v2646
      %v2689 = vadd.f32 %v2487, %v2649
      %v2690 = vadd.f32 %v2488, %v2654
      %v2691 = vadd.f32 %v2489, %v2657
      %v2692 = vrot.slane %v699, 1
      %v2693 = vsel %vm1798, %v1861, %v2692
      %v2694 = vsel %vm1798, %v2692, %v1799
      %v2697 = vsel %vm1149, %v1804, 0.0
      %v2698 = vsel %vm1150, %v1806, 0.0
      %v2699 = vsel %vm1151, %v1808, 0.0
      %v2700 = vsel %vm1152, %v1810, 0.0
      %v2701 = vsel %vm1153, %v1812, 0.0
      %v2702 = vsel %vm1154, %v1814, 0.0
      %v2703 = vsel %vm1155, %v1816, 0.0
      %v2704 = vsel %vm1156, %v1818, 0.0
      %v2705 = vsel %vm1157, %v1820, 0.0
      %v2706 = vsel %vm1158, %v1822, 0.0
      %v2707 = vsel %vm1159, %v1824, 0.0
      %v2708 = vsel %vm1160, %v1826, 0.0
      %v2709 = vsel %vm1161, %v1828, 0.0
      %v2710 = vsel %vm1162, %v1830, 0.0
      %v2711 = vsel %vm1163, %v1832, 0.0
      %v2712 = vsel %vm1164, %v1834, 0.0
      %v2713 = vsel %vm1165, %v1836, 0.0
      %v2714 = vsel %vm1166, %v1838, 0.0
      %v2715 = vsel %vm1167, %v1840, 0.0
      %v2716 = vsel %vm1168, %v1842, 0.0
      %v2717 = vsel %vm1169, %v1844, 0.0
      %v2718 = vsel %vm1170, %v1846, 0.0
      %v2719 = vsel %vm1171, %v1848, 0.0
      %v2720 = vsel %vm1172, %v1850, 0.0
      %v2721 = vsel %vm1173, %v1852, 0.0
      %v2722 = vsel %vm1174, %v1854, 0.0
      %v2723 = vsel %vm1175, %v1856, 0.0
      %v2724 = vsel %vm1176, %v1858, 0.0
      %v2725 = vsel %vm1177, %v1860, 0.0
      %v2726 = vsel %vm1178, %v1862, 0.0
      %v2727 = vsel %vm1179, %v2693, 0.0
      %v2728 = vsel %vm1180, %v2694, 0.0
      %v2729 = vpack.c.bf16 %v2698, %v2697
      %v2730 = vpack.c.bf16 %v2700, %v2699
      %v2731 = vpack.c.bf16 %v2702, %v2701
      %v2732 = vpack.c.bf16 %v2704, %v2703
      %v2733 = vpack.c.bf16 %v2706, %v2705
      %v2734 = vpack.c.bf16 %v2708, %v2707
      %v2735 = vpack.c.bf16 %v2710, %v2709
      %v2736 = vpack.c.bf16 %v2712, %v2711
      %v2737 = vpack.c.bf16 %v2714, %v2713
      %v2738 = vpack.c.bf16 %v2716, %v2715
      %v2739 = vpack.c.bf16 %v2718, %v2717
      %v2740 = vpack.c.bf16 %v2720, %v2719
      %v2741 = vpack.c.bf16 %v2722, %v2721
      %v2742 = vpack.c.bf16 %v2724, %v2723
      %v2743 = vpack.c.bf16 %v2726, %v2725
      %v2744 = vpack.c.bf16 %v2728, %v2727
      %s2745 = scalar_lea.vmem %s3, 10
      %v2746 = vld [vmem:[%s2745] sm:$0x3]
      %v2748 = vsel %vm454, %v2729, 0
      %v2751 = vsel %vm454, %v2730, 0
      %v2754 = vsel %vm454, %v2731, 0
      %v2757 = vsel %vm454, %v2732, 0
      %v2760 = vsel %vm454, %v2733, 0
      %v2763 = vsel %vm454, %v2734, 0
      %v2766 = vsel %vm454, %v2735, 0
      %v2769 = vsel %vm454, %v2736, 0
      %v2772 = vsel %vm454, %v2737, 0
      %v2775 = vsel %vm454, %v2738, 0
      %v2778 = vsel %vm454, %v2739, 0
      %v2781 = vsel %vm454, %v2740, 0
      %v2784 = vsel %vm454, %v2741, 0
      %v2787 = vsel %vm454, %v2742, 0
      %v2790 = vsel %vm454, %v2743, 0
      %v2793 = vsel %vm454, %v2744, 0
      %v2796 = vsel %vm503, %v2746, 0
      %2798 = vmatprep.subr.bf16.mxu0 0
      %2799 = vmatpush1.bf16.msra.mxu0 %v2796
      %2800 = vmatprep.subr.bf16.mxu0 0
      %2801 = vmatpush1.bf16.msra.mxu0 0
      %2802 = vmatprep.subr.bf16.mxu0 0
      %2803 = vmatpush1.bf16.msra.mxu0 0
      %2804 = vmatprep.subr.bf16.mxu0 0
      %2805 = vmatpush1.bf16.msra.mxu0 0
      %2806 = vmatprep.subr.bf16.mxu0 0
      %2807 = vmatpush1.bf16.msra.mxu0 0
      %2808 = vmatprep.subr.bf16.mxu0 0
      %2809 = vmatpush1.bf16.msra.mxu0 0
      %2810 = vmatprep.subr.bf16.mxu0 0
      %2811 = vmatpush1.bf16.msra.mxu0 0
      %2812 = vmatprep.subr.bf16.mxu0 0
      %2813 = vmatpush1.bf16.msra.mxu0 0
      %2814 = vmatprep.subr.bf16.mxu0 0
      %2815 = vmatpush1.bf16.msra.mxu0 0
      %2816 = vmatprep.subr.bf16.mxu0 0
      %2817 = vmatpush1.bf16.msra.mxu0 0
      %2818 = vmatprep.subr.bf16.mxu0 0
      %2819 = vmatpush1.bf16.msra.mxu0 0
      %2820 = vmatprep.subr.bf16.mxu0 0
      %2821 = vmatpush1.bf16.msra.mxu0 0
      %2822 = vmatprep.subr.bf16.mxu0 0
      %2823 = vmatpush1.bf16.msra.mxu0 0
      %2824 = vmatprep.subr.bf16.mxu0 0
      %2825 = vmatpush1.bf16.msra.mxu0 0
      %2826 = vmatprep.subr.bf16.mxu0 0
      %2827 = vmatpush1.bf16.msra.mxu0 0
      %2828 = vmatprep.subr.bf16.mxu0 0
      %2829 = vmatpush1.bf16.msra.mxu0 0
      %2830 = vmatprep.mubr.bf16.mxu0 0
      %2831 = vmatmul.mubr.bf16.gmra.mrb[0].mxu0 %v2748
      %v2832 = vpop.f32.mrb[0].mxu0
      %v2833 = vadd.f32 0.0, %v2832
      %v2834 = vpop.f32.mrb[0].mxu0
      %v2835 = vpop.f32.mrb[0].mxu0
      %v2836 = vadd.f32 0.0, %v2835
      %v2837 = vpop.f32.mrb[0].mxu0
      %2838 = vmatprep.mubr.bf16.mxu0 0
      %2839 = vmatmul.mubr.bf16.gmra.mrb[0].mxu0 %v2751
      %v2840 = vpop.f32.mrb[0].mxu0
      %v2841 = vadd.f32 0.0, %v2840
      %v2842 = vpop.f32.mrb[0].mxu0
      %v2843 = vpop.f32.mrb[0].mxu0
      %v2844 = vadd.f32 0.0, %v2843
      %v2845 = vpop.f32.mrb[0].mxu0
      %2846 = vmatprep.mubr.bf16.mxu0 0
      %2847 = vmatmul.mubr.bf16.gmra.mrb[0].mxu0 %v2754
      %v2848 = vpop.f32.mrb[0].mxu0
      %v2849 = vadd.f32 0.0, %v2848
      %v2850 = vpop.f32.mrb[0].mxu0
      %v2851 = vpop.f32.mrb[0].mxu0
      %v2852 = vadd.f32 0.0, %v2851
      %v2853 = vpop.f32.mrb[0].mxu0
      %2854 = vmatprep.mubr.bf16.mxu0 0
      %2855 = vmatmul.mubr.bf16.gmra.mrb[0].mxu0 %v2757
      %v2856 = vpop.f32.mrb[0].mxu0
      %v2857 = vadd.f32 0.0, %v2856
      %v2858 = vpop.f32.mrb[0].mxu0
      %v2859 = vpop.f32.mrb[0].mxu0
      %v2860 = vadd.f32 0.0, %v2859
      %v2861 = vpop.f32.mrb[0].mxu0
      %2862 = vmatprep.mubr.bf16.mxu0 0
      %2863 = vmatmul.mubr.bf16.gmra.mrb[0].mxu0 %v2760
      %v2864 = vpop.f32.mrb[0].mxu0
      %v2865 = vadd.f32 0.0, %v2864
      %v2866 = vpop.f32.mrb[0].mxu0
      %v2867 = vpop.f32.mrb[0].mxu0
      %v2868 = vadd.f32 0.0, %v2867
      %v2869 = vpop.f32.mrb[0].mxu0
      %2870 = vmatprep.mubr.bf16.mxu0 0
      %2871 = vmatmul.mubr.bf16.gmra.mrb[0].mxu0 %v2763
      %v2872 = vpop.f32.mrb[0].mxu0
      %v2873 = vadd.f32 0.0, %v2872
      %v2874 = vpop.f32.mrb[0].mxu0
      %v2875 = vpop.f32.mrb[0].mxu0
      %v2876 = vadd.f32 0.0, %v2875
      %v2877 = vpop.f32.mrb[0].mxu0
      %2878 = vmatprep.mubr.bf16.mxu0 0
      %2879 = vmatmul.mubr.bf16.gmra.mrb[0].mxu0 %v2766
      %v2880 = vpop.f32.mrb[0].mxu0
      %v2881 = vadd.f32 0.0, %v2880
      %v2882 = vpop.f32.mrb[0].mxu0
      %v2883 = vpop.f32.mrb[0].mxu0
      %v2884 = vadd.f32 0.0, %v2883
      %v2885 = vpop.f32.mrb[0].mxu0
      %2886 = vmatprep.mubr.bf16.mxu0 0
      %2887 = vmatmul.mubr.bf16.gmra.mrb[0].mxu0 %v2769
      %v2888 = vpop.f32.mrb[0].mxu0
      %v2889 = vadd.f32 0.0, %v2888
      %v2890 = vpop.f32.mrb[0].mxu0
      %v2891 = vpop.f32.mrb[0].mxu0
      %v2892 = vadd.f32 0.0, %v2891
      %v2893 = vpop.f32.mrb[0].mxu0
      %2894 = vmatprep.mubr.bf16.mxu0 0
      %2895 = vmatmul.mubr.bf16.gmra.mrb[0].mxu0 %v2772
      %v2896 = vpop.f32.mrb[0].mxu0
      %v2897 = vadd.f32 0.0, %v2896
      %v2898 = vpop.f32.mrb[0].mxu0
      %v2899 = vpop.f32.mrb[0].mxu0
      %v2900 = vadd.f32 0.0, %v2899
      %v2901 = vpop.f32.mrb[0].mxu0
      %2902 = vmatprep.mubr.bf16.mxu0 0
      %2903 = vmatmul.mubr.bf16.gmra.mrb[0].mxu0 %v2775
      %v2904 = vpop.f32.mrb[0].mxu0
      %v2905 = vadd.f32 0.0, %v2904
      %v2906 = vpop.f32.mrb[0].mxu0
      %v2907 = vpop.f32.mrb[0].mxu0
      %v2908 = vadd.f32 0.0, %v2907
      %v2909 = vpop.f32.mrb[0].mxu0
      %2910 = vmatprep.mubr.bf16.mxu0 0
      %2911 = vmatmul.mubr.bf16.gmra.mrb[0].mxu0 %v2778
      %v2912 = vpop.f32.mrb[0].mxu0
      %v2913 = vadd.f32 0.0, %v2912
      %v2914 = vpop.f32.mrb[0].mxu0
      %v2915 = vpop.f32.mrb[0].mxu0
      %v2916 = vadd.f32 0.0, %v2915
      %v2917 = vpop.f32.mrb[0].mxu0
      %2918 = vmatprep.mubr.bf16.mxu0 0
      %2919 = vmatmul.mubr.bf16.gmra.mrb[0].mxu0 %v2781
      %v2920 = vpop.f32.mrb[0].mxu0
      %v2921 = vadd.f32 0.0, %v2920
      %v2922 = vpop.f32.mrb[0].mxu0
      %v2923 = vpop.f32.mrb[0].mxu0
      %v2924 = vadd.f32 0.0, %v2923
      %v2925 = vpop.f32.mrb[0].mxu0
      %2926 = vmatprep.mubr.bf16.mxu0 0
      %2927 = vmatmul.mubr.bf16.gmra.mrb[0].mxu0 %v2784
      %v2928 = vpop.f32.mrb[0].mxu0
      %v2929 = vadd.f32 0.0, %v2928
      %v2930 = vpop.f32.mrb[0].mxu0
      %v2931 = vpop.f32.mrb[0].mxu0
      %v2932 = vadd.f32 0.0, %v2931
      %v2933 = vpop.f32.mrb[0].mxu0
      %2934 = vmatprep.mubr.bf16.mxu0 0
      %2935 = vmatmul.mubr.bf16.gmra.mrb[0].mxu0 %v2787
      %v2936 = vpop.f32.mrb[0].mxu0
      %v2937 = vadd.f32 0.0, %v2936
      %v2938 = vpop.f32.mrb[0].mxu0
      %v2939 = vpop.f32.mrb[0].mxu0
      %v2940 = vadd.f32 0.0, %v2939
      %v2941 = vpop.f32.mrb[0].mxu0
      %2942 = vmatprep.mubr.bf16.mxu0 0
      %2943 = vmatmul.mubr.bf16.gmra.mrb[0].mxu0 %v2790
      %v2944 = vpop.f32.mrb[0].mxu0
      %v2945 = vadd.f32 0.0, %v2944
      %v2946 = vpop.f32.mrb[0].mxu0
      %v2947 = vpop.f32.mrb[0].mxu0
      %v2948 = vadd.f32 0.0, %v2947
      %v2949 = vpop.f32.mrb[0].mxu0
      %2950 = vmatprep.mubr.bf16.mxu0 0
      %2951 = vmatmul.mubr.bf16.gmra.mrb[0].mxu0 %v2793
      %v2952 = vpop.f32.mrb[0].mxu0
      %v2953 = vadd.f32 0.0, %v2952
      %v2954 = vpop.f32.mrb[0].mxu0
      %v2955 = vpop.f32.mrb[0].mxu0
      %v2956 = vadd.f32 0.0, %v2955
      %v2957 = vpop.f32.mrb[0].mxu0
      %2958 = vdwg.mxu0
      %v2959 = vadd.f32 %v2660, %v2833
      %v2960 = vadd.f32 %v2661, %v2836
      %v2961 = vadd.f32 %v2662, %v2841
      %v2962 = vadd.f32 %v2663, %v2844
      %v2963 = vadd.f32 %v2664, %v2849
      %v2964 = vadd.f32 %v2665, %v2852
      %v2965 = vadd.f32 %v2666, %v2857
      %v2966 = vadd.f32 %v2667, %v2860
      %v2967 = vadd.f32 %v2668, %v2865
      %v2968 = vadd.f32 %v2669, %v2868
      %v2969 = vadd.f32 %v2670, %v2873
      %v2970 = vadd.f32 %v2671, %v2876
      %v2971 = vadd.f32 %v2672, %v2881
      %v2972 = vadd.f32 %v2673, %v2884
      %v2973 = vadd.f32 %v2674, %v2889
      %v2974 = vadd.f32 %v2675, %v2892
      %v2975 = vadd.f32 %v2676, %v2897
      %v2976 = vadd.f32 %v2677, %v2900
      %v2977 = vadd.f32 %v2678, %v2905
      %v2978 = vadd.f32 %v2679, %v2908
      %v2979 = vadd.f32 %v2680, %v2913
      %v2980 = vadd.f32 %v2681, %v2916
      %v2981 = vadd.f32 %v2682, %v2921
      %v2982 = vadd.f32 %v2683, %v2924
      %v2983 = vadd.f32 %v2684, %v2929
      %v2984 = vadd.f32 %v2685, %v2932
      %v2985 = vadd.f32 %v2686, %v2937
      %v2986 = vadd.f32 %v2687, %v2940
      %v2987 = vadd.f32 %v2688, %v2945
      %v2988 = vadd.f32 %v2689, %v2948
      %v2989 = vadd.f32 %v2690, %v2953
      %v2990 = vadd.f32 %v2691, %v2956
      %v2991 = vsel %vm1212, %v2192, %v1213
      %v2993 = vsel %vm1117, %v1220, 0.0
      %v2994 = vsel %vm1118, %v1222, 0.0
      %v2995 = vsel %vm1119, %v1224, 0.0
      %v2996 = vsel %vm1120, %v1226, 0.0
      %v2997 = vsel %vm1121, %v1228, 0.0
      %v2998 = vsel %vm1122, %v1230, 0.0
      %v2999 = vsel %vm1123, %v1232, 0.0
      %v3000 = vsel %vm1124, %v1234, 0.0
      %v3001 = vsel %vm1125, %v1236, 0.0
      %v3002 = vsel %vm1126, %v1238, 0.0
      %v3003 = vsel %vm1127, %v1240, 0.0
      %v3004 = vsel %vm1128, %v1242, 0.0
      %v3005 = vsel %vm1129, %v1244, 0.0
      %v3006 = vsel %vm1130, %v1246, 0.0
      %v3007 = vsel %vm1131, %v1248, 0.0
      %v3008 = vsel %vm1132, %v1250, 0.0
      %v3009 = vsel %vm1133, %v1252, 0.0
      %v3010 = vsel %vm1134, %v1254, 0.0
      %v3011 = vsel %vm1135, %v1256, 0.0
      %v3012 = vsel %vm1136, %v1258, 0.0
      %v3013 = vsel %vm1137, %v1260, 0.0
      %v3014 = vsel %vm1138, %v1262, 0.0
      %v3015 = vsel %vm1139, %v1264, 0.0
      %v3016 = vsel %vm1140, %v1266, 0.0
      %v3017 = vsel %vm1141, %v1268, 0.0
      %v3018 = vsel %vm1142, %v1270, 0.0
      %v3019 = vsel %vm1143, %v1272, 0.0
      %v3020 = vsel %vm1144, %v1274, 0.0
      %v3021 = vsel %vm1145, %v2191, 0.0
      %v3022 = vsel %vm1146, %v2193, 0.0
      %v3023 = vsel %vm1147, %v2991, 0.0
      %v3024 = vsel %vm1148, %v1214, 0.0
      %v3025 = vpack.c.bf16 %v2994, %v2993
      %v3026 = vpack.c.bf16 %v2996, %v2995
      %v3027 = vpack.c.bf16 %v2998, %v2997
      %v3028 = vpack.c.bf16 %v3000, %v2999
      %v3029 = vpack.c.bf16 %v3002, %v3001
      %v3030 = vpack.c.bf16 %v3004, %v3003
      %v3031 = vpack.c.bf16 %v3006, %v3005
      %v3032 = vpack.c.bf16 %v3008, %v3007
      %v3033 = vpack.c.bf16 %v3010, %v3009
      %v3034 = vpack.c.bf16 %v3012, %v3011
      %v3035 = vpack.c.bf16 %v3014, %v3013
      %v3036 = vpack.c.bf16 %v3016, %v3015
      %v3037 = vpack.c.bf16 %v3018, %v3017
      %v3038 = vpack.c.bf16 %v3020, %v3019
      %v3039 = vpack.c.bf16 %v3022, %v3021
      %v3040 = vpack.c.bf16 %v3024, %v3023
      %s3041 = scalar_lea.vmem %s3, 12
      %v3042 = vld [vmem:[%s3041] sm:$0x3]
      %v3044 = vsel %vm454, %v3025, 0
      %v3047 = vsel %vm454, %v3026, 0
      %v3050 = vsel %vm454, %v3027, 0
      %v3053 = vsel %vm454, %v3028, 0
      %v3056 = vsel %vm454, %v3029, 0
      %v3059 = vsel %vm454, %v3030, 0
      %v3062 = vsel %vm454, %v3031, 0
      %v3065 = vsel %vm454, %v3032, 0
      %v3068 = vsel %vm454, %v3033, 0
      %v3071 = vsel %vm454, %v3034, 0
      %v3074 = vsel %vm454, %v3035, 0
      %v3077 = vsel %vm454, %v3036, 0
      %v3080 = vsel %vm454, %v3037, 0
      %v3083 = vsel %vm454, %v3038, 0
      %v3086 = vsel %vm454, %v3039, 0
      %v3089 = vsel %vm454, %v3040, 0
      %v3092 = vsel %vm503, %v3042, 0
      %3094 = vmatprep.subr.bf16.mxu0 0
      %3095 = vmatpush1.bf16.msra.mxu0 %v3092
      %3096 = vmatprep.subr.bf16.mxu0 0
      %3097 = vmatpush1.bf16.msra.mxu0 0
      %3098 = vmatprep.subr.bf16.mxu0 0
      %3099 = vmatpush1.bf16.msra.mxu0 0
      %3100 = vmatprep.subr.bf16.mxu0 0
      %3101 = vmatpush1.bf16.msra.mxu0 0
      %3102 = vmatprep.subr.bf16.mxu0 0
      %3103 = vmatpush1.bf16.msra.mxu0 0
      %3104 = vmatprep.subr.bf16.mxu0 0
      %3105 = vmatpush1.bf16.msra.mxu0 0
      %3106 = vmatprep.subr.bf16.mxu0 0
      %3107 = vmatpush1.bf16.msra.mxu0 0
      %3108 = vmatprep.subr.bf16.mxu0 0
      %3109 = vmatpush1.bf16.msra.mxu0 0
      %3110 = vmatprep.subr.bf16.mxu0 0
      %3111 = vmatpush1.bf16.msra.mxu0 0
      %3112 = vmatprep.subr.bf16.mxu0 0
      %3113 = vmatpush1.bf16.msra.mxu0 0
      %3114 = vmatprep.subr.bf16.mxu0 0
      %3115 = vmatpush1.bf16.msra.mxu0 0
      %3116 = vmatprep.subr.bf16.mxu0 0
      %3117 = vmatpush1.bf16.msra.mxu0 0
      %3118 = vmatprep.subr.bf16.mxu0 0
      %3119 = vmatpush1.bf16.msra.mxu0 0
      %3120 = vmatprep.subr.bf16.mxu0 0
      %3121 = vmatpush1.bf16.msra.mxu0 0
      %3122 = vmatprep.subr.bf16.mxu0 0
      %3123 = vmatpush1.bf16.msra.mxu0 0
      %3124 = vmatprep.subr.bf16.mxu0 0
      %3125 = vmatpush1.bf16.msra.mxu0 0
      %3126 = vmatprep.mubr.bf16.mxu0 0
      %3127 = vmatmul.mubr.bf16.gmra.mrb[0].mxu0 %v3044
      %v3128 = vpop.f32.mrb[0].mxu0
      %v3129 = vadd.f32 0.0, %v3128
      %v3130 = vpop.f32.mrb[0].mxu0
      %v3131 = vpop.f32.mrb[0].mxu0
      %v3132 = vadd.f32 0.0, %v3131
      %v3133 = vpop.f32.mrb[0].mxu0
      %3134 = vmatprep.mubr.bf16.mxu0 0
      %3135 = vmatmul.mubr.bf16.gmra.mrb[0].mxu0 %v3047
      %v3136 = vpop.f32.mrb[0].mxu0
      %v3137 = vadd.f32 0.0, %v3136
      %v3138 = vpop.f32.mrb[0].mxu0
      %v3139 = vpop.f32.mrb[0].mxu0
      %v3140 = vadd.f32 0.0, %v3139
      %v3141 = vpop.f32.mrb[0].mxu0
      %3142 = vmatprep.mubr.bf16.mxu0 0
      %3143 = vmatmul.mubr.bf16.gmra.mrb[0].mxu0 %v3050
      %v3144 = vpop.f32.mrb[0].mxu0
      %v3145 = vadd.f32 0.0, %v3144
      %v3146 = vpop.f32.mrb[0].mxu0
      %v3147 = vpop.f32.mrb[0].mxu0
      %v3148 = vadd.f32 0.0, %v3147
      %v3149 = vpop.f32.mrb[0].mxu0
      %3150 = vmatprep.mubr.bf16.mxu0 0
      %3151 = vmatmul.mubr.bf16.gmra.mrb[0].mxu0 %v3053
      %v3152 = vpop.f32.mrb[0].mxu0
      %v3153 = vadd.f32 0.0, %v3152
      %v3154 = vpop.f32.mrb[0].mxu0
      %v3155 = vpop.f32.mrb[0].mxu0
      %v3156 = vadd.f32 0.0, %v3155
      %v3157 = vpop.f32.mrb[0].mxu0
      %3158 = vmatprep.mubr.bf16.mxu0 0
      %3159 = vmatmul.mubr.bf16.gmra.mrb[0].mxu0 %v3056
      %v3160 = vpop.f32.mrb[0].mxu0
      %v3161 = vadd.f32 0.0, %v3160
      %v3162 = vpop.f32.mrb[0].mxu0
      %v3163 = vpop.f32.mrb[0].mxu0
      %v3164 = vadd.f32 0.0, %v3163
      %v3165 = vpop.f32.mrb[0].mxu0
      %3166 = vmatprep.mubr.bf16.mxu0 0
      %3167 = vmatmul.mubr.bf16.gmra.mrb[0].mxu0 %v3059
      %v3168 = vpop.f32.mrb[0].mxu0
      %v3169 = vadd.f32 0.0, %v3168
      %v3170 = vpop.f32.mrb[0].mxu0
      %v3171 = vpop.f32.mrb[0].mxu0
      %v3172 = vadd.f32 0.0, %v3171
      %v3173 = vpop.f32.mrb[0].mxu0
      %3174 = vmatprep.mubr.bf16.mxu0 0
      %3175 = vmatmul.mubr.bf16.gmra.mrb[0].mxu0 %v3062
      %v3176 = vpop.f32.mrb[0].mxu0
      %v3177 = vadd.f32 0.0, %v3176
      %v3178 = vpop.f32.mrb[0].mxu0
      %v3179 = vpop.f32.mrb[0].mxu0
      %v3180 = vadd.f32 0.0, %v3179
      %v3181 = vpop.f32.mrb[0].mxu0
      %3182 = vmatprep.mubr.bf16.mxu0 0
      %3183 = vmatmul.mubr.bf16.gmra.mrb[0].mxu0 %v3065
      %v3184 = vpop.f32.mrb[0].mxu0
      %v3185 = vadd.f32 0.0, %v3184
      %v3186 = vpop.f32.mrb[0].mxu0
      %v3187 = vpop.f32.mrb[0].mxu0
      %v3188 = vadd.f32 0.0, %v3187
      %v3189 = vpop.f32.mrb[0].mxu0
      %3190 = vmatprep.mubr.bf16.mxu0 0
      %3191 = vmatmul.mubr.bf16.gmra.mrb[0].mxu0 %v3068
      %v3192 = vpop.f32.mrb[0].mxu0
      %v3193 = vadd.f32 0.0, %v3192
      %v3194 = vpop.f32.mrb[0].mxu0
      %v3195 = vpop.f32.mrb[0].mxu0
      %v3196 = vadd.f32 0.0, %v3195
      %v3197 = vpop.f32.mrb[0].mxu0
      %3198 = vmatprep.mubr.bf16.mxu0 0
      %3199 = vmatmul.mubr.bf16.gmra.mrb[0].mxu0 %v3071
      %v3200 = vpop.f32.mrb[0].mxu0
      %v3201 = vadd.f32 0.0, %v3200
      %v3202 = vpop.f32.mrb[0].mxu0
      %v3203 = vpop.f32.mrb[0].mxu0
      %v3204 = vadd.f32 0.0, %v3203
      %v3205 = vpop.f32.mrb[0].mxu0
      %3206 = vmatprep.mubr.bf16.mxu0 0
      %3207 = vmatmul.mubr.bf16.gmra.mrb[0].mxu0 %v3074
      %v3208 = vpop.f32.mrb[0].mxu0
      %v3209 = vadd.f32 0.0, %v3208
      %v3210 = vpop.f32.mrb[0].mxu0
      %v3211 = vpop.f32.mrb[0].mxu0
      %v3212 = vadd.f32 0.0, %v3211
      %v3213 = vpop.f32.mrb[0].mxu0
      %3214 = vmatprep.mubr.bf16.mxu0 0
      %3215 = vmatmul.mubr.bf16.gmra.mrb[0].mxu0 %v3077
      %v3216 = vpop.f32.mrb[0].mxu0
      %v3217 = vadd.f32 0.0, %v3216
      %v3218 = vpop.f32.mrb[0].mxu0
      %v3219 = vpop.f32.mrb[0].mxu0
      %v3220 = vadd.f32 0.0, %v3219
      %v3221 = vpop.f32.mrb[0].mxu0
      %3222 = vmatprep.mubr.bf16.mxu0 0
      %3223 = vmatmul.mubr.bf16.gmra.mrb[0].mxu0 %v3080
      %v3224 = vpop.f32.mrb[0].mxu0
      %v3225 = vadd.f32 0.0, %v3224
      %v3226 = vpop.f32.mrb[0].mxu0
      %v3227 = vpop.f32.mrb[0].mxu0
      %v3228 = vadd.f32 0.0, %v3227
      %v3229 = vpop.f32.mrb[0].mxu0
      %3230 = vmatprep.mubr.bf16.mxu0 0
      %3231 = vmatmul.mubr.bf16.gmra.mrb[0].mxu0 %v3083
      %v3232 = vpop.f32.mrb[0].mxu0
      %v3233 = vadd.f32 0.0, %v3232
      %v3234 = vpop.f32.mrb[0].mxu0
      %v3235 = vpop.f32.mrb[0].mxu0
      %v3236 = vadd.f32 0.0, %v3235
      %v3237 = vpop.f32.mrb[0].mxu0
      %3238 = vmatprep.mubr.bf16.mxu0 0
      %3239 = vmatmul.mubr.bf16.gmra.mrb[0].mxu0 %v3086
      %v3240 = vpop.f32.mrb[0].mxu0
      %v3241 = vadd.f32 0.0, %v3240
      %v3242 = vpop.f32.mrb[0].mxu0
      %v3243 = vpop.f32.mrb[0].mxu0
      %v3244 = vadd.f32 0.0, %v3243
      %v3245 = vpop.f32.mrb[0].mxu0
      %3246 = vmatprep.mubr.bf16.mxu0 0
      %3247 = vmatmul.mubr.bf16.gmra.mrb[0].mxu0 %v3089
      %v3248 = vpop.f32.mrb[0].mxu0
      %v3249 = vadd.f32 0.0, %v3248
      %v3250 = vpop.f32.mrb[0].mxu0
      %v3251 = vpop.f32.mrb[0].mxu0
      %v3252 = vadd.f32 0.0, %v3251
      %v3253 = vpop.f32.mrb[0].mxu0
      %3254 = vdwg.mxu0
      %v3255 = vadd.f32 %v2959, %v3129
      %v3256 = vadd.f32 %v2960, %v3132
      %v3257 = vadd.f32 %v2961, %v3137
      %v3258 = vadd.f32 %v2962, %v3140
      %v3259 = vadd.f32 %v2963, %v3145
      %v3260 = vadd.f32 %v2964, %v3148
      %v3261 = vadd.f32 %v2965, %v3153
      %v3262 = vadd.f32 %v2966, %v3156
      %v3263 = vadd.f32 %v2967, %v3161
      %v3264 = vadd.f32 %v2968, %v3164
      %v3265 = vadd.f32 %v2969, %v3169
      %v3266 = vadd.f32 %v2970, %v3172
      %v3267 = vadd.f32 %v2971, %v3177
      %v3268 = vadd.f32 %v2972, %v3180
      %v3269 = vadd.f32 %v2973, %v3185
      %v3270 = vadd.f32 %v2974, %v3188
      %v3271 = vadd.f32 %v2975, %v3193
      %v3272 = vadd.f32 %v2976, %v3196
      %v3273 = vadd.f32 %v2977, %v3201
      %v3274 = vadd.f32 %v2978, %v3204
      %v3275 = vadd.f32 %v2979, %v3209
      %v3276 = vadd.f32 %v2980, %v3212
      %v3277 = vadd.f32 %v2981, %v3217
      %v3278 = vadd.f32 %v2982, %v3220
      %v3279 = vadd.f32 %v2983, %v3225
      %v3280 = vadd.f32 %v2984, %v3228
      %v3281 = vadd.f32 %v2985, %v3233
      %v3282 = vadd.f32 %v2986, %v3236
      %v3283 = vadd.f32 %v2987, %v3241
      %v3284 = vadd.f32 %v2988, %v3244
      %v3285 = vadd.f32 %v2989, %v3249
      %v3286 = vadd.f32 %v2990, %v3252
      %s3287 = scalar_lea.vmem %s3, 14
      %v3288 = vld [vmem:[%s3287] sm:$0x3]
      %v3290 = vsel %vm503, %v3288, 0
      %3292 = vmatprep.subr.bf16.mxu0 0
      %3293 = vmatpush1.bf16.msra.mxu0 %v3290
      %3294 = vmatprep.subr.bf16.mxu0 0
      %3295 = vmatpush1.bf16.msra.mxu0 0
      %3296 = vmatprep.subr.bf16.mxu0 0
      %3297 = vmatpush1.bf16.msra.mxu0 0
      %3298 = vmatprep.subr.bf16.mxu0 0
      %3299 = vmatpush1.bf16.msra.mxu0 0
      %3300 = vmatprep.subr.bf16.mxu0 0
      %3301 = vmatpush1.bf16.msra.mxu0 0
      %3302 = vmatprep.subr.bf16.mxu0 0
      %3303 = vmatpush1.bf16.msra.mxu0 0
      %3304 = vmatprep.subr.bf16.mxu0 0
      %3305 = vmatpush1.bf16.msra.mxu0 0
      %3306 = vmatprep.subr.bf16.mxu0 0
      %3307 = vmatpush1.bf16.msra.mxu0 0
      %3308 = vmatprep.subr.bf16.mxu0 0
      %3309 = vmatpush1.bf16.msra.mxu0 0
      %3310 = vmatprep.subr.bf16.mxu0 0
      %3311 = vmatpush1.bf16.msra.mxu0 0
      %3312 = vmatprep.subr.bf16.mxu0 0
      %3313 = vmatpush1.bf16.msra.mxu0 0
      %3314 = vmatprep.subr.bf16.mxu0 0
      %3315 = vmatpush1.bf16.msra.mxu0 0
      %3316 = vmatprep.subr.bf16.mxu0 0
      %3317 = vmatpush1.bf16.msra.mxu0 0
      %3318 = vmatprep.subr.bf16.mxu0 0
      %3319 = vmatpush1.bf16.msra.mxu0 0
      %3320 = vmatprep.subr.bf16.mxu0 0
      %3321 = vmatpush1.bf16.msra.mxu0 0
      %3322 = vmatprep.subr.bf16.mxu0 0
      %3323 = vmatpush1.bf16.msra.mxu0 0
      %3324 = vmatprep.mubr.bf16.mxu0 0
      %3325 = vmatmul.mubr.bf16.gmra.mrb[0].mxu0 %v1380
      %v3326 = vpop.f32.mrb[0].mxu0
      %v3327 = vadd.f32 0.0, %v3326
      %v3328 = vpop.f32.mrb[0].mxu0
      %v3329 = vpop.f32.mrb[0].mxu0
      %v3330 = vadd.f32 0.0, %v3329
      %v3331 = vpop.f32.mrb[0].mxu0
      %3332 = vmatprep.mubr.bf16.mxu0 0
      %3333 = vmatmul.mubr.bf16.gmra.mrb[0].mxu0 %v1383
      %v3334 = vpop.f32.mrb[0].mxu0
      %v3335 = vadd.f32 0.0, %v3334
      %v3336 = vpop.f32.mrb[0].mxu0
      %v3337 = vpop.f32.mrb[0].mxu0
      %v3338 = vadd.f32 0.0, %v3337
      %v3339 = vpop.f32.mrb[0].mxu0
      %3340 = vmatprep.mubr.bf16.mxu0 0
      %3341 = vmatmul.mubr.bf16.gmra.mrb[0].mxu0 %v1386
      %v3342 = vpop.f32.mrb[0].mxu0
      %v3343 = vadd.f32 0.0, %v3342
      %v3344 = vpop.f32.mrb[0].mxu0
      %v3345 = vpop.f32.mrb[0].mxu0
      %v3346 = vadd.f32 0.0, %v3345
      %v3347 = vpop.f32.mrb[0].mxu0
      %3348 = vmatprep.mubr.bf16.mxu0 0
      %3349 = vmatmul.mubr.bf16.gmra.mrb[0].mxu0 %v1389
      %v3350 = vpop.f32.mrb[0].mxu0
      %v3351 = vadd.f32 0.0, %v3350
      %v3352 = vpop.f32.mrb[0].mxu0
      %v3353 = vpop.f32.mrb[0].mxu0
      %v3354 = vadd.f32 0.0, %v3353
      %v3355 = vpop.f32.mrb[0].mxu0
      %3356 = vmatprep.mubr.bf16.mxu0 0
      %3357 = vmatmul.mubr.bf16.gmra.mrb[0].mxu0 %v1392
      %v3358 = vpop.f32.mrb[0].mxu0
      %v3359 = vadd.f32 0.0, %v3358
      %v3360 = vpop.f32.mrb[0].mxu0
      %v3361 = vpop.f32.mrb[0].mxu0
      %v3362 = vadd.f32 0.0, %v3361
      %v3363 = vpop.f32.mrb[0].mxu0
      %3364 = vmatprep.mubr.bf16.mxu0 0
      %3365 = vmatmul.mubr.bf16.gmra.mrb[0].mxu0 %v1395
      %v3366 = vpop.f32.mrb[0].mxu0
      %v3367 = vadd.f32 0.0, %v3366
      %v3368 = vpop.f32.mrb[0].mxu0
      %v3369 = vpop.f32.mrb[0].mxu0
      %v3370 = vadd.f32 0.0, %v3369
      %v3371 = vpop.f32.mrb[0].mxu0
      %3372 = vmatprep.mubr.bf16.mxu0 0
      %3373 = vmatmul.mubr.bf16.gmra.mrb[0].mxu0 %v1398
      %v3374 = vpop.f32.mrb[0].mxu0
      %v3375 = vadd.f32 0.0, %v3374
      %v3376 = vpop.f32.mrb[0].mxu0
      %v3377 = vpop.f32.mrb[0].mxu0
      %v3378 = vadd.f32 0.0, %v3377
      %v3379 = vpop.f32.mrb[0].mxu0
      %3380 = vmatprep.mubr.bf16.mxu0 0
      %3381 = vmatmul.mubr.bf16.gmra.mrb[0].mxu0 %v1401
      %v3382 = vpop.f32.mrb[0].mxu0
      %v3383 = vadd.f32 0.0, %v3382
      %v3384 = vpop.f32.mrb[0].mxu0
      %v3385 = vpop.f32.mrb[0].mxu0
      %v3386 = vadd.f32 0.0, %v3385
      %v3387 = vpop.f32.mrb[0].mxu0
      %3388 = vmatprep.mubr.bf16.mxu0 0
      %3389 = vmatmul.mubr.bf16.gmra.mrb[0].mxu0 %v1404
      %v3390 = vpop.f32.mrb[0].mxu0
      %v3391 = vadd.f32 0.0, %v3390
      %v3392 = vpop.f32.mrb[0].mxu0
      %v3393 = vpop.f32.mrb[0].mxu0
      %v3394 = vadd.f32 0.0, %v3393
      %v3395 = vpop.f32.mrb[0].mxu0
      %3396 = vmatprep.mubr.bf16.mxu0 0
      %3397 = vmatmul.mubr.bf16.gmra.mrb[0].mxu0 %v1407
      %v3398 = vpop.f32.mrb[0].mxu0
      %v3399 = vadd.f32 0.0, %v3398
      %v3400 = vpop.f32.mrb[0].mxu0
      %v3401 = vpop.f32.mrb[0].mxu0
      %v3402 = vadd.f32 0.0, %v3401
      %v3403 = vpop.f32.mrb[0].mxu0
      %3404 = vmatprep.mubr.bf16.mxu0 0
      %3405 = vmatmul.mubr.bf16.gmra.mrb[0].mxu0 %v1410
      %v3406 = vpop.f32.mrb[0].mxu0
      %v3407 = vadd.f32 0.0, %v3406
      %v3408 = vpop.f32.mrb[0].mxu0
      %v3409 = vpop.f32.mrb[0].mxu0
      %v3410 = vadd.f32 0.0, %v3409
      %v3411 = vpop.f32.mrb[0].mxu0
      %3412 = vmatprep.mubr.bf16.mxu0 0
      %3413 = vmatmul.mubr.bf16.gmra.mrb[0].mxu0 %v1413
      %v3414 = vpop.f32.mrb[0].mxu0
      %v3415 = vadd.f32 0.0, %v3414
      %v3416 = vpop.f32.mrb[0].mxu0
      %v3417 = vpop.f32.mrb[0].mxu0
      %v3418 = vadd.f32 0.0, %v3417
      %v3419 = vpop.f32.mrb[0].mxu0
      %3420 = vmatprep.mubr.bf16.mxu0 0
      %3421 = vmatmul.mubr.bf16.gmra.mrb[0].mxu0 %v1416
      %v3422 = vpop.f32.mrb[0].mxu0
      %v3423 = vadd.f32 0.0, %v3422
      %v3424 = vpop.f32.mrb[0].mxu0
      %v3425 = vpop.f32.mrb[0].mxu0
      %v3426 = vadd.f32 0.0, %v3425
      %v3427 = vpop.f32.mrb[0].mxu0
      %3428 = vmatprep.mubr.bf16.mxu0 0
      %3429 = vmatmul.mubr.bf16.gmra.mrb[0].mxu0 %v1419
      %v3430 = vpop.f32.mrb[0].mxu0
      %v3431 = vadd.f32 0.0, %v3430
      %v3432 = vpop.f32.mrb[0].mxu0
      %v3433 = vpop.f32.mrb[0].mxu0
      %v3434 = vadd.f32 0.0, %v3433
      %v3435 = vpop.f32.mrb[0].mxu0
      %3436 = vmatprep.mubr.bf16.mxu0 0
      %3437 = vmatmul.mubr.bf16.gmra.mrb[0].mxu0 %v2494
      %v3438 = vpop.f32.mrb[0].mxu0
      %v3439 = vadd.f32 0.0, %v3438
      %v3440 = vpop.f32.mrb[0].mxu0
      %v3441 = vpop.f32.mrb[0].mxu0
      %v3442 = vadd.f32 0.0, %v3441
      %v3443 = vpop.f32.mrb[0].mxu0
      %3444 = vmatprep.mubr.bf16.mxu0 0
      %3445 = vmatmul.mubr.bf16.gmra.mrb[0].mxu0 %v1374
      %v3446 = vpop.f32.mrb[0].mxu0
      %v3447 = vadd.f32 0.0, %v3446
      %v3448 = vpop.f32.mrb[0].mxu0
      %v3449 = vpop.f32.mrb[0].mxu0
      %v3450 = vadd.f32 0.0, %v3449
      %v3451 = vpop.f32.mrb[0].mxu0
      %3452 = vdwg.mxu0
      %v3453 = vadd.f32 %v3255, %v3327
      %v3454 = vadd.f32 %v3256, %v3330
      %v3455 = vadd.f32 %v3257, %v3335
      %v3456 = vadd.f32 %v3258, %v3338
      %v3457 = vadd.f32 %v3259, %v3343
      %v3458 = vadd.f32 %v3260, %v3346
      %v3459 = vadd.f32 %v3261, %v3351
      %v3460 = vadd.f32 %v3262, %v3354
      %v3461 = vadd.f32 %v3263, %v3359
      %v3462 = vadd.f32 %v3264, %v3362
      %v3463 = vadd.f32 %v3265, %v3367
      %v3464 = vadd.f32 %v3266, %v3370
      %v3465 = vadd.f32 %v3267, %v3375
      %v3466 = vadd.f32 %v3268, %v3378
      %v3467 = vadd.f32 %v3269, %v3383
      %v3468 = vadd.f32 %v3270, %v3386
      %v3469 = vadd.f32 %v3271, %v3391
      %v3470 = vadd.f32 %v3272, %v3394
      %v3471 = vadd.f32 %v3273, %v3399
      %v3472 = vadd.f32 %v3274, %v3402
      %v3473 = vadd.f32 %v3275, %v3407
      %v3474 = vadd.f32 %v3276, %v3410
      %v3475 = vadd.f32 %v3277, %v3415
      %v3476 = vadd.f32 %v3278, %v3418
      %v3477 = vadd.f32 %v3279, %v3423
      %v3478 = vadd.f32 %v3280, %v3426
      %v3479 = vadd.f32 %v3281, %v3431
      %v3480 = vadd.f32 %v3282, %v3434
      %v3481 = vadd.f32 %v3283, %v3439
      %v3482 = vadd.f32 %v3284, %v3442
      %v3483 = vadd.f32 %v3285, %v3447
      %v3484 = vadd.f32 %v3286, %v3450
      %v3485 = vsel %vm1149, %v1808, 0.0
      %v3486 = vsel %vm1150, %v1810, 0.0
      %v3487 = vsel %vm1151, %v1812, 0.0
      %v3488 = vsel %vm1152, %v1814, 0.0
      %v3489 = vsel %vm1153, %v1816, 0.0
      %v3490 = vsel %vm1154, %v1818, 0.0
      %v3491 = vsel %vm1155, %v1820, 0.0
      %v3492 = vsel %vm1156, %v1822, 0.0
      %v3493 = vsel %vm1157, %v1824, 0.0
      %v3494 = vsel %vm1158, %v1826, 0.0
      %v3495 = vsel %vm1159, %v1828, 0.0
      %v3496 = vsel %vm1160, %v1830, 0.0
      %v3497 = vsel %vm1161, %v1832, 0.0
      %v3498 = vsel %vm1162, %v1834, 0.0
      %v3499 = vsel %vm1163, %v1836, 0.0
      %v3500 = vsel %vm1164, %v1838, 0.0
      %v3501 = vsel %vm1165, %v1840, 0.0
      %v3502 = vsel %vm1166, %v1842, 0.0
      %v3503 = vsel %vm1167, %v1844, 0.0
      %v3504 = vsel %vm1168, %v1846, 0.0
      %v3505 = vsel %vm1169, %v1848, 0.0
      %v3506 = vsel %vm1170, %v1850, 0.0
      %v3507 = vsel %vm1171, %v1852, 0.0
      %v3508 = vsel %vm1172, %v1854, 0.0
      %v3509 = vsel %vm1173, %v1856, 0.0
      %v3510 = vsel %vm1174, %v1858, 0.0
      %v3511 = vsel %vm1175, %v1860, 0.0
      %v3512 = vsel %vm1176, %v1862, 0.0
      %v3513 = vsel %vm1177, %v2693, 0.0
      %v3514 = vsel %vm1178, %v2694, 0.0
      %v3515 = vsel %vm1179, %v1800, 0.0
      %v3516 = vsel %vm1180, %v1800, 0.0
      %v3517 = vpack.c.bf16 %v3486, %v3485
      %v3518 = vpack.c.bf16 %v3488, %v3487
      %v3519 = vpack.c.bf16 %v3490, %v3489
      %v3520 = vpack.c.bf16 %v3492, %v3491
      %v3521 = vpack.c.bf16 %v3494, %v3493
      %v3522 = vpack.c.bf16 %v3496, %v3495
      %v3523 = vpack.c.bf16 %v3498, %v3497
      %v3524 = vpack.c.bf16 %v3500, %v3499
      %v3525 = vpack.c.bf16 %v3502, %v3501
      %v3526 = vpack.c.bf16 %v3504, %v3503
      %v3527 = vpack.c.bf16 %v3506, %v3505
      %v3528 = vpack.c.bf16 %v3508, %v3507
      %v3529 = vpack.c.bf16 %v3510, %v3509
      %v3530 = vpack.c.bf16 %v3512, %v3511
      %v3531 = vpack.c.bf16 %v3514, %v3513
      %v3532 = vpack.c.bf16 %v3516, %v3515
      %s3533 = scalar_lea.vmem %s3, 16
      %v3534 = vld [vmem:[%s3533] sm:$0x3]
      %v3536 = vsel %vm454, %v3517, 0
      %v3539 = vsel %vm454, %v3518, 0
      %v3542 = vsel %vm454, %v3519, 0
      %v3545 = vsel %vm454, %v3520, 0
      %v3548 = vsel %vm454, %v3521, 0
      %v3551 = vsel %vm454, %v3522, 0
      %v3554 = vsel %vm454, %v3523, 0
      %v3557 = vsel %vm454, %v3524, 0
      %v3560 = vsel %vm454, %v3525, 0
      %v3563 = vsel %vm454, %v3526, 0
      %v3566 = vsel %vm454, %v3527, 0
      %v3569 = vsel %vm454, %v3528, 0
      %v3572 = vsel %vm454, %v3529, 0
      %v3575 = vsel %vm454, %v3530, 0
      %v3578 = vsel %vm454, %v3531, 0
      %v3581 = vsel %vm454, %v3532, 0
      %v3584 = vsel %vm503, %v3534, 0
      %3586 = vmatprep.subr.bf16.mxu0 0
      %3587 = vmatpush1.bf16.msra.mxu0 %v3584
      %3588 = vmatprep.subr.bf16.mxu0 0
      %3589 = vmatpush1.bf16.msra.mxu0 0
      %3590 = vmatprep.subr.bf16.mxu0 0
      %3591 = vmatpush1.bf16.msra.mxu0 0
      %3592 = vmatprep.subr.bf16.mxu0 0
      %3593 = vmatpush1.bf16.msra.mxu0 0
      %3594 = vmatprep.subr.bf16.mxu0 0
      %3595 = vmatpush1.bf16.msra.mxu0 0
      %3596 = vmatprep.subr.bf16.mxu0 0
      %3597 = vmatpush1.bf16.msra.mxu0 0
      %3598 = vmatprep.subr.bf16.mxu0 0
      %3599 = vmatpush1.bf16.msra.mxu0 0
      %3600 = vmatprep.subr.bf16.mxu0 0
      %3601 = vmatpush1.bf16.msra.mxu0 0
      %3602 = vmatprep.subr.bf16.mxu0 0
      %3603 = vmatpush1.bf16.msra.mxu0 0
      %3604 = vmatprep.subr.bf16.mxu0 0
      %3605 = vmatpush1.bf16.msra.mxu0 0
      %3606 = vmatprep.subr.bf16.mxu0 0
      %3607 = vmatpush1.bf16.msra.mxu0 0
      %3608 = vmatprep.subr.bf16.mxu0 0
      %3609 = vmatpush1.bf16.msra.mxu0 0
      %3610 = vmatprep.subr.bf16.mxu0 0
      %3611 = vmatpush1.bf16.msra.mxu0 0
      %3612 = vmatprep.subr.bf16.mxu0 0
      %3613 = vmatpush1.bf16.msra.mxu0 0
      %3614 = vmatprep.subr.bf16.mxu0 0
      %3615 = vmatpush1.bf16.msra.mxu0 0
      %3616 = vmatprep.subr.bf16.mxu0 0
      %3617 = vmatpush1.bf16.msra.mxu0 0
      %3618 = vmatprep.mubr.bf16.mxu0 0
      %3619 = vmatmul.mubr.bf16.gmra.mrb[0].mxu0 %v3536
      %v3620 = vpop.f32.mrb[0].mxu0
      %v3621 = vadd.f32 0.0, %v3620
      %v3622 = vpop.f32.mrb[0].mxu0
      %v3623 = vpop.f32.mrb[0].mxu0
      %v3624 = vadd.f32 0.0, %v3623
      %v3625 = vpop.f32.mrb[0].mxu0
      %3626 = vmatprep.mubr.bf16.mxu0 0
      %3627 = vmatmul.mubr.bf16.gmra.mrb[0].mxu0 %v3539
      %v3628 = vpop.f32.mrb[0].mxu0
      %v3629 = vadd.f32 0.0, %v3628
      %v3630 = vpop.f32.mrb[0].mxu0
      %v3631 = vpop.f32.mrb[0].mxu0
      %v3632 = vadd.f32 0.0, %v3631
      %v3633 = vpop.f32.mrb[0].mxu0
      %3634 = vmatprep.mubr.bf16.mxu0 0
      %3635 = vmatmul.mubr.bf16.gmra.mrb[0].mxu0 %v3542
      %v3636 = vpop.f32.mrb[0].mxu0
      %v3637 = vadd.f32 0.0, %v3636
      %v3638 = vpop.f32.mrb[0].mxu0
      %v3639 = vpop.f32.mrb[0].mxu0
      %v3640 = vadd.f32 0.0, %v3639
      %v3641 = vpop.f32.mrb[0].mxu0
      %3642 = vmatprep.mubr.bf16.mxu0 0
      %3643 = vmatmul.mubr.bf16.gmra.mrb[0].mxu0 %v3545
      %v3644 = vpop.f32.mrb[0].mxu0
      %v3645 = vadd.f32 0.0, %v3644
      %v3646 = vpop.f32.mrb[0].mxu0
      %v3647 = vpop.f32.mrb[0].mxu0
      %v3648 = vadd.f32 0.0, %v3647
      %v3649 = vpop.f32.mrb[0].mxu0
      %3650 = vmatprep.mubr.bf16.mxu0 0
      %3651 = vmatmul.mubr.bf16.gmra.mrb[0].mxu0 %v3548
      %v3652 = vpop.f32.mrb[0].mxu0
      %v3653 = vadd.f32 0.0, %v3652
      %v3654 = vpop.f32.mrb[0].mxu0
      %v3655 = vpop.f32.mrb[0].mxu0
      %v3656 = vadd.f32 0.0, %v3655
      %v3657 = vpop.f32.mrb[0].mxu0
      %3658 = vmatprep.mubr.bf16.mxu0 0
      %3659 = vmatmul.mubr.bf16.gmra.mrb[0].mxu0 %v3551
      %v3660 = vpop.f32.mrb[0].mxu0
      %v3661 = vadd.f32 0.0, %v3660
      %v3662 = vpop.f32.mrb[0].mxu0
      %v3663 = vpop.f32.mrb[0].mxu0
      %v3664 = vadd.f32 0.0, %v3663
      %v3665 = vpop.f32.mrb[0].mxu0
      %3666 = vmatprep.mubr.bf16.mxu0 0
      %3667 = vmatmul.mubr.bf16.gmra.mrb[0].mxu0 %v3554
      %v3668 = vpop.f32.mrb[0].mxu0
      %v3669 = vadd.f32 0.0, %v3668
      %v3670 = vpop.f32.mrb[0].mxu0
      %v3671 = vpop.f32.mrb[0].mxu0
      %v3672 = vadd.f32 0.0, %v3671
      %v3673 = vpop.f32.mrb[0].mxu0
      %3674 = vmatprep.mubr.bf16.mxu0 0
      %3675 = vmatmul.mubr.bf16.gmra.mrb[0].mxu0 %v3557
      %v3676 = vpop.f32.mrb[0].mxu0
      %v3677 = vadd.f32 0.0, %v3676
      %v3678 = vpop.f32.mrb[0].mxu0
      %v3679 = vpop.f32.mrb[0].mxu0
      %v3680 = vadd.f32 0.0, %v3679
      %v3681 = vpop.f32.mrb[0].mxu0
      %3682 = vmatprep.mubr.bf16.mxu0 0
      %3683 = vmatmul.mubr.bf16.gmra.mrb[0].mxu0 %v3560
      %v3684 = vpop.f32.mrb[0].mxu0
      %v3685 = vadd.f32 0.0, %v3684
      %v3686 = vpop.f32.mrb[0].mxu0
      %v3687 = vpop.f32.mrb[0].mxu0
      %v3688 = vadd.f32 0.0, %v3687
      %v3689 = vpop.f32.mrb[0].mxu0
      %3690 = vmatprep.mubr.bf16.mxu0 0
      %3691 = vmatmul.mubr.bf16.gmra.mrb[0].mxu0 %v3563
      %v3692 = vpop.f32.mrb[0].mxu0
      %v3693 = vadd.f32 0.0, %v3692
      %v3694 = vpop.f32.mrb[0].mxu0
      %v3695 = vpop.f32.mrb[0].mxu0
      %v3696 = vadd.f32 0.0, %v3695
      %v3697 = vpop.f32.mrb[0].mxu0
      %3698 = vmatprep.mubr.bf16.mxu0 0
      %3699 = vmatmul.mubr.bf16.gmra.mrb[0].mxu0 %v3566
      %v3700 = vpop.f32.mrb[0].mxu0
      %v3701 = vadd.f32 0.0, %v3700
      %v3702 = vpop.f32.mrb[0].mxu0
      %v3703 = vpop.f32.mrb[0].mxu0
      %v3704 = vadd.f32 0.0, %v3703
      %v3705 = vpop.f32.mrb[0].mxu0
      %3706 = vmatprep.mubr.bf16.mxu0 0
      %3707 = vmatmul.mubr.bf16.gmra.mrb[0].mxu0 %v3569
      %v3708 = vpop.f32.mrb[0].mxu0
      %v3709 = vadd.f32 0.0, %v3708
      %v3710 = vpop.f32.mrb[0].mxu0
      %v3711 = vpop.f32.mrb[0].mxu0
      %v3712 = vadd.f32 0.0, %v3711
      %v3713 = vpop.f32.mrb[0].mxu0
      %3714 = vmatprep.mubr.bf16.mxu0 0
      %3715 = vmatmul.mubr.bf16.gmra.mrb[0].mxu0 %v3572
      %v3716 = vpop.f32.mrb[0].mxu0
      %v3717 = vadd.f32 0.0, %v3716
      %v3718 = vpop.f32.mrb[0].mxu0
      %v3719 = vpop.f32.mrb[0].mxu0
      %v3720 = vadd.f32 0.0, %v3719
      %v3721 = vpop.f32.mrb[0].mxu0
      %3722 = vmatprep.mubr.bf16.mxu0 0
      %3723 = vmatmul.mubr.bf16.gmra.mrb[0].mxu0 %v3575
      %v3724 = vpop.f32.mrb[0].mxu0
      %v3725 = vadd.f32 0.0, %v3724
      %v3726 = vpop.f32.mrb[0].mxu0
      %v3727 = vpop.f32.mrb[0].mxu0
      %v3728 = vadd.f32 0.0, %v3727
      %v3729 = vpop.f32.mrb[0].mxu0
      %3730 = vmatprep.mubr.bf16.mxu0 0
      %3731 = vmatmul.mubr.bf16.gmra.mrb[0].mxu0 %v3578
      %v3732 = vpop.f32.mrb[0].mxu0
      %v3733 = vadd.f32 0.0, %v3732
      %v3734 = vpop.f32.mrb[0].mxu0
      %v3735 = vpop.f32.mrb[0].mxu0
      %v3736 = vadd.f32 0.0, %v3735
      %v3737 = vpop.f32.mrb[0].mxu0
      %3738 = vmatprep.mubr.bf16.mxu0 0
      %3739 = vmatmul.mubr.bf16.gmra.mrb[0].mxu0 %v3581
      %v3740 = vpop.f32.mrb[0].mxu0
      %v3741 = vadd.f32 0.0, %v3740
      %v3742 = vpop.f32.mrb[0].mxu0
      %v3743 = vpop.f32.mrb[0].mxu0
      %v3744 = vadd.f32 0.0, %v3743
      %v3745 = vpop.f32.mrb[0].mxu0
      %3746 = vdwg.mxu0
      %v3747 = vadd.f32 %v3453, %v3621
      %v3748 = vadd.f32 %v3454, %v3624
      %v3749 = vadd.f32 %v3455, %v3629
      %v3750 = vadd.f32 %v3456, %v3632
      %v3751 = vadd.f32 %v3457, %v3637
      %v3752 = vadd.f32 %v3458, %v3640
      %v3753 = vadd.f32 %v3459, %v3645
      %v3754 = vadd.f32 %v3460, %v3648
      %v3755 = vadd.f32 %v3461, %v3653
      %v3756 = vadd.f32 %v3462, %v3656
      %v3757 = vadd.f32 %v3463, %v3661
      %v3758 = vadd.f32 %v3464, %v3664
      %v3759 = vadd.f32 %v3465, %v3669
      %v3760 = vadd.f32 %v3466, %v3672
      %v3761 = vadd.f32 %v3467, %v3677
      %v3762 = vadd.f32 %v3468, %v3680
      %v3763 = vadd.f32 %v3469, %v3685
      %v3764 = vadd.f32 %v3470, %v3688
      %v3765 = vadd.f32 %v3471, %v3693
      %v3766 = vadd.f32 %v3472, %v3696
      %v3767 = vadd.f32 %v3473, %v3701
      %v3768 = vadd.f32 %v3474, %v3704
      %v3769 = vadd.f32 %v3475, %v3709
      %v3770 = vadd.f32 %v3476, %v3712
      %v3771 = vadd.f32 %v3477, %v3717
      %v3772 = vadd.f32 %v3478, %v3720
      %v3773 = vadd.f32 %v3479, %v3725
      %v3774 = vadd.f32 %v3480, %v3728
      %v3775 = vadd.f32 %v3481, %v3733
      %v3776 = vadd.f32 %v3482, %v3736
      %v3777 = vadd.f32 %v3483, %v3741
      %v3778 = vadd.f32 %v3484, %v3744
      %v3779 = vld [vmem:[%s4] sm:$0x1]
      %v3781 = vlaneseq
      %v3782 = vshrl.u32 %v3781, 7
      %v3783 = vsub.s32 0, %v3782
      %v3784 = vrot.slane %v3779, %v3783
      %v3786 = vadd.f32 %v3747, %v3784
      %v3787 = vadd.f32 %v3748, %v3784
      %v3788 = vadd.f32 %v3749, %v3784
      %v3789 = vadd.f32 %v3750, %v3784
      %v3790 = vadd.f32 %v3751, %v3784
      %v3791 = vadd.f32 %v3752, %v3784
      %v3792 = vadd.f32 %v3753, %v3784
      %v3793 = vadd.f32 %v3754, %v3784
      %v3794 = vadd.f32 %v3755, %v3784
      %v3795 = vadd.f32 %v3756, %v3784
      %v3796 = vadd.f32 %v3757, %v3784
      %v3797 = vadd.f32 %v3758, %v3784
      %v3798 = vadd.f32 %v3759, %v3784
      %v3799 = vadd.f32 %v3760, %v3784
      %v3800 = vadd.f32 %v3761, %v3784
      %v3801 = vadd.f32 %v3762, %v3784
      %v3802 = vadd.f32 %v3763, %v3784
      %v3803 = vadd.f32 %v3764, %v3784
      %v3804 = vadd.f32 %v3765, %v3784
      %v3805 = vadd.f32 %v3766, %v3784
      %v3806 = vadd.f32 %v3767, %v3784
      %v3807 = vadd.f32 %v3768, %v3784
      %v3808 = vadd.f32 %v3769, %v3784
      %v3809 = vadd.f32 %v3770, %v3784
      %v3810 = vadd.f32 %v3771, %v3784
      %v3811 = vadd.f32 %v3772, %v3784
      %v3812 = vadd.f32 %v3773, %v3784
      %v3813 = vadd.f32 %v3774, %v3784
      %v3814 = vadd.f32 %v3775, %v3784
      %v3815 = vadd.f32 %v3776, %v3784
      %v3816 = vadd.f32 %v3777, %v3784
      %v3817 = vadd.f32 %v3778, %v3784
      %v3818 = vmax.f32 %v3786, 0.0
      %v3819 = vmax.f32 %v3787, 0.0
      %v3820 = vmax.f32 %v3788, 0.0
      %v3821 = vmax.f32 %v3789, 0.0
      %v3822 = vmax.f32 %v3790, 0.0
      %v3823 = vmax.f32 %v3791, 0.0
      %v3824 = vmax.f32 %v3792, 0.0
      %v3825 = vmax.f32 %v3793, 0.0
      %v3826 = vmax.f32 %v3794, 0.0
      %v3827 = vmax.f32 %v3795, 0.0
      %v3828 = vmax.f32 %v3796, 0.0
      %v3829 = vmax.f32 %v3797, 0.0
      %v3830 = vmax.f32 %v3798, 0.0
      %v3831 = vmax.f32 %v3799, 0.0
      %v3832 = vmax.f32 %v3800, 0.0
      %v3833 = vmax.f32 %v3801, 0.0
      %v3834 = vmax.f32 %v3802, 0.0
      %v3835 = vmax.f32 %v3803, 0.0
      %v3836 = vmax.f32 %v3804, 0.0
      %v3837 = vmax.f32 %v3805, 0.0
      %v3838 = vmax.f32 %v3806, 0.0
      %v3839 = vmax.f32 %v3807, 0.0
      %v3840 = vmax.f32 %v3808, 0.0
      %v3841 = vmax.f32 %v3809, 0.0
      %v3842 = vmax.f32 %v3810, 0.0
      %v3843 = vmax.f32 %v3811, 0.0
      %v3844 = vmax.f32 %v3812, 0.0
      %v3845 = vmax.f32 %v3813, 0.0
      %v3846 = vmax.f32 %v3814, 0.0
      %v3847 = vmax.f32 %v3815, 0.0
      %v3848 = vmax.f32 %v3816, 0.0
      %v3849 = vmax.f32 %v3817, 0.0
      %v3850 = vpack.c.bf16 %v3819, %v3818
      %v3851 = vpack.c.bf16 %v3821, %v3820
      %v3852 = vpack.c.bf16 %v3823, %v3822
      %v3853 = vpack.c.bf16 %v3825, %v3824
      %v3854 = vpack.c.bf16 %v3827, %v3826
      %v3855 = vpack.c.bf16 %v3829, %v3828
      %v3856 = vpack.c.bf16 %v3831, %v3830
      %v3857 = vpack.c.bf16 %v3833, %v3832
      %v3858 = vpack.c.bf16 %v3835, %v3834
      %v3859 = vpack.c.bf16 %v3837, %v3836
      %v3860 = vpack.c.bf16 %v3839, %v3838
      %v3861 = vpack.c.bf16 %v3841, %v3840
      %v3862 = vpack.c.bf16 %v3843, %v3842
      %v3863 = vpack.c.bf16 %v3845, %v3844
      %v3864 = vpack.c.bf16 %v3847, %v3846
      %v3865 = vpack.c.bf16 %v3849, %v3848
      %v3866 = vld [vmem:[%s5] sm:$0x3]
      %v3867 = vld [vmem:[%s6] sm:$0x1]
      %v3869 = vlaneseq
      %v3870 = vshrl.u32 %v3869, 7
      %v3871 = vsub.s32 0, %v3870
      %v3872 = vrot.slane %v3867, %v3871
      %v3875 = vsel %vm454, %v3850, 0
      %v3878 = vsel %vm454, %v3851, 0
      %v3881 = vsel %vm454, %v3852, 0
      %v3884 = vsel %vm454, %v3853, 0
      %v3887 = vsel %vm454, %v3854, 0
      %v3890 = vsel %vm454, %v3855, 0
      %v3893 = vsel %vm454, %v3856, 0
      %v3896 = vsel %vm454, %v3857, 0
      %v3899 = vsel %vm454, %v3858, 0
      %v3902 = vsel %vm454, %v3859, 0
      %v3905 = vsel %vm454, %v3860, 0
      %v3908 = vsel %vm454, %v3861, 0
      %v3911 = vsel %vm454, %v3862, 0
      %v3914 = vsel %vm454, %v3863, 0
      %v3917 = vsel %vm454, %v3864, 0
      %v3920 = vsel %vm454, %v3865, 0
      %v3923 = vsel %vm503, %v3866, 0
      %3925 = vmatprep.subr.bf16.mxu0 0
      %3926 = vmatpush1.bf16.msra.mxu0 %v3923
      %3927 = vmatprep.subr.bf16.mxu0 0
      %3928 = vmatpush1.bf16.msra.mxu0 0
      %3929 = vmatprep.subr.bf16.mxu0 0
      %3930 = vmatpush1.bf16.msra.mxu0 0
      %3931 = vmatprep.subr.bf16.mxu0 0
      %3932 = vmatpush1.bf16.msra.mxu0 0
      %3933 = vmatprep.subr.bf16.mxu0 0
      %3934 = vmatpush1.bf16.msra.mxu0 0
      %3935 = vmatprep.subr.bf16.mxu0 0
      %3936 = vmatpush1.bf16.msra.mxu0 0
      %3937 = vmatprep.subr.bf16.mxu0 0
      %3938 = vmatpush1.bf16.msra.mxu0 0
      %3939 = vmatprep.subr.bf16.mxu0 0
      %3940 = vmatpush1.bf16.msra.mxu0 0
      %3941 = vmatprep.subr.bf16.mxu0 0
      %3942 = vmatpush1.bf16.msra.mxu0 0
      %3943 = vmatprep.subr.bf16.mxu0 0
      %3944 = vmatpush1.bf16.msra.mxu0 0
      %3945 = vmatprep.subr.bf16.mxu0 0
      %3946 = vmatpush1.bf16.msra.mxu0 0
      %3947 = vmatprep.subr.bf16.mxu0 0
      %3948 = vmatpush1.bf16.msra.mxu0 0
      %3949 = vmatprep.subr.bf16.mxu0 0
      %3950 = vmatpush1.bf16.msra.mxu0 0
      %3951 = vmatprep.subr.bf16.mxu0 0
      %3952 = vmatpush1.bf16.msra.mxu0 0
      %3953 = vmatprep.subr.bf16.mxu0 0
      %3954 = vmatpush1.bf16.msra.mxu0 0
      %3955 = vmatprep.subr.bf16.mxu0 0
      %3956 = vmatpush1.bf16.msra.mxu0 0
      %3957 = vmatprep.mubr.bf16.mxu0 0
      %3958 = vmatmul.mubr.bf16.gmra.mrb[0].mxu0 %v3875
      %v3959 = vpop.f32.mrb[0].mxu0
      %v3960 = vadd.f32 %v3872, %v3959
      %v3961 = vpop.f32.mrb[0].mxu0
      %v3962 = vpop.f32.mrb[0].mxu0
      %v3963 = vadd.f32 %v3872, %v3962
      %v3964 = vpop.f32.mrb[0].mxu0
      %3965 = vmatprep.mubr.bf16.mxu0 0
      %3966 = vmatmul.mubr.bf16.gmra.mrb[0].mxu0 %v3878
      %v3967 = vpop.f32.mrb[0].mxu0
      %v3968 = vadd.f32 %v3872, %v3967
      %v3969 = vpop.f32.mrb[0].mxu0
      %v3970 = vpop.f32.mrb[0].mxu0
      %v3971 = vadd.f32 %v3872, %v3970
      %v3972 = vpop.f32.mrb[0].mxu0
      %3973 = vmatprep.mubr.bf16.mxu0 0
      %3974 = vmatmul.mubr.bf16.gmra.mrb[0].mxu0 %v3881
      %v3975 = vpop.f32.mrb[0].mxu0
      %v3976 = vadd.f32 %v3872, %v3975
      %v3977 = vpop.f32.mrb[0].mxu0
      %v3978 = vpop.f32.mrb[0].mxu0
      %v3979 = vadd.f32 %v3872, %v3978
      %v3980 = vpop.f32.mrb[0].mxu0
      %3981 = vmatprep.mubr.bf16.mxu0 0
      %3982 = vmatmul.mubr.bf16.gmra.mrb[0].mxu0 %v3884
      %v3983 = vpop.f32.mrb[0].mxu0
      %v3984 = vadd.f32 %v3872, %v3983
      %v3985 = vpop.f32.mrb[0].mxu0
      %v3986 = vpop.f32.mrb[0].mxu0
      %v3987 = vadd.f32 %v3872, %v3986
      %v3988 = vpop.f32.mrb[0].mxu0
      %3989 = vmatprep.mubr.bf16.mxu0 0
      %3990 = vmatmul.mubr.bf16.gmra.mrb[0].mxu0 %v3887
      %v3991 = vpop.f32.mrb[0].mxu0
      %v3992 = vadd.f32 %v3872, %v3991
      %v3993 = vpop.f32.mrb[0].mxu0
      %v3994 = vpop.f32.mrb[0].mxu0
      %v3995 = vadd.f32 %v3872, %v3994
      %v3996 = vpop.f32.mrb[0].mxu0
      %3997 = vmatprep.mubr.bf16.mxu0 0
      %3998 = vmatmul.mubr.bf16.gmra.mrb[0].mxu0 %v3890
      %v3999 = vpop.f32.mrb[0].mxu0
      %v4000 = vadd.f32 %v3872, %v3999
      %v4001 = vpop.f32.mrb[0].mxu0
      %v4002 = vpop.f32.mrb[0].mxu0
      %v4003 = vadd.f32 %v3872, %v4002
      %v4004 = vpop.f32.mrb[0].mxu0
      %4005 = vmatprep.mubr.bf16.mxu0 0
      %4006 = vmatmul.mubr.bf16.gmra.mrb[0].mxu0 %v3893
      %v4007 = vpop.f32.mrb[0].mxu0
      %v4008 = vadd.f32 %v3872, %v4007
      %v4009 = vpop.f32.mrb[0].mxu0
      %v4010 = vpop.f32.mrb[0].mxu0
      %v4011 = vadd.f32 %v3872, %v4010
      %v4012 = vpop.f32.mrb[0].mxu0
      %4013 = vmatprep.mubr.bf16.mxu0 0
      %4014 = vmatmul.mubr.bf16.gmra.mrb[0].mxu0 %v3896
      %v4015 = vpop.f32.mrb[0].mxu0
      %v4016 = vadd.f32 %v3872, %v4015
      %v4017 = vpop.f32.mrb[0].mxu0
      %v4018 = vpop.f32.mrb[0].mxu0
      %v4019 = vadd.f32 %v3872, %v4018
      %v4020 = vpop.f32.mrb[0].mxu0
      %4021 = vmatprep.mubr.bf16.mxu0 0
      %4022 = vmatmul.mubr.bf16.gmra.mrb[0].mxu0 %v3899
      %v4023 = vpop.f32.mrb[0].mxu0
      %v4024 = vadd.f32 %v3872, %v4023
      %v4025 = vpop.f32.mrb[0].mxu0
      %v4026 = vpop.f32.mrb[0].mxu0
      %v4027 = vadd.f32 %v3872, %v4026
      %v4028 = vpop.f32.mrb[0].mxu0
      %4029 = vmatprep.mubr.bf16.mxu0 0
      %4030 = vmatmul.mubr.bf16.gmra.mrb[0].mxu0 %v3902
      %v4031 = vpop.f32.mrb[0].mxu0
      %v4032 = vadd.f32 %v3872, %v4031
      %v4033 = vpop.f32.mrb[0].mxu0
      %v4034 = vpop.f32.mrb[0].mxu0
      %v4035 = vadd.f32 %v3872, %v4034
      %v4036 = vpop.f32.mrb[0].mxu0
      %4037 = vmatprep.mubr.bf16.mxu0 0
      %4038 = vmatmul.mubr.bf16.gmra.mrb[0].mxu0 %v3905
      %v4039 = vpop.f32.mrb[0].mxu0
      %v4040 = vadd.f32 %v3872, %v4039
      %v4041 = vpop.f32.mrb[0].mxu0
      %v4042 = vpop.f32.mrb[0].mxu0
      %v4043 = vadd.f32 %v3872, %v4042
      %v4044 = vpop.f32.mrb[0].mxu0
      %4045 = vmatprep.mubr.bf16.mxu0 0
      %4046 = vmatmul.mubr.bf16.gmra.mrb[0].mxu0 %v3908
      %v4047 = vpop.f32.mrb[0].mxu0
      %v4048 = vadd.f32 %v3872, %v4047
      %v4049 = vpop.f32.mrb[0].mxu0
      %v4050 = vpop.f32.mrb[0].mxu0
      %v4051 = vadd.f32 %v3872, %v4050
      %v4052 = vpop.f32.mrb[0].mxu0
      %4053 = vmatprep.mubr.bf16.mxu0 0
      %4054 = vmatmul.mubr.bf16.gmra.mrb[0].mxu0 %v3911
      %v4055 = vpop.f32.mrb[0].mxu0
      %v4056 = vadd.f32 %v3872, %v4055
      %v4057 = vpop.f32.mrb[0].mxu0
      %v4058 = vpop.f32.mrb[0].mxu0
      %v4059 = vadd.f32 %v3872, %v4058
      %v4060 = vpop.f32.mrb[0].mxu0
      %4061 = vmatprep.mubr.bf16.mxu0 0
      %4062 = vmatmul.mubr.bf16.gmra.mrb[0].mxu0 %v3914
      %v4063 = vpop.f32.mrb[0].mxu0
      %v4064 = vadd.f32 %v3872, %v4063
      %v4065 = vpop.f32.mrb[0].mxu0
      %v4066 = vpop.f32.mrb[0].mxu0
      %v4067 = vadd.f32 %v3872, %v4066
      %v4068 = vpop.f32.mrb[0].mxu0
      %4069 = vmatprep.mubr.bf16.mxu0 0
      %4070 = vmatmul.mubr.bf16.gmra.mrb[0].mxu0 %v3917
      %v4071 = vpop.f32.mrb[0].mxu0
      %v4072 = vadd.f32 %v3872, %v4071
      %v4073 = vpop.f32.mrb[0].mxu0
      %v4074 = vpop.f32.mrb[0].mxu0
      %v4075 = vadd.f32 %v3872, %v4074
      %v4076 = vpop.f32.mrb[0].mxu0
      %4077 = vmatprep.mubr.bf16.mxu0 0
      %4078 = vmatmul.mubr.bf16.gmra.mrb[0].mxu0 %v3920
      %v4079 = vpop.f32.mrb[0].mxu0
      %v4080 = vadd.f32 %v3872, %v4079
      %v4081 = vpop.f32.mrb[0].mxu0
      %v4082 = vpop.f32.mrb[0].mxu0
      %v4083 = vadd.f32 %v3872, %v4082
      %v4084 = vpop.f32.mrb[0].mxu0
      %4085 = vdwg.mxu0
      %v4086 = vld [vmem:[%s7] sm:$0x3]
      %v4088 = vsel %vm503, %v4086, 0
      %4090 = vmatprep.subr.bf16.mxu0 0
      %4091 = vmatpush1.bf16.msra.mxu0 %v4088
      %4092 = vmatprep.subr.bf16.mxu0 0
      %4093 = vmatpush1.bf16.msra.mxu0 0
      %4094 = vmatprep.subr.bf16.mxu0 0
      %4095 = vmatpush1.bf16.msra.mxu0 0
      %4096 = vmatprep.subr.bf16.mxu0 0
      %4097 = vmatpush1.bf16.msra.mxu0 0
      %4098 = vmatprep.subr.bf16.mxu0 0
      %4099 = vmatpush1.bf16.msra.mxu0 0
      %4100 = vmatprep.subr.bf16.mxu0 0
      %4101 = vmatpush1.bf16.msra.mxu0 0
      %4102 = vmatprep.subr.bf16.mxu0 0
      %4103 = vmatpush1.bf16.msra.mxu0 0
      %4104 = vmatprep.subr.bf16.mxu0 0
      %4105 = vmatpush1.bf16.msra.mxu0 0
      %4106 = vmatprep.subr.bf16.mxu0 0
      %4107 = vmatpush1.bf16.msra.mxu0 0
      %4108 = vmatprep.subr.bf16.mxu0 0
      %4109 = vmatpush1.bf16.msra.mxu0 0
      %4110 = vmatprep.subr.bf16.mxu0 0
      %4111 = vmatpush1.bf16.msra.mxu0 0
      %4112 = vmatprep.subr.bf16.mxu0 0
      %4113 = vmatpush1.bf16.msra.mxu0 0
      %4114 = vmatprep.subr.bf16.mxu0 0
      %4115 = vmatpush1.bf16.msra.mxu0 0
      %4116 = vmatprep.subr.bf16.mxu0 0
      %4117 = vmatpush1.bf16.msra.mxu0 0
      %4118 = vmatprep.subr.bf16.mxu0 0
      %4119 = vmatpush1.bf16.msra.mxu0 0
      %4120 = vmatprep.subr.bf16.mxu0 0
      %4121 = vmatpush1.bf16.msra.mxu0 0
      %4122 = vmatprep.mubr.bf16.mxu0 0
      %4123 = vmatmul.mubr.bf16.gmra.mrb[0].mxu0 %v456
      %v4124 = vpop.f32.mrb[0].mxu0
      %v4125 = vadd.f32 0.0, %v4124
      %v4126 = vpop.f32.mrb[0].mxu0
      %v4127 = vpop.f32.mrb[0].mxu0
      %v4128 = vadd.f32 0.0, %v4127
      %v4129 = vpop.f32.mrb[0].mxu0
      %4130 = vmatprep.mubr.bf16.mxu0 0
      %4131 = vmatmul.mubr.bf16.gmra.mrb[0].mxu0 %v459
      %v4132 = vpop.f32.mrb[0].mxu0
      %v4133 = vadd.f32 0.0, %v4132
      %v4134 = vpop.f32.mrb[0].mxu0
      %v4135 = vpop.f32.mrb[0].mxu0
      %v4136 = vadd.f32 0.0, %v4135
      %v4137 = vpop.f32.mrb[0].mxu0
      %4138 = vmatprep.mubr.bf16.mxu0 0
      %4139 = vmatmul.mubr.bf16.gmra.mrb[0].mxu0 %v462
      %v4140 = vpop.f32.mrb[0].mxu0
      %v4141 = vadd.f32 0.0, %v4140
      %v4142 = vpop.f32.mrb[0].mxu0
      %v4143 = vpop.f32.mrb[0].mxu0
      %v4144 = vadd.f32 0.0, %v4143
      %v4145 = vpop.f32.mrb[0].mxu0
      %4146 = vmatprep.mubr.bf16.mxu0 0
      %4147 = vmatmul.mubr.bf16.gmra.mrb[0].mxu0 %v465
      %v4148 = vpop.f32.mrb[0].mxu0
      %v4149 = vadd.f32 0.0, %v4148
      %v4150 = vpop.f32.mrb[0].mxu0
      %v4151 = vpop.f32.mrb[0].mxu0
      %v4152 = vadd.f32 0.0, %v4151
      %v4153 = vpop.f32.mrb[0].mxu0
      %4154 = vmatprep.mubr.bf16.mxu0 0
      %4155 = vmatmul.mubr.bf16.gmra.mrb[0].mxu0 %v468
      %v4156 = vpop.f32.mrb[0].mxu0
      %v4157 = vadd.f32 0.0, %v4156
      %v4158 = vpop.f32.mrb[0].mxu0
      %v4159 = vpop.f32.mrb[0].mxu0
      %v4160 = vadd.f32 0.0, %v4159
      %v4161 = vpop.f32.mrb[0].mxu0
      %4162 = vmatprep.mubr.bf16.mxu0 0
      %4163 = vmatmul.mubr.bf16.gmra.mrb[0].mxu0 %v471
      %v4164 = vpop.f32.mrb[0].mxu0
      %v4165 = vadd.f32 0.0, %v4164
      %v4166 = vpop.f32.mrb[0].mxu0
      %v4167 = vpop.f32.mrb[0].mxu0
      %v4168 = vadd.f32 0.0, %v4167
      %v4169 = vpop.f32.mrb[0].mxu0
      %4170 = vmatprep.mubr.bf16.mxu0 0
      %4171 = vmatmul.mubr.bf16.gmra.mrb[0].mxu0 %v474
      %v4172 = vpop.f32.mrb[0].mxu0
      %v4173 = vadd.f32 0.0, %v4172
      %v4174 = vpop.f32.mrb[0].mxu0
      %v4175 = vpop.f32.mrb[0].mxu0
      %v4176 = vadd.f32 0.0, %v4175
      %v4177 = vpop.f32.mrb[0].mxu0
      %4178 = vmatprep.mubr.bf16.mxu0 0
      %4179 = vmatmul.mubr.bf16.gmra.mrb[0].mxu0 %v477
      %v4180 = vpop.f32.mrb[0].mxu0
      %v4181 = vadd.f32 0.0, %v4180
      %v4182 = vpop.f32.mrb[0].mxu0
      %v4183 = vpop.f32.mrb[0].mxu0
      %v4184 = vadd.f32 0.0, %v4183
      %v4185 = vpop.f32.mrb[0].mxu0
      %4186 = vmatprep.mubr.bf16.mxu0 0
      %4187 = vmatmul.mubr.bf16.gmra.mrb[0].mxu0 %v480
      %v4188 = vpop.f32.mrb[0].mxu0
      %v4189 = vadd.f32 0.0, %v4188
      %v4190 = vpop.f32.mrb[0].mxu0
      %v4191 = vpop.f32.mrb[0].mxu0
      %v4192 = vadd.f32 0.0, %v4191
      %v4193 = vpop.f32.mrb[0].mxu0
      %4194 = vmatprep.mubr.bf16.mxu0 0
      %4195 = vmatmul.mubr.bf16.gmra.mrb[0].mxu0 %v483
      %v4196 = vpop.f32.mrb[0].mxu0
      %v4197 = vadd.f32 0.0, %v4196
      %v4198 = vpop.f32.mrb[0].mxu0
      %v4199 = vpop.f32.mrb[0].mxu0
      %v4200 = vadd.f32 0.0, %v4199
      %v4201 = vpop.f32.mrb[0].mxu0
      %4202 = vmatprep.mubr.bf16.mxu0 0
      %4203 = vmatmul.mubr.bf16.gmra.mrb[0].mxu0 %v486
      %v4204 = vpop.f32.mrb[0].mxu0
      %v4205 = vadd.f32 0.0, %v4204
      %v4206 = vpop.f32.mrb[0].mxu0
      %v4207 = vpop.f32.mrb[0].mxu0
      %v4208 = vadd.f32 0.0, %v4207
      %v4209 = vpop.f32.mrb[0].mxu0
      %4210 = vmatprep.mubr.bf16.mxu0 0
      %4211 = vmatmul.mubr.bf16.gmra.mrb[0].mxu0 %v489
      %v4212 = vpop.f32.mrb[0].mxu0
      %v4213 = vadd.f32 0.0, %v4212
      %v4214 = vpop.f32.mrb[0].mxu0
      %v4215 = vpop.f32.mrb[0].mxu0
      %v4216 = vadd.f32 0.0, %v4215
      %v4217 = vpop.f32.mrb[0].mxu0
      %4218 = vmatprep.mubr.bf16.mxu0 0
      %4219 = vmatmul.mubr.bf16.gmra.mrb[0].mxu0 %v492
      %v4220 = vpop.f32.mrb[0].mxu0
      %v4221 = vadd.f32 0.0, %v4220
      %v4222 = vpop.f32.mrb[0].mxu0
      %v4223 = vpop.f32.mrb[0].mxu0
      %v4224 = vadd.f32 0.0, %v4223
      %v4225 = vpop.f32.mrb[0].mxu0
      %4226 = vmatprep.mubr.bf16.mxu0 0
      %4227 = vmatmul.mubr.bf16.gmra.mrb[0].mxu0 %v495
      %v4228 = vpop.f32.mrb[0].mxu0
      %v4229 = vadd.f32 0.0, %v4228
      %v4230 = vpop.f32.mrb[0].mxu0
      %v4231 = vpop.f32.mrb[0].mxu0
      %v4232 = vadd.f32 0.0, %v4231
      %v4233 = vpop.f32.mrb[0].mxu0
      %4234 = vmatprep.mubr.bf16.mxu0 0
      %4235 = vmatmul.mubr.bf16.gmra.mrb[0].mxu0 %v498
      %v4236 = vpop.f32.mrb[0].mxu0
      %v4237 = vadd.f32 0.0, %v4236
      %v4238 = vpop.f32.mrb[0].mxu0
      %v4239 = vpop.f32.mrb[0].mxu0
      %v4240 = vadd.f32 0.0, %v4239
      %v4241 = vpop.f32.mrb[0].mxu0
      %4242 = vmatprep.mubr.bf16.mxu0 0
      %4243 = vmatmul.mubr.bf16.gmra.mrb[0].mxu0 %v501
      %v4244 = vpop.f32.mrb[0].mxu0
      %v4245 = vadd.f32 0.0, %v4244
      %v4246 = vpop.f32.mrb[0].mxu0
      %v4247 = vpop.f32.mrb[0].mxu0
      %v4248 = vadd.f32 0.0, %v4247
      %v4249 = vpop.f32.mrb[0].mxu0
      %4250 = vdwg.mxu0
      %v4251 = vadd.f32 %v3960, %v4125
      %v4252 = vadd.f32 %v3963, %v4128
      %v4253 = vadd.f32 %v3968, %v4133
      %v4254 = vadd.f32 %v3971, %v4136
      %v4255 = vadd.f32 %v3976, %v4141
      %v4256 = vadd.f32 %v3979, %v4144
      %v4257 = vadd.f32 %v3984, %v4149
      %v4258 = vadd.f32 %v3987, %v4152
      %v4259 = vadd.f32 %v3992, %v4157
      %v4260 = vadd.f32 %v3995, %v4160
      %v4261 = vadd.f32 %v4000, %v4165
      %v4262 = vadd.f32 %v4003, %v4168
      %v4263 = vadd.f32 %v4008, %v4173
      %v4264 = vadd.f32 %v4011, %v4176
      %v4265 = vadd.f32 %v4016, %v4181
      %v4266 = vadd.f32 %v4019, %v4184
      %v4267 = vadd.f32 %v4024, %v4189
      %v4268 = vadd.f32 %v4027, %v4192
      %v4269 = vadd.f32 %v4032, %v4197
      %v4270 = vadd.f32 %v4035, %v4200
      %v4271 = vadd.f32 %v4040, %v4205
      %v4272 = vadd.f32 %v4043, %v4208
      %v4273 = vadd.f32 %v4048, %v4213
      %v4274 = vadd.f32 %v4051, %v4216
      %v4275 = vadd.f32 %v4056, %v4221
      %v4276 = vadd.f32 %v4059, %v4224
      %v4277 = vadd.f32 %v4064, %v4229
      %v4278 = vadd.f32 %v4067, %v4232
      %v4279 = vadd.f32 %v4072, %v4237
      %v4280 = vadd.f32 %v4075, %v4240
      %v4281 = vadd.f32 %v4080, %v4245
      %v4282 = vadd.f32 %v4083, %v4248
      %v4283 = vld [vmem:[%s8] sm:$0x1]
      %v4285 = vlaneseq
      %v4286 = vshrl.u32 %v4285, 7
      %v4287 = vsub.s32 0, %v4286
      %v4288 = vrot.slane %v4283, %v4287
      %v4290 = vadd.f32 %v4251, %v4288
      %v4291 = vadd.f32 %v4252, %v4288
      %v4292 = vadd.f32 %v4253, %v4288
      %v4293 = vadd.f32 %v4254, %v4288
      %v4294 = vadd.f32 %v4255, %v4288
      %v4295 = vadd.f32 %v4256, %v4288
      %v4296 = vadd.f32 %v4257, %v4288
      %v4297 = vadd.f32 %v4258, %v4288
      %v4298 = vadd.f32 %v4259, %v4288
      %v4299 = vadd.f32 %v4260, %v4288
      %v4300 = vadd.f32 %v4261, %v4288
      %v4301 = vadd.f32 %v4262, %v4288
      %v4302 = vadd.f32 %v4263, %v4288
      %v4303 = vadd.f32 %v4264, %v4288
      %v4304 = vadd.f32 %v4265, %v4288
      %v4305 = vadd.f32 %v4266, %v4288
      %v4306 = vadd.f32 %v4267, %v4288
      %v4307 = vadd.f32 %v4268, %v4288
      %v4308 = vadd.f32 %v4269, %v4288
      %v4309 = vadd.f32 %v4270, %v4288
      %v4310 = vadd.f32 %v4271, %v4288
      %v4311 = vadd.f32 %v4272, %v4288
      %v4312 = vadd.f32 %v4273, %v4288
      %v4313 = vadd.f32 %v4274, %v4288
      %v4314 = vadd.f32 %v4275, %v4288
      %v4315 = vadd.f32 %v4276, %v4288
      %v4316 = vadd.f32 %v4277, %v4288
      %v4317 = vadd.f32 %v4278, %v4288
      %v4318 = vadd.f32 %v4279, %v4288
      %v4319 = vadd.f32 %v4280, %v4288
      %v4320 = vadd.f32 %v4281, %v4288
      %v4321 = vadd.f32 %v4282, %v4288
      %v4322 = vmax.f32 %v4290, 0.0
      %v4323 = vmax.f32 %v4291, 0.0
      %v4324 = vmax.f32 %v4292, 0.0
      %v4325 = vmax.f32 %v4293, 0.0
      %v4326 = vmax.f32 %v4294, 0.0
      %v4327 = vmax.f32 %v4295, 0.0
      %v4328 = vmax.f32 %v4296, 0.0
      %v4329 = vmax.f32 %v4297, 0.0
      %v4330 = vmax.f32 %v4298, 0.0
      %v4331 = vmax.f32 %v4299, 0.0
      %v4332 = vmax.f32 %v4300, 0.0
      %v4333 = vmax.f32 %v4301, 0.0
      %v4334 = vmax.f32 %v4302, 0.0
      %v4335 = vmax.f32 %v4303, 0.0
      %v4336 = vmax.f32 %v4304, 0.0
      %v4337 = vmax.f32 %v4305, 0.0
      %v4338 = vmax.f32 %v4306, 0.0
      %v4339 = vmax.f32 %v4307, 0.0
      %v4340 = vmax.f32 %v4308, 0.0
      %v4341 = vmax.f32 %v4309, 0.0
      %v4342 = vmax.f32 %v4310, 0.0
      %v4343 = vmax.f32 %v4311, 0.0
      %v4344 = vmax.f32 %v4312, 0.0
      %v4345 = vmax.f32 %v4313, 0.0
      %v4346 = vmax.f32 %v4314, 0.0
      %v4347 = vmax.f32 %v4315, 0.0
      %v4348 = vmax.f32 %v4316, 0.0
      %v4349 = vmax.f32 %v4317, 0.0
      %v4350 = vmax.f32 %v4318, 0.0
      %v4351 = vmax.f32 %v4319, 0.0
      %v4352 = vmax.f32 %v4320, 0.0
      %v4353 = vmax.f32 %v4321, 0.0
      %v4354 = vpack.c.bf16 %v4323, %v4322
      %v4355 = vpack.c.bf16 %v4325, %v4324
      %v4356 = vpack.c.bf16 %v4327, %v4326
      %v4357 = vpack.c.bf16 %v4329, %v4328
      %v4358 = vpack.c.bf16 %v4331, %v4330
      %v4359 = vpack.c.bf16 %v4333, %v4332
      %v4360 = vpack.c.bf16 %v4335, %v4334
      %v4361 = vpack.c.bf16 %v4337, %v4336
      %v4362 = vpack.c.bf16 %v4339, %v4338
      %v4363 = vpack.c.bf16 %v4341, %v4340
      %v4364 = vpack.c.bf16 %v4343, %v4342
      %v4365 = vpack.c.bf16 %v4345, %v4344
      %v4366 = vpack.c.bf16 %v4347, %v4346
      %v4367 = vpack.c.bf16 %v4349, %v4348
      %v4368 = vpack.c.bf16 %v4351, %v4350
      %v4369 = vpack.c.bf16 %v4353, %v4352
      %v4386 = vunpack.c.l.b16 %v4354
      %v4387 = vunpack.c.h.b16 %v4354
      %v4388 = vunpack.c.l.b16 %v4355
      %v4389 = vunpack.c.h.b16 %v4355
      %v4390 = vunpack.c.l.b16 %v4356
      %v4391 = vunpack.c.h.b16 %v4356
      %v4392 = vunpack.c.l.b16 %v4357
      %v4393 = vunpack.c.h.b16 %v4357
      %v4394 = vunpack.c.l.b16 %v4358
      %v4395 = vunpack.c.h.b16 %v4358
      %v4396 = vunpack.c.l.b16 %v4359
      %v4397 = vunpack.c.h.b16 %v4359
      %v4398 = vunpack.c.l.b16 %v4360
      %v4399 = vunpack.c.h.b16 %v4360
      %v4400 = vunpack.c.l.b16 %v4361
      %v4401 = vunpack.c.h.b16 %v4361
      %v4402 = vunpack.c.l.b16 %v4362
      %v4403 = vunpack.c.h.b16 %v4362
      %v4404 = vunpack.c.l.b16 %v4363
      %v4405 = vunpack.c.h.b16 %v4363
      %v4406 = vunpack.c.l.b16 %v4364
      %v4407 = vunpack.c.h.b16 %v4364
      %v4408 = vunpack.c.l.b16 %v4365
      %v4409 = vunpack.c.h.b16 %v4365
      %v4410 = vunpack.c.l.b16 %v4366
      %v4411 = vunpack.c.h.b16 %v4366
      %v4412 = vunpack.c.l.b16 %v4367
      %v4413 = vunpack.c.h.b16 %v4367
      %v4414 = vunpack.c.l.b16 %v4368
      %v4415 = vunpack.c.h.b16 %v4368
      %v4416 = vunpack.c.l.b16 %v4369
      %v4417 = vunpack.c.h.b16 %v4369
      %v4418 = vpack.c.b16 %v4386, %v4386
      %v4419 = vpack.c.b16 %v4387, %v4387
      %v4420 = vpack.c.b16 %v4388, %v4388
      %v4421 = vpack.c.b16 %v4389, %v4389
      %v4422 = vpack.c.b16 %v4390, %v4390
      %v4423 = vpack.c.b16 %v4391, %v4391
      %v4424 = vpack.c.b16 %v4392, %v4392
      %v4425 = vpack.c.b16 %v4393, %v4393
      %v4426 = vpack.c.b16 %v4394, %v4394
      %v4427 = vpack.c.b16 %v4395, %v4395
      %v4428 = vpack.c.b16 %v4396, %v4396
      %v4429 = vpack.c.b16 %v4397, %v4397
      %v4430 = vpack.c.b16 %v4398, %v4398
      %v4431 = vpack.c.b16 %v4399, %v4399
      %v4432 = vpack.c.b16 %v4400, %v4400
      %v4433 = vpack.c.b16 %v4401, %v4401
      %v4434 = vpack.c.b16 %v4402, %v4402
      %v4435 = vpack.c.b16 %v4403, %v4403
      %v4436 = vpack.c.b16 %v4404, %v4404
      %v4437 = vpack.c.b16 %v4405, %v4405
      %v4438 = vpack.c.b16 %v4406, %v4406
      %v4439 = vpack.c.b16 %v4407, %v4407
      %v4440 = vpack.c.b16 %v4408, %v4408
      %v4441 = vpack.c.b16 %v4409, %v4409
      %v4442 = vpack.c.b16 %v4410, %v4410
      %v4443 = vpack.c.b16 %v4411, %v4411
      %v4444 = vpack.c.b16 %v4412, %v4412
      %v4445 = vpack.c.b16 %v4413, %v4413
      %v4446 = vpack.c.b16 %v4414, %v4414
      %v4447 = vpack.c.b16 %v4415, %v4415
      %v4448 = vpack.c.b16 %v4416, %v4416
      %v4449 = vpack.c.b16 %v4417, %v4417
      %vm4482 = vcmask 125952
      %4483 = vst.msk [vmem:[%s332] sm:$0xf] %vm4482, %v4418
      %4484 = vst.msk [vmem:[%s332 + $0x4] sm:$0xf] %vm4482, %v4419
      %4485 = vst.msk [vmem:[%s332 + $0x8] sm:$0xf] %vm4482, %v4420
      %4486 = vst.msk [vmem:[%s332 + $0xc] sm:$0xf] %vm4482, %v4421
      %4487 = vst.msk [vmem:[%s332 + $0x10] sm:$0xf] %vm4482, %v4422
      %4488 = vst.msk [vmem:[%s332 + $0x14] sm:$0xf] %vm4482, %v4423
      %4489 = vst.msk [vmem:[%s332 + $0x18] sm:$0xf] %vm4482, %v4424
      %4490 = vst.msk [vmem:[%s332 + $0x1c] sm:$0xf] %vm4482, %v4425
      %4491 = vst.msk [vmem:[%s332 + $0x20] sm:$0xf] %vm4482, %v4426
      %4492 = vst.msk [vmem:[%s332 + $0x24] sm:$0xf] %vm4482, %v4427
      %4493 = vst.msk [vmem:[%s332 + $0x28] sm:$0xf] %vm4482, %v4428
      %4494 = vst.msk [vmem:[%s332 + $0x2c] sm:$0xf] %vm4482, %v4429
      %4495 = vst.msk [vmem:[%s332 + $0x30] sm:$0xf] %vm4482, %v4430
      %4496 = vst.msk [vmem:[%s332 + $0x34] sm:$0xf] %vm4482, %v4431
      %4497 = vst.msk [vmem:[%s332 + $0x38] sm:$0xf] %vm4482, %v4432
      %4498 = vst.msk [vmem:[%s332 + $0x3c] sm:$0xf] %vm4482, %v4433
      %4499 = vst.msk [vmem:[%s332 + $0x40] sm:$0xf] %vm4482, %v4434
      %4500 = vst.msk [vmem:[%s332 + $0x44] sm:$0xf] %vm4482, %v4435
      %4501 = vst.msk [vmem:[%s332 + $0x48] sm:$0xf] %vm4482, %v4436
      %4502 = vst.msk [vmem:[%s332 + $0x4c] sm:$0xf] %vm4482, %v4437
      %4503 = vst.msk [vmem:[%s332 + $0x50] sm:$0xf] %vm4482, %v4438
      %4504 = vst.msk [vmem:[%s332 + $0x54] sm:$0xf] %vm4482, %v4439
      %4505 = vst.msk [vmem:[%s332 + $0x58] sm:$0xf] %vm4482, %v4440
      %4506 = vst.msk [vmem:[%s332 + $0x5c] sm:$0xf] %vm4482, %v4441
      %4507 = vst.msk [vmem:[%s332 + $0x60] sm:$0xf] %vm4482, %v4442
      %4508 = vst.msk [vmem:[%s332 + $0x64] sm:$0xf] %vm4482, %v4443
      %4509 = vst.msk [vmem:[%s332 + $0x68] sm:$0xf] %vm4482, %v4444
      %4510 = vst.msk [vmem:[%s332 + $0x6c] sm:$0xf] %vm4482, %v4445
      %4511 = vst.msk [vmem:[%s332 + $0x70] sm:$0xf] %vm4482, %v4446
      %4512 = vst.msk [vmem:[%s332 + $0x74] sm:$0xf] %vm4482, %v4447
      %4513 = vst.msk [vmem:[%s332 + $0x78] sm:$0xf] %vm4482, %v4448
      %4514 = vst.msk [vmem:[%s332 + $0x7c] sm:$0xf] %vm4482, %v4449
      %p4515 = scmp.lt.s32.totalorder %s20, 1
      %s4516 = scalar_select %p4515, %s20, 1
      %s4517 = smul.addr %s4516, 32
      %s4518 = smul.addr %s4517, 4
      %s4519 = scalar_lea.vmem %s9, %s4518
      // Predicated region
      $region57: #{bottleneck_forward.1} parent=55 // pred_check
        %p4520 = pneg %p232
      $region58: #{bottleneck_forward.1} parent=55 // pred_check_branch
        %4522 = sbr.rel (%p4520) target = $region60
      $region59: #{bottleneck_forward.1} parent=55 // pred_region
        _
      $region60: #{bottleneck_forward.1} parent=55 // pred_fallthru
        _
    $region56: #{bottleneck_forward.1} parent=5 // pred_fallthru
      _
    %p4523 = scmp.le.s32.totalorder 2, %s15
    // Predicated region
    $region61: #{bottleneck_forward.1} parent=5 // pred_check
      %p4524 = pneg %p4523
    $region62: #{bottleneck_forward.1} parent=5 // pred_check_branch
      %4526 = sbr.rel (%p4524) target = $region64
    $region63: #{bottleneck_forward.1} parent=5 // pred_region
      %s4527 = ssub.s32 %s15, 2
      // Predicated region
      $region65: #{bottleneck_forward.1} parent=63 // pred_check
        %p4528 = pneg %p238
      $region66: #{bottleneck_forward.1} parent=63 // pred_check_branch
        %4530 = sbr.rel (%p4528) target = $region68
      $region67: #{bottleneck_forward.1} parent=63 // pred_region
        %p4531 = scmp.lt.s32.totalorder %s21, 1
        %s4532 = scalar_select %p4531, %s21, 1
        %s4533 = smul.addr %s4532, 32
        %s4534 = smul.addr %s4533, 4
        %s4535 = scalar_lea.vmem %s9, %s4534
      $region68: #{bottleneck_forward.1} parent=63 // pred_fallthru
        _
    $region64: #{bottleneck_forward.1} parent=5 // pred_fallthru
      _
  $region6: #{bottleneck_forward.1} parent=0 // loop_footer
    %s19 = sadd.s32 1, %s15
  $region7: #{bottleneck_forward.1} parent=0 // loop_footer_branch
    %14 = sbr.rel target = $region3
  $region8: #{bottleneck_forward.1} parent=0 // loop_exit
    _

</llo_original>
